<compile_context>
chip_gen: v5e
topology: v5e:2x2
jax: 0.10.0
libtpu: 0.0.40
codegen_flags: <defaults>
</compile_context>

<pallas_src>
import functools

import jax
import jax.numpy as jnp
from jax.experimental import pallas as pl
from jax.experimental.pallas import tpu as pltpu


def _round_up(a, b):
    return ((a + b - 1) // b) * b


def _vmem_limit_bytes():
    """Scoped-VMEM limit: ~75% of physical capacity for this TPU generation."""
    try:
        cap = int(pltpu.get_tpu_info().vmem_capacity_bytes)
    except Exception:
        cap = 64 * 1024 * 1024  # conservative fallback (v7x-sized)
    return max(16 * 1024 * 1024, (cap * 3) // 4)


def _gelu_f32(h, approx):
    if approx:
        # tanh-approx GELU: tanh lowers to the EUP (a separate, otherwise-idle
        # VLIW slot), keeping the kernel MXU-bound on v6e/v7x.  Off by default
        # so numerics match torch.nn.GELU() (exact erf).
        c0 = jnp.float32(0.7978845608028654)  # sqrt(2/pi)
        c1 = jnp.float32(0.044715)
        return jnp.float32(0.5) * h * (jnp.float32(1.0)
                                       + jnp.tanh(c0 * (h + c1 * h * h * h)))
    inv_sqrt2 = jnp.float32(0.7071067811865476)
    return jnp.float32(0.5) * h * (jnp.float32(1.0) + jax.lax.erf(h * inv_sqrt2))


def _mlp_fused_kernel(x_ref, w1_ref, b1_ref, w2_ref, b2_ref, o_ref, *, approx_gelu):
    """Whole-hidden MLP step for one row tile: y = GELU(x@W1+b1) @ W2 + b2.

    W1/W2/biases have constant block indices across the (row-tile) grid, so
    Pallas DMAs them exactly once and keeps them VMEM-resident.
    """
    h = jnp.dot(x_ref[...], w1_ref[...], preferred_element_type=jnp.float32)
    h = _gelu_f32(h + b1_ref[...].astype(jnp.float32), approx_gelu)
    y = jnp.dot(h.astype(w2_ref.dtype), w2_ref[...],
                preferred_element_type=jnp.float32)
    # TODO(synk): training-mode dropout (pltpu.prng_seed + stateful_bernoulli)
    # not implemented; nn.Dropout in eval mode / p=0.0 is the identity.
    o_ref[...] = (y + b2_ref[...].astype(jnp.float32)).astype(o_ref.dtype)


def _mlp_stream_kernel(x_ref, w1_ref, b1_ref, w2_ref, b2_ref, o_ref, acc_ref,
                       *, approx_gelu):
    """One (row-tile, hidden-chunk) step when W1/W2 do not fit in VMEM."""
    k = pl.program_id(1)

    h = jnp.dot(x_ref[...], w1_ref[...], preferred_element_type=jnp.float32)
    h = _gelu_f32(h + b1_ref[...].astype(jnp.float32), approx_gelu)
    part = jnp.dot(h.astype(w2_ref.dtype), w2_ref[...],
                   preferred_element_type=jnp.float32)

    @pl.when(k == 0)
    def _first():
        # Direct write: no zero-init + read-modify-write on the first chunk.
        acc_ref[...] = part

    @pl.when(k != 0)
    def _accumulate():
        acc_ref[...] += part

    @pl.when(k == pl.num_programs(1) - 1)
    def _finalize():
        o_ref[...] = (acc_ref[...] + b2_ref[...].astype(jnp.float32)).astype(o_ref.dtype)


def _select_tiling(M, C, H, x_itemsize, w_itemsize, out_itemsize,
                   tm_req, th_req, budget):
    """Pick (tm, th) sized against the per-generation VMEM budget."""
    # --- row tile: MXU/sublane friendly, no bigger than the problem ---
    tm = min(tm_req, max(8, _round_up(M, 8)))
    if tm >= 128:
        tm = (tm // 128) * 128
    else:
        tm = _round_up(tm, 8)
    # Prefer >= 2 row tiles when the problem allows it (v7x has 2 TensorCores
    # that shard the "parallel" grid axis).
    while M >= 2 * 128 and tm > 128 and pl.cdiv(M, tm) < 2:
        tm -= 128

    def fits(th_, resident):
        w_chunk = 2 * (C * th_ + th_ * C) * w_itemsize     # double-buffered W1+W2 chunks
        x_out = 2 * tm * C * (x_itemsize + out_itemsize)   # double-buffered x / out tiles
        inter = tm * th_ * 4                               # f32 GELU intermediate
        acc = 0 if resident else tm * C * 4                # f32 accumulator scratch
        bias = 4 * (th_ + C) * w_itemsize
        return w_chunk + x_out + inter + acc + bias <= budget

    # --- hidden chunk ---
    if th_req is not None and H % th_req == 0 and (th_req % 128 == 0 or th_req == H):
        return tm, th_req
    if fits(H, resident=True):
        return tm, H                                        # weights VMEM-resident
    cands = sorted({d for d in range(128, H, 128) if H % d == 0}, reverse=True)
    for th in cands:
        if fits(th, resident=False):
            return tm, th
    return tm, (cands[-1] if cands else H)                  # best effort


@functools.partial(jax.jit, static_argnames=("tm", "th", "approx_gelu"))
def mlp_forward(x, w1, b1, w2, b2, *, tm=256, th=None, approx_gelu=False):
    """y = Dropout(c_proj(GELU(c_fc(x)))) in eval mode.

    x: (B, T, C);  w1: (C, 4C) stored (in, out);  b1: (4C,);  w2: (4C, C);  b2: (C,).
    """
    B, T, C = x.shape
    H = w1.shape[1]
    M = B * T

    vmem_limit = _vmem_limit_bytes()
    tm, th = _select_tiling(
        M, C, H,
        x.dtype.itemsize, w1.dtype.itemsize, x.dtype.itemsize,
        tm, th, budget=int(vmem_limit * 0.85))

    m_pad = _round_up(M, tm)
    x2 = x.reshape(M, C)
    if m_pad != M:
        x2 = jnp.pad(x2, ((0, m_pad - M), (0, 0)))

    b1_2 = b1.reshape(1, H)
    b2_2 = b2.reshape(1, C)

    nk = H // th
    n_row_tiles = m_pad // tm

    # Honest CostEstimate: weights are re-streamed per row tile only when the
    # hidden axis is chunked; resident weights are read exactly once.
    w_bytes = w1.size * w1.dtype.itemsize + w2.size * w2.dtype.itemsize
    weight_passes = 1 if nk == 1 else n_row_tiles
    cost = pl.CostEstimate(
        flops=4 * m_pad * C * H,            # two matmuls: 2*M*C*H each
        transcendentals=m_pad * H,          # erf / tanh
        bytes_accessed=(x2.size * x2.dtype.itemsize
                        + weight_passes * w_bytes
                        + (b1.size + b2.size) * b1.dtype.itemsize
                        + m_pad * C * x.dtype.itemsize))

    if nk == 1:
        # Fully fused path: weights VMEM-resident, no reduction axis.
        kernel = functools.partial(_mlp_fused_kernel, approx_gelu=approx_gelu)
        grid = (n_row_tiles,)
        in_specs = [
            pl.BlockSpec((tm, C), lambda i: (i, 0)),   # x row tile
            pl.BlockSpec((C, H), lambda i: (0, 0)),    # W1 (resident)
            pl.BlockSpec((1, H), lambda i: (0, 0)),    # b1 (resident)
            pl.BlockSpec((H, C), lambda i: (0, 0)),    # W2 (resident)
            pl.BlockSpec((1, C), lambda i: (0, 0)),    # b2 (resident)
        ]
        out_specs = pl.BlockSpec((tm, C), lambda i: (i, 0))
        scratch = []
        dims = ("parallel",)
    else:
        # Hidden-streaming fallback: chunk H, accumulate in f32 VMEM scratch.
        kernel = functools.partial(_mlp_stream_kernel, approx_gelu=approx_gelu)
        grid = (n_row_tiles, nk)
        in_specs = [
            pl.BlockSpec((tm, C), lambda i, k: (i, 0)),   # x row tile (held across k)
            pl.BlockSpec((C, th), lambda i, k: (0, k)),   # W1 hidden chunk
            pl.BlockSpec((1, th), lambda i, k: (0, k)),   # b1 hidden chunk
            pl.BlockSpec((th, C), lambda i, k: (k, 0)),   # W2 hidden chunk
            pl.BlockSpec((1, C), lambda i, k: (0, 0)),    # b2 (full)
        ]
        out_specs = pl.BlockSpec((tm, C), lambda i, k: (i, 0))
        scratch = [pltpu.VMEM((tm, C), jnp.float32)]
        dims = ("parallel", "arbitrary")

    out = pl.pallas_call(
        kernel,
        out_shape=jax.ShapeDtypeStruct((m_pad, C), x.dtype),
        grid_spec=pltpu.PrefetchScalarGridSpec(
            num_scalar_prefetch=0,
            grid=grid,
            in_specs=in_specs,
            out_specs=out_specs,
            scratch_shapes=scratch),
        compiler_params=pltpu.CompilerParams(
            dimension_semantics=dims,
            vmem_limit_bytes=vmem_limit),
        cost_estimate=cost,
    )(x2, w1, b1_2, w2, b2_2)

    return out[:M].reshape(B, T, C)


def init_mlp_params(key, n_embed, dtype=jnp.float32):
    """Deterministic init mirroring nn.Linear default (uniform +/- 1/sqrt(fan_in)).

    Weights are stored pre-transposed as (in, out) for the kernel.
    """
    hidden = 4 * n_embed
    k1, k2, k3, k4 = jax.random.split(key, 4)
    bound_fc = 1.0 / (n_embed ** 0.5)
    bound_pj = 1.0 / (hidden ** 0.5)
    w1 = jax.random.uniform(k1, (n_embed, hidden), dtype, -bound_fc, bound_fc)
    b1 = jax.random.uniform(k2, (hidden,), dtype, -bound_fc, bound_fc)
    w2 = jax.random.uniform(k3, (hidden, n_embed), dtype, -bound_pj, bound_pj)
    b2 = jax.random.uniform(k4, (n_embed,), dtype, -bound_pj, bound_pj)
    return w1, b1, w2, b2


if __name__ == "__main__":
    # Small GPT-style config with a lane-dense embed dim:
    # batch=2, seq=64, n_embed=128 (hidden=512), dropout eval.
    B, T, C = 2, 64, 128

    key = jax.random.PRNGKey(0)
    kx, kp = jax.random.split(key)
    x = jax.random.normal(kx, (B, T, C), dtype=jnp.float32)
    w1, b1, w2, b2 = init_mlp_params(kp, C)

    # Plain-JAX reference of the same math (exact erf GELU, eval-mode dropout).
    h_ref = x.reshape(-1, C) @ w1 + b1
    h_ref = 0.5 * h_ref * (1.0 + jax.lax.erf(h_ref * jnp.float32(0.7071067811865476)))
    y_ref = (h_ref @ w2 + b2).reshape(B, T, C)

    # Auto tiling: weights fit VMEM -> fully fused, weights-resident path.
    y = jax.block_until_ready(mlp_forward(x, w1, b1, w2, b2))
    assert jnp.allclose(y, y_ref, atol=1e-3, rtol=1e-3), "mismatch vs reference (fused)"

    # Forced hidden streaming (th < H) to exercise the accumulator path.
    y2 = jax.block_until_ready(mlp_forward(x, w1, b1, w2, b2, th=256))
    assert jnp.allclose(y2, y_ref, atol=1e-3, rtol=1e-3), "mismatch vs reference (streamed)"

    print("KERNEL_OK")
</pallas_src>

<mosaic_0001>
module attributes {stable_mosaic.version = 11 : i64} {
  func.func @_mlp_fused_kernel(%arg0: i32, %arg1: memref<128x128xf32, #tpu.memory_space<vmem>>, %arg2: memref<128x512xf32, #tpu.memory_space<vmem>>, %arg3: memref<1x512xf32, #tpu.memory_space<vmem>>, %arg4: memref<512x128xf32, #tpu.memory_space<vmem>>, %arg5: memref<1x128xf32, #tpu.memory_space<vmem>>, %arg6: memref<128x128xf32, #tpu.memory_space<vmem>>) attributes {dimension_semantics = [#tpu.dimension_semantics<parallel>], iteration_bounds = array<i64: 1>, scalar_prefetch = 0 : i64, scratch_operands = 0 : i64, tpu.core_type = #tpu.core_type<tc>, window_params = [{transform_indices = @transform_0, window_bounds = array<i64: 128, 128>}, {pipeline_mode = #tpu.pipeline_mode<synchronous>, transform_indices = @transform_1, window_bounds = array<i64: 128, 512>}, {pipeline_mode = #tpu.pipeline_mode<synchronous>, transform_indices = @transform_2, window_bounds = array<i64: 1, 512>}, {pipeline_mode = #tpu.pipeline_mode<synchronous>, transform_indices = @transform_3, window_bounds = array<i64: 512, 128>}, {pipeline_mode = #tpu.pipeline_mode<synchronous>, transform_indices = @transform_4, window_bounds = array<i64: 1, 128>}, {transform_indices = @transform_5, window_bounds = array<i64: 128, 128>}]} {
    %c0 = arith.constant 0 : index
    %c0_0 = arith.constant 0 : index
    %0 = vector.load %arg1[%c0, %c0_0] : memref<128x128xf32, #tpu.memory_space<vmem>>, vector<128x128xf32>
    %c0_1 = arith.constant 0 : index
    %c0_2 = arith.constant 0 : index
    %1 = vector.load %arg2[%c0_1, %c0_2] : memref<128x512xf32, #tpu.memory_space<vmem>>, vector<128x512xf32>
    %cst = arith.constant dense<0.000000e+00> : vector<128x512xf32>
    %2 = tpu.matmul %0, %1, %cst {dimension_numbers = #tpu.dot_dimension_numbers<[1], [0], [0], [1], [0, 0, 1, 1], [], []>} : vector<128x128xf32>, vector<128x512xf32>, vector<128x512xf32> -> vector<128x512xf32>
    %c0_3 = arith.constant 0 : index
    %c0_4 = arith.constant 0 : index
    %3 = vector.load %arg3[%c0_3, %c0_4] : memref<1x512xf32, #tpu.memory_space<vmem>>, vector<1x512xf32>
    %4 = vector.broadcast %3 : vector<1x512xf32> to vector<128x512xf32>
    %5 = arith.addf %2, %4 : vector<128x512xf32>
    %cst_5 = arith.constant 5.000000e-01 : f32
    %6 = vector.broadcast %cst_5 : f32 to vector<128x512xf32>
    %7 = arith.mulf %6, %5 : vector<128x512xf32>
    %cst_6 = arith.constant 0.707106769 : f32
    %8 = vector.broadcast %cst_6 : f32 to vector<128x512xf32>
    %9 = arith.mulf %5, %8 : vector<128x512xf32>
    %10 = math.erf %9 : vector<128x512xf32>
    %cst_7 = arith.constant 1.000000e+00 : f32
    %11 = vector.broadcast %cst_7 : f32 to vector<128x512xf32>
    %12 = arith.addf %11, %10 : vector<128x512xf32>
    %13 = arith.mulf %7, %12 : vector<128x512xf32>
    %c0_8 = arith.constant 0 : index
    %c0_9 = arith.constant 0 : index
    %14 = vector.load %arg4[%c0_8, %c0_9] : memref<512x128xf32, #tpu.memory_space<vmem>>, vector<512x128xf32>
    %cst_10 = arith.constant dense<0.000000e+00> : vector<128x128xf32>
    %15 = tpu.matmul %13, %14, %cst_10 {dimension_numbers = #tpu.dot_dimension_numbers<[1], [0], [0], [1], [0, 0, 1, 1], [], []>} : vector<128x512xf32>, vector<512x128xf32>, vector<128x128xf32> -> vector<128x128xf32>
    %c0_11 = arith.constant 0 : index
    %c0_12 = arith.constant 0 : index
    %16 = vector.load %arg5[%c0_11, %c0_12] : memref<1x128xf32, #tpu.memory_space<vmem>>, vector<1x128xf32>
    %17 = vector.broadcast %16 : vector<1x128xf32> to vector<128x128xf32>
    %18 = arith.addf %15, %17 : vector<128x128xf32>
    %c0_13 = arith.constant 0 : index
    %c0_14 = arith.constant 0 : index
    %19 = vector.load %arg6[%c0_13, %c0_14] : memref<128x128xf32, #tpu.memory_space<vmem>>, vector<128x128xf32>
    tpu.vector_store %arg6[%c0_13, %c0_14], %18 {strides = array<i32>} : memref<128x128xf32, #tpu.memory_space<vmem>>, vector<128x128xf32>,
    return
  }
  func.func @transform_0(%arg0: i32) -> (i32, i32) {
    %c0_i32 = arith.constant 0 : i32
    %c0_i32_0 = arith.constant 0 : i32
    return %arg0, %c0_i32 : i32, i32
  }
  func.func @transform_1(%arg0: i32) -> (i32, i32) {
    %c0_i32 = arith.constant 0 : i32
    %c0_i32_0 = arith.constant 0 : i32
    %c0_i32_1 = arith.constant 0 : i32
    return %c0_i32, %c0_i32_0 : i32, i32
  }
  func.func @transform_2(%arg0: i32) -> (i32, i32) {
    %c0_i32 = arith.constant 0 : i32
    %c0_i32_0 = arith.constant 0 : i32
    %c0_i32_1 = arith.constant 0 : i32
    return %c0_i32, %c0_i32_0 : i32, i32
  }
  func.func @transform_3(%arg0: i32) -> (i32, i32) {
    %c0_i32 = arith.constant 0 : i32
    %c0_i32_0 = arith.constant 0 : i32
    %c0_i32_1 = arith.constant 0 : i32
    return %c0_i32, %c0_i32_0 : i32, i32
  }
  func.func @transform_4(%arg0: i32) -> (i32, i32) {
    %c0_i32 = arith.constant 0 : i32
    %c0_i32_0 = arith.constant 0 : i32
    %c0_i32_1 = arith.constant 0 : i32
    return %c0_i32, %c0_i32_0 : i32, i32
  }
  func.func @transform_5(%arg0: i32) -> (i32, i32) {
    %c0_i32 = arith.constant 0 : i32
    %c0_i32_0 = arith.constant 0 : i32
    return %arg0, %c0_i32 : i32, i32
  }
}

</mosaic_0001>

<llo_original>
// kernel: mlp_forward.1
$region0: #{mlp_forward.1}
  #allocation0 [shape = 'u32[]', space=smem, size = 0x4, offset = 0x4, fixed_abs, tag = 'smem constant byte address 0x4 - core index']
  #allocation1 [shape = 'u32[72,128]{1,0:T(1,128)}', space=vmem, size = 0x9000, scoped, tag = 'internal scratch']
  %s0 = inlined_call_operand.hbm [shape: f32[128,128], index: 0, kind: input, shape index: {}]
  %s1 = inlined_call_operand.hbm [shape: f32[128,512], index: 1, kind: input, shape index: {}]
  %s2 = inlined_call_operand.vmem [shape: f32[1,512], index: 2, kind: input, shape index: {}]
  %s3 = inlined_call_operand.hbm [shape: f32[512,128], index: 3, kind: input, shape index: {}]
  %s4 = inlined_call_operand.vmem [shape: f32[1,128], index: 4, kind: input, shape index: {}]
  %s5 = inlined_call_operand.hbm [shape: f32[128,128], index: 5, kind: output, shape index: {}]
  %s6 = sld [smem:[#allocation0]]
  $region42: #{mlp_forward.1} parent=0
    _
  %s8 = ssub.s32 1, %s6
  %s9 = scalar_select 0, %s8, %s6
  $region1: #{mlp_forward.1} parent=0
    #allocation2 [shape = 'u8[65536]{0}', space=vmem, size = 0x10000, scoped, tag = 'input window, operand 0, single buffered']
    #allocation3 [shape = 's32[1]{0}', space=sflag, size = 0x4, scoped, tag = 'scoped memory for mlp_forward.1']
    #allocation4 [shape = 's32[1]{0}', space=sflag, size = 0x4, scoped, tag = 'scoped memory for mlp_forward.1']
    #allocation5 [shape = 'u8[262144]{0}', space=vmem, size = 0x40000, scoped, tag = 'input window, operand 1, single buffered']
    #allocation6 [shape = 's32[1]{0}', space=sflag, size = 0x4, scoped, tag = 'scoped memory for mlp_forward.1']
    #allocation7 [shape = 'u8[262144]{0}', space=vmem, size = 0x40000, scoped, tag = 'input window, operand 3, single buffered']
    #allocation8 [shape = 'u8[65536]{0}', space=vmem, size = 0x10000, scoped, tag = 'output window, operand 0, single buffered']
    %10 = vsyncpa [#allocation3], 0
    %11 = vsyncpa [#allocation6], 0
    %12 = vsyncpa [#allocation4], 0
    // Predicated region
    $region2: #{mlp_forward.1} parent=1 // pred_check
      _
    $region3: #{mlp_forward.1} parent=1 // pred_check_branch
      %14 = sbr.rel (0) target = $region5
    $region4: #{mlp_forward.1} parent=1 // pred_region
      %16 = vsyncadd [#allocation3], 0
      %s17 = sshll.u32 %s0, 4
      %s18 = int_to_ptr.hbm [resolvable:$true] %s17
      %s19 = sshll.u32 [#allocation2], 4
      %s20 = int_to_ptr.vmem [resolvable:$true] %s19
      %25 = dma.hbm_to_vmem [thread:$0]  %s18, 2048, %s20, [#allocation3], 128, 128, 8
    $region5: #{mlp_forward.1} parent=1 // pred_fallthru
      _
    // Predicated region
    $region6: #{mlp_forward.1} parent=1 // pred_check
      _
    $region7: #{mlp_forward.1} parent=1 // pred_check_branch
      %27 = sbr.rel (0) target = $region9
    $region8: #{mlp_forward.1} parent=1 // pred_region
      %29 = vsyncadd [#allocation6], 0
      %s30 = sshll.u32 %s1, 4
      %s31 = int_to_ptr.hbm [resolvable:$true] %s30
      %s32 = sshll.u32 [#allocation5], 4
      %s33 = int_to_ptr.vmem [resolvable:$true] %s32
      %38 = dma.hbm_to_vmem [thread:$0]  %s31, 8192, %s33, [#allocation6], 512, 512, 32
    $region9: #{mlp_forward.1} parent=1 // pred_fallthru
      _
    // Predicated region
    $region10: #{mlp_forward.1} parent=1 // pred_check
      _
    $region11: #{mlp_forward.1} parent=1 // pred_check_branch
      %40 = sbr.rel (0) target = $region13
    $region12: #{mlp_forward.1} parent=1 // pred_region
      _
    $region13: #{mlp_forward.1} parent=1 // pred_fallthru
      _
    // Predicated region
    $region14: #{mlp_forward.1} parent=1 // pred_check
      _
    $region15: #{mlp_forward.1} parent=1 // pred_check_branch
      %42 = sbr.rel (0) target = $region17
    $region16: #{mlp_forward.1} parent=1 // pred_region
      %44 = vsyncadd [#allocation6], 0
      %s45 = sshll.u32 %s3, 4
      %s46 = int_to_ptr.hbm [resolvable:$true] %s45
      %s47 = sshll.u32 [#allocation7], 4
      %s48 = int_to_ptr.vmem [resolvable:$true] %s47
      %53 = dma.hbm_to_vmem [thread:$0]  %s46, 8192, %s48, [#allocation6], 128, 128, 8
    $region17: #{mlp_forward.1} parent=1 // pred_fallthru
      _
    // Predicated region
    $region18: #{mlp_forward.1} parent=1 // pred_check
      _
    $region19: #{mlp_forward.1} parent=1 // pred_check_branch
      %55 = sbr.rel (0) target = $region21
    $region20: #{mlp_forward.1} parent=1 // pred_region
      _
    $region21: #{mlp_forward.1} parent=1 // pred_fallthru
      _
    // Predicated region
    $region22: #{mlp_forward.1} parent=1 // pred_check
      _
    $region23: #{mlp_forward.1} parent=1 // pred_check_branch
      %57 = sbr.rel (0) target = $region25
    $region24: #{mlp_forward.1} parent=1 // pred_region
      %59 = dma.done [#allocation3], 2048
    $region25: #{mlp_forward.1} parent=1 // pred_fallthru
      _
    // Predicated region
    $region26: #{mlp_forward.1} parent=1 // pred_check
      _
    $region27: #{mlp_forward.1} parent=1 // pred_check_branch
      %61 = sbr.rel (0) target = $region29
    $region28: #{mlp_forward.1} parent=1 // pred_region
      %63 = dma.done [#allocation6], 8192
    $region29: #{mlp_forward.1} parent=1 // pred_fallthru
      _
    // Predicated region
    $region30: #{mlp_forward.1} parent=1 // pred_check
      _
    $region31: #{mlp_forward.1} parent=1 // pred_check_branch
      %65 = sbr.rel (0) target = $region33
    $region32: #{mlp_forward.1} parent=1 // pred_region
      %67 = dma.done [#allocation6], 8192
    $region33: #{mlp_forward.1} parent=1 // pred_fallthru
      _
    %v68 = vld [vmem:[#allocation2] sm:$0xff]
    %v69 = vld [vmem:[#allocation2 + $0x8] sm:$0xff]
    %v70 = vld [vmem:[#allocation2 + $0x10] sm:$0xff]
    %v71 = vld [vmem:[#allocation2 + $0x18] sm:$0xff]
    %v72 = vld [vmem:[#allocation2 + $0x20] sm:$0xff]
    %v73 = vld [vmem:[#allocation2 + $0x28] sm:$0xff]
    %v74 = vld [vmem:[#allocation2 + $0x30] sm:$0xff]
    %v75 = vld [vmem:[#allocation2 + $0x38] sm:$0xff]
    %v76 = vld [vmem:[#allocation2 + $0x40] sm:$0xff]
    %v77 = vld [vmem:[#allocation2 + $0x48] sm:$0xff]
    %v78 = vld [vmem:[#allocation2 + $0x50] sm:$0xff]
    %v79 = vld [vmem:[#allocation2 + $0x58] sm:$0xff]
    %v80 = vld [vmem:[#allocation2 + $0x60] sm:$0xff]
    %v81 = vld [vmem:[#allocation2 + $0x68] sm:$0xff]
    %v82 = vld [vmem:[#allocation2 + $0x70] sm:$0xff]
    %v83 = vld [vmem:[#allocation2 + $0x78] sm:$0xff]
    %v84 = vld [vmem:[#allocation5] sm:$0xff]
    %v85 = vld [vmem:[#allocation5 + $0x8] sm:$0xff]
    %v86 = vld [vmem:[#allocation5 + $0x10] sm:$0xff]
    %v87 = vld [vmem:[#allocation5 + $0x18] sm:$0xff]
    %v88 = vld [vmem:[#allocation5 + $0x20] sm:$0xff]
    %v89 = vld [vmem:[#allocation5 + $0x28] sm:$0xff]
    %v90 = vld [vmem:[#allocation5 + $0x30] sm:$0xff]
    %v91 = vld [vmem:[#allocation5 + $0x38] sm:$0xff]
    %v92 = vld [vmem:[#allocation5 + $0x40] sm:$0xff]
    %v93 = vld [vmem:[#allocation5 + $0x48] sm:$0xff]
    %v94 = vld [vmem:[#allocation5 + $0x50] sm:$0xff]
    %v95 = vld [vmem:[#allocation5 + $0x58] sm:$0xff]
    %v96 = vld [vmem:[#allocation5 + $0x60] sm:$0xff]
    %v97 = vld [vmem:[#allocation5 + $0x68] sm:$0xff]
    %v98 = vld [vmem:[#allocation5 + $0x70] sm:$0xff]
    %v99 = vld [vmem:[#allocation5 + $0x78] sm:$0xff]
    %v100 = vld [vmem:[#allocation5 + $0x80] sm:$0xff]
    %v101 = vld [vmem:[#allocation5 + $0x88] sm:$0xff]
    %v102 = vld [vmem:[#allocation5 + $0x90] sm:$0xff]
    %v103 = vld [vmem:[#allocation5 + $0x98] sm:$0xff]
    %v104 = vld [vmem:[#allocation5 + $0xa0] sm:$0xff]
    %v105 = vld [vmem:[#allocation5 + $0xa8] sm:$0xff]
    %v106 = vld [vmem:[#allocation5 + $0xb0] sm:$0xff]
    %v107 = vld [vmem:[#allocation5 + $0xb8] sm:$0xff]
    %v108 = vld [vmem:[#allocation5 + $0xc0] sm:$0xff]
    %v109 = vld [vmem:[#allocation5 + $0xc8] sm:$0xff]
    %v110 = vld [vmem:[#allocation5 + $0xd0] sm:$0xff]
    %v111 = vld [vmem:[#allocation5 + $0xd8] sm:$0xff]
    %v112 = vld [vmem:[#allocation5 + $0xe0] sm:$0xff]
    %v113 = vld [vmem:[#allocation5 + $0xe8] sm:$0xff]
    %v114 = vld [vmem:[#allocation5 + $0xf0] sm:$0xff]
    %v115 = vld [vmem:[#allocation5 + $0xf8] sm:$0xff]
    %v116 = vld [vmem:[#allocation5 + $0x100] sm:$0xff]
    %v117 = vld [vmem:[#allocation5 + $0x108] sm:$0xff]
    %v118 = vld [vmem:[#allocation5 + $0x110] sm:$0xff]
    %v119 = vld [vmem:[#allocation5 + $0x118] sm:$0xff]
    %v120 = vld [vmem:[#allocation5 + $0x120] sm:$0xff]
    %v121 = vld [vmem:[#allocation5 + $0x128] sm:$0xff]
    %v122 = vld [vmem:[#allocation5 + $0x130] sm:$0xff]
    %v123 = vld [vmem:[#allocation5 + $0x138] sm:$0xff]
    %v124 = vld [vmem:[#allocation5 + $0x140] sm:$0xff]
    %v125 = vld [vmem:[#allocation5 + $0x148] sm:$0xff]
    %v126 = vld [vmem:[#allocation5 + $0x150] sm:$0xff]
    %v127 = vld [vmem:[#allocation5 + $0x158] sm:$0xff]
    %v128 = vld [vmem:[#allocation5 + $0x160] sm:$0xff]
    %v129 = vld [vmem:[#allocation5 + $0x168] sm:$0xff]
    %v130 = vld [vmem:[#allocation5 + $0x170] sm:$0xff]
    %v131 = vld [vmem:[#allocation5 + $0x178] sm:$0xff]
    %v132 = vld [vmem:[#allocation5 + $0x180] sm:$0xff]
    %v133 = vld [vmem:[#allocation5 + $0x188] sm:$0xff]
    %v134 = vld [vmem:[#allocation5 + $0x190] sm:$0xff]
    %v135 = vld [vmem:[#allocation5 + $0x198] sm:$0xff]
    %v136 = vld [vmem:[#allocation5 + $0x1a0] sm:$0xff]
    %v137 = vld [vmem:[#allocation5 + $0x1a8] sm:$0xff]
    %v138 = vld [vmem:[#allocation5 + $0x1b0] sm:$0xff]
    %v139 = vld [vmem:[#allocation5 + $0x1b8] sm:$0xff]
    %v140 = vld [vmem:[#allocation5 + $0x1c0] sm:$0xff]
    %v141 = vld [vmem:[#allocation5 + $0x1c8] sm:$0xff]
    %v142 = vld [vmem:[#allocation5 + $0x1d0] sm:$0xff]
    %v143 = vld [vmem:[#allocation5 + $0x1d8] sm:$0xff]
    %v144 = vld [vmem:[#allocation5 + $0x1e0] sm:$0xff]
    %v145 = vld [vmem:[#allocation5 + $0x1e8] sm:$0xff]
    %v146 = vld [vmem:[#allocation5 + $0x1f0] sm:$0xff]
    %v147 = vld [vmem:[#allocation5 + $0x1f8] sm:$0xff]
    %v148 = vld [vmem:[%s2] sm:$0xf]
    %v150 = vperm.slane %v148, 0
    %v151 = vperm.slane %v148, 1
    %v152 = vperm.slane %v148, 2
    %v153 = vperm.slane %v148, 3
    %158 = vmatpush.msra.mxu0 %v144
    %159 = vmatpush.msra.mxu0 %v140
    %160 = vmatpush.msra.mxu0 %v136
    %161 = vmatpush.msra.mxu0 %v132
    %162 = vmatpush.msra.mxu0 %v128
    %163 = vmatpush.msra.mxu0 %v124
    %164 = vmatpush.msra.mxu0 %v120
    %165 = vmatpush.msra.mxu0 %v116
    %166 = vmatpush.msra.mxu0 %v112
    %167 = vmatpush.msra.mxu0 %v108
    %168 = vmatpush.msra.mxu0 %v104
    %169 = vmatpush.msra.mxu0 %v100
    %170 = vmatpush.msra.mxu0 %v96
    %171 = vmatpush.msra.mxu0 %v92
    %172 = vmatpush.msra.mxu0 %v88
    %173 = vmatpush.msra.mxu0 %v84
    %174 = vmatmul.f32.gmra.mxu0 %v68
    %v175 = vpop.f32.mrf.mxu0
    %v176 = vadd.f32 %v150, %v175
    %177 = vmatmul.f32.gmra.mxu0 %v69
    %v178 = vpop.f32.mrf.mxu0
    %v179 = vadd.f32 %v150, %v178
    %180 = vmatmul.f32.gmra.mxu0 %v70
    %v181 = vpop.f32.mrf.mxu0
    %v182 = vadd.f32 %v150, %v181
    %183 = vmatmul.f32.gmra.mxu0 %v71
    %v184 = vpop.f32.mrf.mxu0
    %v185 = vadd.f32 %v150, %v184
    %186 = vmatmul.f32.gmra.mxu0 %v72
    %v187 = vpop.f32.mrf.mxu0
    %v188 = vadd.f32 %v150, %v187
    %189 = vmatmul.f32.gmra.mxu0 %v73
    %v190 = vpop.f32.mrf.mxu0
    %v191 = vadd.f32 %v150, %v190
    %192 = vmatmul.f32.gmra.mxu0 %v74
    %v193 = vpop.f32.mrf.mxu0
    %v194 = vadd.f32 %v150, %v193
    %195 = vmatmul.f32.gmra.mxu0 %v75
    %v196 = vpop.f32.mrf.mxu0
    %v197 = vadd.f32 %v150, %v196
    %198 = vmatmul.f32.gmra.mxu0 %v76
    %v199 = vpop.f32.mrf.mxu0
    %v200 = vadd.f32 %v150, %v199
    %201 = vmatmul.f32.gmra.mxu0 %v77
    %v202 = vpop.f32.mrf.mxu0
    %v203 = vadd.f32 %v150, %v202
    %204 = vmatmul.f32.gmra.mxu0 %v78
    %v205 = vpop.f32.mrf.mxu0
    %v206 = vadd.f32 %v150, %v205
    %207 = vmatmul.f32.gmra.mxu0 %v79
    %v208 = vpop.f32.mrf.mxu0
    %v209 = vadd.f32 %v150, %v208
    %210 = vmatmul.f32.gmra.mxu0 %v80
    %v211 = vpop.f32.mrf.mxu0
    %v212 = vadd.f32 %v150, %v211
    %213 = vmatmul.f32.gmra.mxu0 %v81
    %v214 = vpop.f32.mrf.mxu0
    %v215 = vadd.f32 %v150, %v214
    %216 = vmatmul.f32.gmra.mxu0 %v82
    %v217 = vpop.f32.mrf.mxu0
    %v218 = vadd.f32 %v150, %v217
    %219 = vmatmul.f32.gmra.mxu0 %v83
    %v220 = vpop.f32.mrf.mxu0
    %v221 = vadd.f32 %v150, %v220
    %222 = vdwg.mxu0
    %223 = vmatpush.msra.mxu0 %v145
    %224 = vmatpush.msra.mxu0 %v141
    %225 = vmatpush.msra.mxu0 %v137
    %226 = vmatpush.msra.mxu0 %v133
    %227 = vmatpush.msra.mxu0 %v129
    %228 = vmatpush.msra.mxu0 %v125
    %229 = vmatpush.msra.mxu0 %v121
    %230 = vmatpush.msra.mxu0 %v117
    %231 = vmatpush.msra.mxu0 %v113
    %232 = vmatpush.msra.mxu0 %v109
    %233 = vmatpush.msra.mxu0 %v105
    %234 = vmatpush.msra.mxu0 %v101
    %235 = vmatpush.msra.mxu0 %v97
    %236 = vmatpush.msra.mxu0 %v93
    %237 = vmatpush.msra.mxu0 %v89
    %238 = vmatpush.msra.mxu0 %v85
    %239 = vmatmul.f32.gmra.mxu0 %v68
    %v240 = vpop.f32.mrf.mxu0
    %v241 = vadd.f32 %v151, %v240
    %242 = vmatmul.f32.gmra.mxu0 %v69
    %v243 = vpop.f32.mrf.mxu0
    %v244 = vadd.f32 %v151, %v243
    %245 = vmatmul.f32.gmra.mxu0 %v70
    %v246 = vpop.f32.mrf.mxu0
    %v247 = vadd.f32 %v151, %v246
    %248 = vmatmul.f32.gmra.mxu0 %v71
    %v249 = vpop.f32.mrf.mxu0
    %v250 = vadd.f32 %v151, %v249
    %251 = vmatmul.f32.gmra.mxu0 %v72
    %v252 = vpop.f32.mrf.mxu0
    %v253 = vadd.f32 %v151, %v252
    %254 = vmatmul.f32.gmra.mxu0 %v73
    %v255 = vpop.f32.mrf.mxu0
    %v256 = vadd.f32 %v151, %v255
    %257 = vmatmul.f32.gmra.mxu0 %v74
    %v258 = vpop.f32.mrf.mxu0
    %v259 = vadd.f32 %v151, %v258
    %260 = vmatmul.f32.gmra.mxu0 %v75
    %v261 = vpop.f32.mrf.mxu0
    %v262 = vadd.f32 %v151, %v261
    %263 = vmatmul.f32.gmra.mxu0 %v76
    %v264 = vpop.f32.mrf.mxu0
    %v265 = vadd.f32 %v151, %v264
    %266 = vmatmul.f32.gmra.mxu0 %v77
    %v267 = vpop.f32.mrf.mxu0
    %v268 = vadd.f32 %v151, %v267
    %269 = vmatmul.f32.gmra.mxu0 %v78
    %v270 = vpop.f32.mrf.mxu0
    %v271 = vadd.f32 %v151, %v270
    %272 = vmatmul.f32.gmra.mxu0 %v79
    %v273 = vpop.f32.mrf.mxu0
    %v274 = vadd.f32 %v151, %v273
    %275 = vmatmul.f32.gmra.mxu0 %v80
    %v276 = vpop.f32.mrf.mxu0
    %v277 = vadd.f32 %v151, %v276
    %278 = vmatmul.f32.gmra.mxu0 %v81
    %v279 = vpop.f32.mrf.mxu0
    %v280 = vadd.f32 %v151, %v279
    %281 = vmatmul.f32.gmra.mxu0 %v82
    %v282 = vpop.f32.mrf.mxu0
    %v283 = vadd.f32 %v151, %v282
    %284 = vmatmul.f32.gmra.mxu0 %v83
    %v285 = vpop.f32.mrf.mxu0
    %v286 = vadd.f32 %v151, %v285
    %287 = vdwg.mxu0
    %288 = vmatpush.msra.mxu0 %v146
    %289 = vmatpush.msra.mxu0 %v142
    %290 = vmatpush.msra.mxu0 %v138
    %291 = vmatpush.msra.mxu0 %v134
    %292 = vmatpush.msra.mxu0 %v130
    %293 = vmatpush.msra.mxu0 %v126
    %294 = vmatpush.msra.mxu0 %v122
    %295 = vmatpush.msra.mxu0 %v118
    %296 = vmatpush.msra.mxu0 %v114
    %297 = vmatpush.msra.mxu0 %v110
    %298 = vmatpush.msra.mxu0 %v106
    %299 = vmatpush.msra.mxu0 %v102
    %300 = vmatpush.msra.mxu0 %v98
    %301 = vmatpush.msra.mxu0 %v94
    %302 = vmatpush.msra.mxu0 %v90
    %303 = vmatpush.msra.mxu0 %v86
    %304 = vmatmul.f32.gmra.mxu0 %v68
    %v305 = vpop.f32.mrf.mxu0
    %v306 = vadd.f32 %v152, %v305
    %307 = vmatmul.f32.gmra.mxu0 %v69
    %v308 = vpop.f32.mrf.mxu0
    %v309 = vadd.f32 %v152, %v308
    %310 = vmatmul.f32.gmra.mxu0 %v70
    %v311 = vpop.f32.mrf.mxu0
    %v312 = vadd.f32 %v152, %v311
    %313 = vmatmul.f32.gmra.mxu0 %v71
    %v314 = vpop.f32.mrf.mxu0
    %v315 = vadd.f32 %v152, %v314
    %316 = vmatmul.f32.gmra.mxu0 %v72
    %v317 = vpop.f32.mrf.mxu0
    %v318 = vadd.f32 %v152, %v317
    %319 = vmatmul.f32.gmra.mxu0 %v73
    %v320 = vpop.f32.mrf.mxu0
    %v321 = vadd.f32 %v152, %v320
    %322 = vmatmul.f32.gmra.mxu0 %v74
    %v323 = vpop.f32.mrf.mxu0
    %v324 = vadd.f32 %v152, %v323
    %325 = vmatmul.f32.gmra.mxu0 %v75
    %v326 = vpop.f32.mrf.mxu0
    %v327 = vadd.f32 %v152, %v326
    %328 = vmatmul.f32.gmra.mxu0 %v76
    %v329 = vpop.f32.mrf.mxu0
    %v330 = vadd.f32 %v152, %v329
    %331 = vmatmul.f32.gmra.mxu0 %v77
    %v332 = vpop.f32.mrf.mxu0
    %v333 = vadd.f32 %v152, %v332
    %334 = vmatmul.f32.gmra.mxu0 %v78
    %v335 = vpop.f32.mrf.mxu0
    %v336 = vadd.f32 %v152, %v335
    %337 = vmatmul.f32.gmra.mxu0 %v79
    %v338 = vpop.f32.mrf.mxu0
    %v339 = vadd.f32 %v152, %v338
    %340 = vmatmul.f32.gmra.mxu0 %v80
    %v341 = vpop.f32.mrf.mxu0
    %v342 = vadd.f32 %v152, %v341
    %343 = vmatmul.f32.gmra.mxu0 %v81
    %v344 = vpop.f32.mrf.mxu0
    %v345 = vadd.f32 %v152, %v344
    %346 = vmatmul.f32.gmra.mxu0 %v82
    %v347 = vpop.f32.mrf.mxu0
    %v348 = vadd.f32 %v152, %v347
    %349 = vmatmul.f32.gmra.mxu0 %v83
    %v350 = vpop.f32.mrf.mxu0
    %v351 = vadd.f32 %v152, %v350
    %352 = vdwg.mxu0
    %353 = vmatpush.msra.mxu0 %v147
    %354 = vmatpush.msra.mxu0 %v143
    %355 = vmatpush.msra.mxu0 %v139
    %356 = vmatpush.msra.mxu0 %v135
    %357 = vmatpush.msra.mxu0 %v131
    %358 = vmatpush.msra.mxu0 %v127
    %359 = vmatpush.msra.mxu0 %v123
    %360 = vmatpush.msra.mxu0 %v119
    %361 = vmatpush.msra.mxu0 %v115
    %362 = vmatpush.msra.mxu0 %v111
    %363 = vmatpush.msra.mxu0 %v107
    %364 = vmatpush.msra.mxu0 %v103
    %365 = vmatpush.msra.mxu0 %v99
    %366 = vmatpush.msra.mxu0 %v95
    %367 = vmatpush.msra.mxu0 %v91
    %368 = vmatpush.msra.mxu0 %v87
    %369 = vmatmul.f32.gmra.mxu0 %v68
    %v370 = vpop.f32.mrf.mxu0
    %v371 = vadd.f32 %v153, %v370
    %372 = vmatmul.f32.gmra.mxu0 %v69
    %v373 = vpop.f32.mrf.mxu0
    %v374 = vadd.f32 %v153, %v373
    %375 = vmatmul.f32.gmra.mxu0 %v70
    %v376 = vpop.f32.mrf.mxu0
    %v377 = vadd.f32 %v153, %v376
    %378 = vmatmul.f32.gmra.mxu0 %v71
    %v379 = vpop.f32.mrf.mxu0
    %v380 = vadd.f32 %v153, %v379
    %381 = vmatmul.f32.gmra.mxu0 %v72
    %v382 = vpop.f32.mrf.mxu0
    %v383 = vadd.f32 %v153, %v382
    %384 = vmatmul.f32.gmra.mxu0 %v73
    %v385 = vpop.f32.mrf.mxu0
    %v386 = vadd.f32 %v153, %v385
    %387 = vmatmul.f32.gmra.mxu0 %v74
    %v388 = vpop.f32.mrf.mxu0
    %v389 = vadd.f32 %v153, %v388
    %390 = vmatmul.f32.gmra.mxu0 %v75
    %v391 = vpop.f32.mrf.mxu0
    %v392 = vadd.f32 %v153, %v391
    %393 = vmatmul.f32.gmra.mxu0 %v76
    %v394 = vpop.f32.mrf.mxu0
    %v395 = vadd.f32 %v153, %v394
    %396 = vmatmul.f32.gmra.mxu0 %v77
    %v397 = vpop.f32.mrf.mxu0
    %v398 = vadd.f32 %v153, %v397
    %399 = vmatmul.f32.gmra.mxu0 %v78
    %v400 = vpop.f32.mrf.mxu0
    %v401 = vadd.f32 %v153, %v400
    %402 = vmatmul.f32.gmra.mxu0 %v79
    %v403 = vpop.f32.mrf.mxu0
    %v404 = vadd.f32 %v153, %v403
    %405 = vmatmul.f32.gmra.mxu0 %v80
    %v406 = vpop.f32.mrf.mxu0
    %v407 = vadd.f32 %v153, %v406
    %408 = vmatmul.f32.gmra.mxu0 %v81
    %v409 = vpop.f32.mrf.mxu0
    %v410 = vadd.f32 %v153, %v409
    %411 = vmatmul.f32.gmra.mxu0 %v82
    %v412 = vpop.f32.mrf.mxu0
    %v413 = vadd.f32 %v153, %v412
    %414 = vmatmul.f32.gmra.mxu0 %v83
    %v415 = vpop.f32.mrf.mxu0
    %v416 = vadd.f32 %v153, %v415
    %417 = vdwg.mxu0
    %v418 = vmul.f32 %v176, 0.5
    %v419 = vmul.f32 %v241, 0.5
    %v420 = vmul.f32 %v306, 0.5
    %v421 = vmul.f32 %v371, 0.5
    %v422 = vmul.f32 %v179, 0.5
    %v423 = vmul.f32 %v244, 0.5
    %v424 = vmul.f32 %v309, 0.5
    %v425 = vmul.f32 %v374, 0.5
    %v426 = vmul.f32 %v182, 0.5
    %v427 = vmul.f32 %v247, 0.5
    %v428 = vmul.f32 %v312, 0.5
    %v429 = vmul.f32 %v377, 0.5
    %v430 = vmul.f32 %v185, 0.5
    %v431 = vmul.f32 %v250, 0.5
    %v432 = vmul.f32 %v315, 0.5
    %v433 = vmul.f32 %v380, 0.5
    %v434 = vmul.f32 %v188, 0.5
    %v435 = vmul.f32 %v253, 0.5
    %v436 = vmul.f32 %v318, 0.5
    %v437 = vmul.f32 %v383, 0.5
    %v438 = vmul.f32 %v191, 0.5
    %v439 = vmul.f32 %v256, 0.5
    %v440 = vmul.f32 %v321, 0.5
    %v441 = vmul.f32 %v386, 0.5
    %v442 = vmul.f32 %v194, 0.5
    %v443 = vmul.f32 %v259, 0.5
    %v444 = vmul.f32 %v324, 0.5
    %v445 = vmul.f32 %v389, 0.5
    %v446 = vmul.f32 %v197, 0.5
    %v447 = vmul.f32 %v262, 0.5
    %v448 = vmul.f32 %v327, 0.5
    %v449 = vmul.f32 %v392, 0.5
    %v450 = vmul.f32 %v200, 0.5
    %v451 = vmul.f32 %v265, 0.5
    %v452 = vmul.f32 %v330, 0.5
    %v453 = vmul.f32 %v395, 0.5
    %v454 = vmul.f32 %v203, 0.5
    %v455 = vmul.f32 %v268, 0.5
    %v456 = vmul.f32 %v333, 0.5
    %v457 = vmul.f32 %v398, 0.5
    %v458 = vmul.f32 %v206, 0.5
    %v459 = vmul.f32 %v271, 0.5
    %v460 = vmul.f32 %v336, 0.5
    %v461 = vmul.f32 %v401, 0.5
    %v462 = vmul.f32 %v209, 0.5
    %v463 = vmul.f32 %v274, 0.5
    %v464 = vmul.f32 %v339, 0.5
    %v465 = vmul.f32 %v404, 0.5
    %v466 = vmul.f32 %v212, 0.5
    %v467 = vmul.f32 %v277, 0.5
    %v468 = vmul.f32 %v342, 0.5
    %v469 = vmul.f32 %v407, 0.5
    %v470 = vmul.f32 %v215, 0.5
    %v471 = vmul.f32 %v280, 0.5
    %v472 = vmul.f32 %v345, 0.5
    %v473 = vmul.f32 %v410, 0.5
    %v474 = vmul.f32 %v218, 0.5
    %v475 = vmul.f32 %v283, 0.5
    %v476 = vmul.f32 %v348, 0.5
    %v477 = vmul.f32 %v413, 0.5
    %v478 = vmul.f32 %v221, 0.5
    %v479 = vmul.f32 %v286, 0.5
    %v480 = vmul.f32 %v351, 0.5
    %v481 = vmul.f32 %v416, 0.5
    %v482 = vmul.f32 %v176, 0.70710677
    %v483 = vmul.f32 %v241, 0.70710677
    %v484 = vmul.f32 %v306, 0.70710677
    %v485 = vmul.f32 %v371, 0.70710677
    %v486 = vmul.f32 %v179, 0.70710677
    %v487 = vmul.f32 %v244, 0.70710677
    %v488 = vmul.f32 %v309, 0.70710677
    %v489 = vmul.f32 %v374, 0.70710677
    %v490 = vmul.f32 %v182, 0.70710677
    %v491 = vmul.f32 %v247, 0.70710677
    %v492 = vmul.f32 %v312, 0.70710677
    %v493 = vmul.f32 %v377, 0.70710677
    %v494 = vmul.f32 %v185, 0.70710677
    %v495 = vmul.f32 %v250, 0.70710677
    %v496 = vmul.f32 %v315, 0.70710677
    %v497 = vmul.f32 %v380, 0.70710677
    %v498 = vmul.f32 %v188, 0.70710677
    %v499 = vmul.f32 %v253, 0.70710677
    %v500 = vmul.f32 %v318, 0.70710677
    %v501 = vmul.f32 %v383, 0.70710677
    %v502 = vmul.f32 %v191, 0.70710677
    %v503 = vmul.f32 %v256, 0.70710677
    %v504 = vmul.f32 %v321, 0.70710677
    %v505 = vmul.f32 %v386, 0.70710677
    %v506 = vmul.f32 %v194, 0.70710677
    %v507 = vmul.f32 %v259, 0.70710677
    %v508 = vmul.f32 %v324, 0.70710677
    %v509 = vmul.f32 %v389, 0.70710677
    %v510 = vmul.f32 %v197, 0.70710677
    %v511 = vmul.f32 %v262, 0.70710677
    %v512 = vmul.f32 %v327, 0.70710677
    %v513 = vmul.f32 %v392, 0.70710677
    %v514 = vmul.f32 %v200, 0.70710677
    %v515 = vmul.f32 %v265, 0.70710677
    %v516 = vmul.f32 %v330, 0.70710677
    %v517 = vmul.f32 %v395, 0.70710677
    %v518 = vmul.f32 %v203, 0.70710677
    %v519 = vmul.f32 %v268, 0.70710677
    %v520 = vmul.f32 %v333, 0.70710677
    %v521 = vmul.f32 %v398, 0.70710677
    %v522 = vmul.f32 %v206, 0.70710677
    %v523 = vmul.f32 %v271, 0.70710677
    %v524 = vmul.f32 %v336, 0.70710677
    %v525 = vmul.f32 %v401, 0.70710677
    %v526 = vmul.f32 %v209, 0.70710677
    %v527 = vmul.f32 %v274, 0.70710677
    %v528 = vmul.f32 %v339, 0.70710677
    %v529 = vmul.f32 %v404, 0.70710677
    %v530 = vmul.f32 %v212, 0.70710677
    %v531 = vmul.f32 %v277, 0.70710677
    %v532 = vmul.f32 %v342, 0.70710677
    %v533 = vmul.f32 %v407, 0.70710677
    %v534 = vmul.f32 %v215, 0.70710677
    %v535 = vmul.f32 %v280, 0.70710677
    %v536 = vmul.f32 %v345, 0.70710677
    %v537 = vmul.f32 %v410, 0.70710677
    %v538 = vmul.f32 %v218, 0.70710677
    %v539 = vmul.f32 %v283, 0.70710677
    %v540 = vmul.f32 %v348, 0.70710677
    %v541 = vmul.f32 %v413, 0.70710677
    %v542 = vmul.f32 %v221, 0.70710677
    %v543 = vmul.f32 %v286, 0.70710677
    %v544 = vmul.f32 %v351, 0.70710677
    %v545 = vmul.f32 %v416, 0.70710677
    %v546 = vmul.f32 %v482, %v482
    %v547 = vmin.f32 16.0, %v546
    %v548 = vmul.f32 %v547, 2.1237322e-06
    %v549 = vadd.f32 %v548, 0.00028619796
    %v550 = vmul.f32 %v547, %v549
    %v551 = vadd.f32 %v550, 0.0036580483
    %v552 = vmul.f32 %v547, %v551
    %v553 = vadd.f32 %v552, 0.05243302
    %v554 = vmul.f32 %v547, %v553
    %v555 = vadd.f32 %v554, 0.18741608
    %v556 = vmul.f32 %v547, %v555
    %v557 = vadd.f32 %v556, 1.1283791
    %v558 = vmul.f32 %v482, %v557
    %v559 = vmul.f32 %v547, 3.8918573e-05
    %v560 = vadd.f32 %v559, 0.001143296
    %v561 = vmul.f32 %v547, %v560
    %v562 = vadd.f32 %v561, 0.014752088
    %v563 = vmul.f32 %v547, %v562
    %v564 = vadd.f32 %v563, 0.112945676
    %v565 = vmul.f32 %v547, %v564
    %v566 = vadd.f32 %v565, 0.4994258
    %v567 = vmul.f32 %v547, %v566
    %v568 = vadd.f32 %v567, 1.0
    %v569 = vrcp.pop %v568
    %v570 = vmul.f32 %v568, %v569
    %v571 = vsub.f32 1.0, %v570
    %v572 = vmul.f32 %v569, %v571
    %v573 = vadd.f32 %v569, %v572
    %vm574 = vweird.f32 %v568
    %vm575 = vweird.f32 %v569
    %vm576 = vmor %vm574, %vm575
    %v577 = vsel %vm576, %v569, %v573
    %v578 = vand.u32 2147483647, %v568
    %vm579 = vcmp.eq.f32.partialorder %v578, 8.507059e+37
    %v580 = vand.u32 %v568, 2147483648
    %v581 = vor.u32 1.1754944e-38, %v580
    %v582 = vsel %vm579, %v581, %v577
    %v583 = vmul.f32 %v558, %v582
    %v584 = vmin.f32 %v583, 1.0
    %v585 = vmax.f32 %v584, -1.0
    %v586 = vmul.f32 %v483, %v483
    %v587 = vmin.f32 16.0, %v586
    %v588 = vmul.f32 %v587, 2.1237322e-06
    %v589 = vadd.f32 %v588, 0.00028619796
    %v590 = vmul.f32 %v587, %v589
    %v591 = vadd.f32 %v590, 0.0036580483
    %v592 = vmul.f32 %v587, %v591
    %v593 = vadd.f32 %v592, 0.05243302
    %v594 = vmul.f32 %v587, %v593
    %v595 = vadd.f32 %v594, 0.18741608
    %v596 = vmul.f32 %v587, %v595
    %v597 = vadd.f32 %v596, 1.1283791
    %v598 = vmul.f32 %v483, %v597
    %v599 = vmul.f32 %v587, 3.8918573e-05
    %v600 = vadd.f32 %v599, 0.001143296
    %v601 = vmul.f32 %v587, %v600
    %v602 = vadd.f32 %v601, 0.014752088
    %v603 = vmul.f32 %v587, %v602
    %v604 = vadd.f32 %v603, 0.112945676
    %v605 = vmul.f32 %v587, %v604
    %v606 = vadd.f32 %v605, 0.4994258
    %v607 = vmul.f32 %v587, %v606
    %v608 = vadd.f32 %v607, 1.0
    %v609 = vrcp.pop %v608
    %v610 = vmul.f32 %v608, %v609
    %v611 = vsub.f32 1.0, %v610
    %v612 = vmul.f32 %v609, %v611
    %v613 = vadd.f32 %v609, %v612
    %vm614 = vweird.f32 %v608
    %vm615 = vweird.f32 %v609
    %vm616 = vmor %vm614, %vm615
    %v617 = vsel %vm616, %v609, %v613
    %v618 = vand.u32 2147483647, %v608
    %vm619 = vcmp.eq.f32.partialorder %v618, 8.507059e+37
    %v620 = vand.u32 %v608, 2147483648
    %v621 = vor.u32 1.1754944e-38, %v620
    %v622 = vsel %vm619, %v621, %v617
    %v623 = vmul.f32 %v598, %v622
    %v624 = vmin.f32 %v623, 1.0
    %v625 = vmax.f32 %v624, -1.0
    %v626 = vmul.f32 %v484, %v484
    %v627 = vmin.f32 16.0, %v626
    %v628 = vmul.f32 %v627, 2.1237322e-06
    %v629 = vadd.f32 %v628, 0.00028619796
    %v630 = vmul.f32 %v627, %v629
    %v631 = vadd.f32 %v630, 0.0036580483
    %v632 = vmul.f32 %v627, %v631
    %v633 = vadd.f32 %v632, 0.05243302
    %v634 = vmul.f32 %v627, %v633
    %v635 = vadd.f32 %v634, 0.18741608
    %v636 = vmul.f32 %v627, %v635
    %v637 = vadd.f32 %v636, 1.1283791
    %v638 = vmul.f32 %v484, %v637
    %v639 = vmul.f32 %v627, 3.8918573e-05
    %v640 = vadd.f32 %v639, 0.001143296
    %v641 = vmul.f32 %v627, %v640
    %v642 = vadd.f32 %v641, 0.014752088
    %v643 = vmul.f32 %v627, %v642
    %v644 = vadd.f32 %v643, 0.112945676
    %v645 = vmul.f32 %v627, %v644
    %v646 = vadd.f32 %v645, 0.4994258
    %v647 = vmul.f32 %v627, %v646
    %v648 = vadd.f32 %v647, 1.0
    %v649 = vrcp.pop %v648
    %v650 = vmul.f32 %v648, %v649
    %v651 = vsub.f32 1.0, %v650
    %v652 = vmul.f32 %v649, %v651
    %v653 = vadd.f32 %v649, %v652
    %vm654 = vweird.f32 %v648
    %vm655 = vweird.f32 %v649
    %vm656 = vmor %vm654, %vm655
    %v657 = vsel %vm656, %v649, %v653
    %v658 = vand.u32 2147483647, %v648
    %vm659 = vcmp.eq.f32.partialorder %v658, 8.507059e+37
    %v660 = vand.u32 %v648, 2147483648
    %v661 = vor.u32 1.1754944e-38, %v660
    %v662 = vsel %vm659, %v661, %v657
    %v663 = vmul.f32 %v638, %v662
    %v664 = vmin.f32 %v663, 1.0
    %v665 = vmax.f32 %v664, -1.0
    %v666 = vmul.f32 %v485, %v485
    %v667 = vmin.f32 16.0, %v666
    %v668 = vmul.f32 %v667, 2.1237322e-06
    %v669 = vadd.f32 %v668, 0.00028619796
    %v670 = vmul.f32 %v667, %v669
    %v671 = vadd.f32 %v670, 0.0036580483
    %v672 = vmul.f32 %v667, %v671
    %v673 = vadd.f32 %v672, 0.05243302
    %v674 = vmul.f32 %v667, %v673
    %v675 = vadd.f32 %v674, 0.18741608
    %v676 = vmul.f32 %v667, %v675
    %v677 = vadd.f32 %v676, 1.1283791
    %v678 = vmul.f32 %v485, %v677
    %v679 = vmul.f32 %v667, 3.8918573e-05
    %v680 = vadd.f32 %v679, 0.001143296
    %v681 = vmul.f32 %v667, %v680
    %v682 = vadd.f32 %v681, 0.014752088
    %v683 = vmul.f32 %v667, %v682
    %v684 = vadd.f32 %v683, 0.112945676
    %v685 = vmul.f32 %v667, %v684
    %v686 = vadd.f32 %v685, 0.4994258
    %v687 = vmul.f32 %v667, %v686
    %v688 = vadd.f32 %v687, 1.0
    %v689 = vrcp.pop %v688
    %v690 = vmul.f32 %v688, %v689
    %v691 = vsub.f32 1.0, %v690
    %v692 = vmul.f32 %v689, %v691
    %v693 = vadd.f32 %v689, %v692
    %vm694 = vweird.f32 %v688
    %vm695 = vweird.f32 %v689
    %vm696 = vmor %vm694, %vm695
    %v697 = vsel %vm696, %v689, %v693
    %v698 = vand.u32 2147483647, %v688
    %vm699 = vcmp.eq.f32.partialorder %v698, 8.507059e+37
    %v700 = vand.u32 %v688, 2147483648
    %v701 = vor.u32 1.1754944e-38, %v700
    %v702 = vsel %vm699, %v701, %v697
    %v703 = vmul.f32 %v678, %v702
    %v704 = vmin.f32 %v703, 1.0
    %v705 = vmax.f32 %v704, -1.0
    %v706 = vmul.f32 %v486, %v486
    %v707 = vmin.f32 16.0, %v706
    %v708 = vmul.f32 %v707, 2.1237322e-06
    %v709 = vadd.f32 %v708, 0.00028619796
    %v710 = vmul.f32 %v707, %v709
    %v711 = vadd.f32 %v710, 0.0036580483
    %v712 = vmul.f32 %v707, %v711
    %v713 = vadd.f32 %v712, 0.05243302
    %v714 = vmul.f32 %v707, %v713
    %v715 = vadd.f32 %v714, 0.18741608
    %v716 = vmul.f32 %v707, %v715
    %v717 = vadd.f32 %v716, 1.1283791
    %v718 = vmul.f32 %v486, %v717
    %v719 = vmul.f32 %v707, 3.8918573e-05
    %v720 = vadd.f32 %v719, 0.001143296
    %v721 = vmul.f32 %v707, %v720
    %v722 = vadd.f32 %v721, 0.014752088
    %v723 = vmul.f32 %v707, %v722
    %v724 = vadd.f32 %v723, 0.112945676
    %v725 = vmul.f32 %v707, %v724
    %v726 = vadd.f32 %v725, 0.4994258
    %v727 = vmul.f32 %v707, %v726
    %v728 = vadd.f32 %v727, 1.0
    %v729 = vrcp.pop %v728
    %v730 = vmul.f32 %v728, %v729
    %v731 = vsub.f32 1.0, %v730
    %v732 = vmul.f32 %v729, %v731
    %v733 = vadd.f32 %v729, %v732
    %vm734 = vweird.f32 %v728
    %vm735 = vweird.f32 %v729
    %vm736 = vmor %vm734, %vm735
    %v737 = vsel %vm736, %v729, %v733
    %v738 = vand.u32 2147483647, %v728
    %vm739 = vcmp.eq.f32.partialorder %v738, 8.507059e+37
    %v740 = vand.u32 %v728, 2147483648
    %v741 = vor.u32 1.1754944e-38, %v740
    %v742 = vsel %vm739, %v741, %v737
    %v743 = vmul.f32 %v718, %v742
    %v744 = vmin.f32 %v743, 1.0
    %v745 = vmax.f32 %v744, -1.0
    %v746 = vmul.f32 %v487, %v487
    %v747 = vmin.f32 16.0, %v746
    %v748 = vmul.f32 %v747, 2.1237322e-06
    %v749 = vadd.f32 %v748, 0.00028619796
    %v750 = vmul.f32 %v747, %v749
    %v751 = vadd.f32 %v750, 0.0036580483
    %v752 = vmul.f32 %v747, %v751
    %v753 = vadd.f32 %v752, 0.05243302
    %v754 = vmul.f32 %v747, %v753
    %v755 = vadd.f32 %v754, 0.18741608
    %v756 = vmul.f32 %v747, %v755
    %v757 = vadd.f32 %v756, 1.1283791
    %v758 = vmul.f32 %v487, %v757
    %v759 = vmul.f32 %v747, 3.8918573e-05
    %v760 = vadd.f32 %v759, 0.001143296
    %v761 = vmul.f32 %v747, %v760
    %v762 = vadd.f32 %v761, 0.014752088
    %v763 = vmul.f32 %v747, %v762
    %v764 = vadd.f32 %v763, 0.112945676
    %v765 = vmul.f32 %v747, %v764
    %v766 = vadd.f32 %v765, 0.4994258
    %v767 = vmul.f32 %v747, %v766
    %v768 = vadd.f32 %v767, 1.0
    %v769 = vrcp.pop %v768
    %v770 = vmul.f32 %v768, %v769
    %v771 = vsub.f32 1.0, %v770
    %v772 = vmul.f32 %v769, %v771
    %v773 = vadd.f32 %v769, %v772
    %vm774 = vweird.f32 %v768
    %vm775 = vweird.f32 %v769
    %vm776 = vmor %vm774, %vm775
    %v777 = vsel %vm776, %v769, %v773
    %v778 = vand.u32 2147483647, %v768
    %vm779 = vcmp.eq.f32.partialorder %v778, 8.507059e+37
    %v780 = vand.u32 %v768, 2147483648
    %v781 = vor.u32 1.1754944e-38, %v780
    %v782 = vsel %vm779, %v781, %v777
    %v783 = vmul.f32 %v758, %v782
    %v784 = vmin.f32 %v783, 1.0
    %v785 = vmax.f32 %v784, -1.0
    %v786 = vmul.f32 %v488, %v488
    %v787 = vmin.f32 16.0, %v786
    %v788 = vmul.f32 %v787, 2.1237322e-06
    %v789 = vadd.f32 %v788, 0.00028619796
    %v790 = vmul.f32 %v787, %v789
    %v791 = vadd.f32 %v790, 0.0036580483
    %v792 = vmul.f32 %v787, %v791
    %v793 = vadd.f32 %v792, 0.05243302
    %v794 = vmul.f32 %v787, %v793
    %v795 = vadd.f32 %v794, 0.18741608
    %v796 = vmul.f32 %v787, %v795
    %v797 = vadd.f32 %v796, 1.1283791
    %v798 = vmul.f32 %v488, %v797
    %v799 = vmul.f32 %v787, 3.8918573e-05
    %v800 = vadd.f32 %v799, 0.001143296
    %v801 = vmul.f32 %v787, %v800
    %v802 = vadd.f32 %v801, 0.014752088
    %v803 = vmul.f32 %v787, %v802
    %v804 = vadd.f32 %v803, 0.112945676
    %v805 = vmul.f32 %v787, %v804
    %v806 = vadd.f32 %v805, 0.4994258
    %v807 = vmul.f32 %v787, %v806
    %v808 = vadd.f32 %v807, 1.0
    %v809 = vrcp.pop %v808
    %v810 = vmul.f32 %v808, %v809
    %v811 = vsub.f32 1.0, %v810
    %v812 = vmul.f32 %v809, %v811
    %v813 = vadd.f32 %v809, %v812
    %vm814 = vweird.f32 %v808
    %vm815 = vweird.f32 %v809
    %vm816 = vmor %vm814, %vm815
    %v817 = vsel %vm816, %v809, %v813
    %v818 = vand.u32 2147483647, %v808
    %vm819 = vcmp.eq.f32.partialorder %v818, 8.507059e+37
    %v820 = vand.u32 %v808, 2147483648
    %v821 = vor.u32 1.1754944e-38, %v820
    %v822 = vsel %vm819, %v821, %v817
    %v823 = vmul.f32 %v798, %v822
    %v824 = vmin.f32 %v823, 1.0
    %v825 = vmax.f32 %v824, -1.0
    %v826 = vmul.f32 %v489, %v489
    %v827 = vmin.f32 16.0, %v826
    %v828 = vmul.f32 %v827, 2.1237322e-06
    %v829 = vadd.f32 %v828, 0.00028619796
    %v830 = vmul.f32 %v827, %v829
    %v831 = vadd.f32 %v830, 0.0036580483
    %v832 = vmul.f32 %v827, %v831
    %v833 = vadd.f32 %v832, 0.05243302
    %v834 = vmul.f32 %v827, %v833
    %v835 = vadd.f32 %v834, 0.18741608
    %v836 = vmul.f32 %v827, %v835
    %v837 = vadd.f32 %v836, 1.1283791
    %v838 = vmul.f32 %v489, %v837
    %v839 = vmul.f32 %v827, 3.8918573e-05
    %v840 = vadd.f32 %v839, 0.001143296
    %v841 = vmul.f32 %v827, %v840
    %v842 = vadd.f32 %v841, 0.014752088
    %v843 = vmul.f32 %v827, %v842
    %v844 = vadd.f32 %v843, 0.112945676
    %v845 = vmul.f32 %v827, %v844
    %v846 = vadd.f32 %v845, 0.4994258
    %v847 = vmul.f32 %v827, %v846
    %v848 = vadd.f32 %v847, 1.0
    %v849 = vrcp.pop %v848
    %v850 = vmul.f32 %v848, %v849
    %v851 = vsub.f32 1.0, %v850
    %v852 = vmul.f32 %v849, %v851
    %v853 = vadd.f32 %v849, %v852
    %vm854 = vweird.f32 %v848
    %vm855 = vweird.f32 %v849
    %vm856 = vmor %vm854, %vm855
    %v857 = vsel %vm856, %v849, %v853
    %v858 = vand.u32 2147483647, %v848
    %vm859 = vcmp.eq.f32.partialorder %v858, 8.507059e+37
    %v860 = vand.u32 %v848, 2147483648
    %v861 = vor.u32 1.1754944e-38, %v860
    %v862 = vsel %vm859, %v861, %v857
    %v863 = vmul.f32 %v838, %v862
    %v864 = vmin.f32 %v863, 1.0
    %v865 = vmax.f32 %v864, -1.0
    %v866 = vmul.f32 %v490, %v490
    %v867 = vmin.f32 16.0, %v866
    %v868 = vmul.f32 %v867, 2.1237322e-06
    %v869 = vadd.f32 %v868, 0.00028619796
    %v870 = vmul.f32 %v867, %v869
    %v871 = vadd.f32 %v870, 0.0036580483
    %v872 = vmul.f32 %v867, %v871
    %v873 = vadd.f32 %v872, 0.05243302
    %v874 = vmul.f32 %v867, %v873
    %v875 = vadd.f32 %v874, 0.18741608
    %v876 = vmul.f32 %v867, %v875
    %v877 = vadd.f32 %v876, 1.1283791
    %v878 = vmul.f32 %v490, %v877
    %v879 = vmul.f32 %v867, 3.8918573e-05
    %v880 = vadd.f32 %v879, 0.001143296
    %v881 = vmul.f32 %v867, %v880
    %v882 = vadd.f32 %v881, 0.014752088
    %v883 = vmul.f32 %v867, %v882
    %v884 = vadd.f32 %v883, 0.112945676
    %v885 = vmul.f32 %v867, %v884
    %v886 = vadd.f32 %v885, 0.4994258
    %v887 = vmul.f32 %v867, %v886
    %v888 = vadd.f32 %v887, 1.0
    %v889 = vrcp.pop %v888
    %v890 = vmul.f32 %v888, %v889
    %v891 = vsub.f32 1.0, %v890
    %v892 = vmul.f32 %v889, %v891
    %v893 = vadd.f32 %v889, %v892
    %vm894 = vweird.f32 %v888
    %vm895 = vweird.f32 %v889
    %vm896 = vmor %vm894, %vm895
    %v897 = vsel %vm896, %v889, %v893
    %v898 = vand.u32 2147483647, %v888
    %vm899 = vcmp.eq.f32.partialorder %v898, 8.507059e+37
    %v900 = vand.u32 %v888, 2147483648
    %v901 = vor.u32 1.1754944e-38, %v900
    %v902 = vsel %vm899, %v901, %v897
    %v903 = vmul.f32 %v878, %v902
    %v904 = vmin.f32 %v903, 1.0
    %v905 = vmax.f32 %v904, -1.0
    %v906 = vmul.f32 %v491, %v491
    %v907 = vmin.f32 16.0, %v906
    %v908 = vmul.f32 %v907, 2.1237322e-06
    %v909 = vadd.f32 %v908, 0.00028619796
    %v910 = vmul.f32 %v907, %v909
    %v911 = vadd.f32 %v910, 0.0036580483
    %v912 = vmul.f32 %v907, %v911
    %v913 = vadd.f32 %v912, 0.05243302
    %v914 = vmul.f32 %v907, %v913
    %v915 = vadd.f32 %v914, 0.18741608
    %v916 = vmul.f32 %v907, %v915
    %v917 = vadd.f32 %v916, 1.1283791
    %v918 = vmul.f32 %v491, %v917
    %v919 = vmul.f32 %v907, 3.8918573e-05
    %v920 = vadd.f32 %v919, 0.001143296
    %v921 = vmul.f32 %v907, %v920
    %v922 = vadd.f32 %v921, 0.014752088
    %v923 = vmul.f32 %v907, %v922
    %v924 = vadd.f32 %v923, 0.112945676
    %v925 = vmul.f32 %v907, %v924
    %v926 = vadd.f32 %v925, 0.4994258
    %v927 = vmul.f32 %v907, %v926
    %v928 = vadd.f32 %v927, 1.0
    %v929 = vrcp.pop %v928
    %v930 = vmul.f32 %v928, %v929
    %v931 = vsub.f32 1.0, %v930
    %v932 = vmul.f32 %v929, %v931
    %v933 = vadd.f32 %v929, %v932
    %vm934 = vweird.f32 %v928
    %vm935 = vweird.f32 %v929
    %vm936 = vmor %vm934, %vm935
    %v937 = vsel %vm936, %v929, %v933
    %v938 = vand.u32 2147483647, %v928
    %vm939 = vcmp.eq.f32.partialorder %v938, 8.507059e+37
    %v940 = vand.u32 %v928, 2147483648
    %v941 = vor.u32 1.1754944e-38, %v940
    %v942 = vsel %vm939, %v941, %v937
    %v943 = vmul.f32 %v918, %v942
    %v944 = vmin.f32 %v943, 1.0
    %v945 = vmax.f32 %v944, -1.0
    %v946 = vmul.f32 %v492, %v492
    %v947 = vmin.f32 16.0, %v946
    %v948 = vmul.f32 %v947, 2.1237322e-06
    %v949 = vadd.f32 %v948, 0.00028619796
    %v950 = vmul.f32 %v947, %v949
    %v951 = vadd.f32 %v950, 0.0036580483
    %v952 = vmul.f32 %v947, %v951
    %v953 = vadd.f32 %v952, 0.05243302
    %v954 = vmul.f32 %v947, %v953
    %v955 = vadd.f32 %v954, 0.18741608
    %v956 = vmul.f32 %v947, %v955
    %v957 = vadd.f32 %v956, 1.1283791
    %v958 = vmul.f32 %v492, %v957
    %v959 = vmul.f32 %v947, 3.8918573e-05
    %v960 = vadd.f32 %v959, 0.001143296
    %v961 = vmul.f32 %v947, %v960
    %v962 = vadd.f32 %v961, 0.014752088
    %v963 = vmul.f32 %v947, %v962
    %v964 = vadd.f32 %v963, 0.112945676
    %v965 = vmul.f32 %v947, %v964
    %v966 = vadd.f32 %v965, 0.4994258
    %v967 = vmul.f32 %v947, %v966
    %v968 = vadd.f32 %v967, 1.0
    %v969 = vrcp.pop %v968
    %v970 = vmul.f32 %v968, %v969
    %v971 = vsub.f32 1.0, %v970
    %v972 = vmul.f32 %v969, %v971
    %v973 = vadd.f32 %v969, %v972
    %vm974 = vweird.f32 %v968
    %vm975 = vweird.f32 %v969
    %vm976 = vmor %vm974, %vm975
    %v977 = vsel %vm976, %v969, %v973
    %v978 = vand.u32 2147483647, %v968
    %vm979 = vcmp.eq.f32.partialorder %v978, 8.507059e+37
    %v980 = vand.u32 %v968, 2147483648
    %v981 = vor.u32 1.1754944e-38, %v980
    %v982 = vsel %vm979, %v981, %v977
    %v983 = vmul.f32 %v958, %v982
    %v984 = vmin.f32 %v983, 1.0
    %v985 = vmax.f32 %v984, -1.0
    %v986 = vmul.f32 %v493, %v493
    %v987 = vmin.f32 16.0, %v986
    %v988 = vmul.f32 %v987, 2.1237322e-06
    %v989 = vadd.f32 %v988, 0.00028619796
    %v990 = vmul.f32 %v987, %v989
    %v991 = vadd.f32 %v990, 0.0036580483
    %v992 = vmul.f32 %v987, %v991
    %v993 = vadd.f32 %v992, 0.05243302
    %v994 = vmul.f32 %v987, %v993
    %v995 = vadd.f32 %v994, 0.18741608
    %v996 = vmul.f32 %v987, %v995
    %v997 = vadd.f32 %v996, 1.1283791
    %v998 = vmul.f32 %v493, %v997
    %v999 = vmul.f32 %v987, 3.8918573e-05
    %v1000 = vadd.f32 %v999, 0.001143296
    %v1001 = vmul.f32 %v987, %v1000
    %v1002 = vadd.f32 %v1001, 0.014752088
    %v1003 = vmul.f32 %v987, %v1002
    %v1004 = vadd.f32 %v1003, 0.112945676
    %v1005 = vmul.f32 %v987, %v1004
    %v1006 = vadd.f32 %v1005, 0.4994258
    %v1007 = vmul.f32 %v987, %v1006
    %v1008 = vadd.f32 %v1007, 1.0
    %v1009 = vrcp.pop %v1008
    %v1010 = vmul.f32 %v1008, %v1009
    %v1011 = vsub.f32 1.0, %v1010
    %v1012 = vmul.f32 %v1009, %v1011
    %v1013 = vadd.f32 %v1009, %v1012
    %vm1014 = vweird.f32 %v1008
    %vm1015 = vweird.f32 %v1009
    %vm1016 = vmor %vm1014, %vm1015
    %v1017 = vsel %vm1016, %v1009, %v1013
    %v1018 = vand.u32 2147483647, %v1008
    %vm1019 = vcmp.eq.f32.partialorder %v1018, 8.507059e+37
    %v1020 = vand.u32 %v1008, 2147483648
    %v1021 = vor.u32 1.1754944e-38, %v1020
    %v1022 = vsel %vm1019, %v1021, %v1017
    %v1023 = vmul.f32 %v998, %v1022
    %v1024 = vmin.f32 %v1023, 1.0
    %v1025 = vmax.f32 %v1024, -1.0
    %v1026 = vmul.f32 %v494, %v494
    %v1027 = vmin.f32 16.0, %v1026
    %v1028 = vmul.f32 %v1027, 2.1237322e-06
    %v1029 = vadd.f32 %v1028, 0.00028619796
    %v1030 = vmul.f32 %v1027, %v1029
    %v1031 = vadd.f32 %v1030, 0.0036580483
    %v1032 = vmul.f32 %v1027, %v1031
    %v1033 = vadd.f32 %v1032, 0.05243302
    %v1034 = vmul.f32 %v1027, %v1033
    %v1035 = vadd.f32 %v1034, 0.18741608
    %v1036 = vmul.f32 %v1027, %v1035
    %v1037 = vadd.f32 %v1036, 1.1283791
    %v1038 = vmul.f32 %v494, %v1037
    %v1039 = vmul.f32 %v1027, 3.8918573e-05
    %v1040 = vadd.f32 %v1039, 0.001143296
    %v1041 = vmul.f32 %v1027, %v1040
    %v1042 = vadd.f32 %v1041, 0.014752088
    %v1043 = vmul.f32 %v1027, %v1042
    %v1044 = vadd.f32 %v1043, 0.112945676
    %v1045 = vmul.f32 %v1027, %v1044
    %v1046 = vadd.f32 %v1045, 0.4994258
    %v1047 = vmul.f32 %v1027, %v1046
    %v1048 = vadd.f32 %v1047, 1.0
    %v1049 = vrcp.pop %v1048
    %v1050 = vmul.f32 %v1048, %v1049
    %v1051 = vsub.f32 1.0, %v1050
    %v1052 = vmul.f32 %v1049, %v1051
    %v1053 = vadd.f32 %v1049, %v1052
    %vm1054 = vweird.f32 %v1048
    %vm1055 = vweird.f32 %v1049
    %vm1056 = vmor %vm1054, %vm1055
    %v1057 = vsel %vm1056, %v1049, %v1053
    %v1058 = vand.u32 2147483647, %v1048
    %vm1059 = vcmp.eq.f32.partialorder %v1058, 8.507059e+37
    %v1060 = vand.u32 %v1048, 2147483648
    %v1061 = vor.u32 1.1754944e-38, %v1060
    %v1062 = vsel %vm1059, %v1061, %v1057
    %v1063 = vmul.f32 %v1038, %v1062
    %v1064 = vmin.f32 %v1063, 1.0
    %v1065 = vmax.f32 %v1064, -1.0
    %v1066 = vmul.f32 %v495, %v495
    %v1067 = vmin.f32 16.0, %v1066
    %v1068 = vmul.f32 %v1067, 2.1237322e-06
    %v1069 = vadd.f32 %v1068, 0.00028619796
    %v1070 = vmul.f32 %v1067, %v1069
    %v1071 = vadd.f32 %v1070, 0.0036580483
    %v1072 = vmul.f32 %v1067, %v1071
    %v1073 = vadd.f32 %v1072, 0.05243302
    %v1074 = vmul.f32 %v1067, %v1073
    %v1075 = vadd.f32 %v1074, 0.18741608
    %v1076 = vmul.f32 %v1067, %v1075
    %v1077 = vadd.f32 %v1076, 1.1283791
    %v1078 = vmul.f32 %v495, %v1077
    %v1079 = vmul.f32 %v1067, 3.8918573e-05
    %v1080 = vadd.f32 %v1079, 0.001143296
    %v1081 = vmul.f32 %v1067, %v1080
    %v1082 = vadd.f32 %v1081, 0.014752088
    %v1083 = vmul.f32 %v1067, %v1082
    %v1084 = vadd.f32 %v1083, 0.112945676
    %v1085 = vmul.f32 %v1067, %v1084
    %v1086 = vadd.f32 %v1085, 0.4994258
    %v1087 = vmul.f32 %v1067, %v1086
    %v1088 = vadd.f32 %v1087, 1.0
    %v1089 = vrcp.pop %v1088
    %v1090 = vmul.f32 %v1088, %v1089
    %v1091 = vsub.f32 1.0, %v1090
    %v1092 = vmul.f32 %v1089, %v1091
    %v1093 = vadd.f32 %v1089, %v1092
    %vm1094 = vweird.f32 %v1088
    %vm1095 = vweird.f32 %v1089
    %vm1096 = vmor %vm1094, %vm1095
    %v1097 = vsel %vm1096, %v1089, %v1093
    %v1098 = vand.u32 2147483647, %v1088
    %vm1099 = vcmp.eq.f32.partialorder %v1098, 8.507059e+37
    %v1100 = vand.u32 %v1088, 2147483648
    %v1101 = vor.u32 1.1754944e-38, %v1100
    %v1102 = vsel %vm1099, %v1101, %v1097
    %v1103 = vmul.f32 %v1078, %v1102
    %v1104 = vmin.f32 %v1103, 1.0
    %v1105 = vmax.f32 %v1104, -1.0
    %v1106 = vmul.f32 %v496, %v496
    %v1107 = vmin.f32 16.0, %v1106
    %v1108 = vmul.f32 %v1107, 2.1237322e-06
    %v1109 = vadd.f32 %v1108, 0.00028619796
    %v1110 = vmul.f32 %v1107, %v1109
    %v1111 = vadd.f32 %v1110, 0.0036580483
    %v1112 = vmul.f32 %v1107, %v1111
    %v1113 = vadd.f32 %v1112, 0.05243302
    %v1114 = vmul.f32 %v1107, %v1113
    %v1115 = vadd.f32 %v1114, 0.18741608
    %v1116 = vmul.f32 %v1107, %v1115
    %v1117 = vadd.f32 %v1116, 1.1283791
    %v1118 = vmul.f32 %v496, %v1117
    %v1119 = vmul.f32 %v1107, 3.8918573e-05
    %v1120 = vadd.f32 %v1119, 0.001143296
    %v1121 = vmul.f32 %v1107, %v1120
    %v1122 = vadd.f32 %v1121, 0.014752088
    %v1123 = vmul.f32 %v1107, %v1122
    %v1124 = vadd.f32 %v1123, 0.112945676
    %v1125 = vmul.f32 %v1107, %v1124
    %v1126 = vadd.f32 %v1125, 0.4994258
    %v1127 = vmul.f32 %v1107, %v1126
    %v1128 = vadd.f32 %v1127, 1.0
    %v1129 = vrcp.pop %v1128
    %v1130 = vmul.f32 %v1128, %v1129
    %v1131 = vsub.f32 1.0, %v1130
    %v1132 = vmul.f32 %v1129, %v1131
    %v1133 = vadd.f32 %v1129, %v1132
    %vm1134 = vweird.f32 %v1128
    %vm1135 = vweird.f32 %v1129
    %vm1136 = vmor %vm1134, %vm1135
    %v1137 = vsel %vm1136, %v1129, %v1133
    %v1138 = vand.u32 2147483647, %v1128
    %vm1139 = vcmp.eq.f32.partialorder %v1138, 8.507059e+37
    %v1140 = vand.u32 %v1128, 2147483648
    %v1141 = vor.u32 1.1754944e-38, %v1140
    %v1142 = vsel %vm1139, %v1141, %v1137
    %v1143 = vmul.f32 %v1118, %v1142
    %v1144 = vmin.f32 %v1143, 1.0
    %v1145 = vmax.f32 %v1144, -1.0
    %v1146 = vmul.f32 %v497, %v497
    %v1147 = vmin.f32 16.0, %v1146
    %v1148 = vmul.f32 %v1147, 2.1237322e-06
    %v1149 = vadd.f32 %v1148, 0.00028619796
    %v1150 = vmul.f32 %v1147, %v1149
    %v1151 = vadd.f32 %v1150, 0.0036580483
    %v1152 = vmul.f32 %v1147, %v1151
    %v1153 = vadd.f32 %v1152, 0.05243302
    %v1154 = vmul.f32 %v1147, %v1153
    %v1155 = vadd.f32 %v1154, 0.18741608
    %v1156 = vmul.f32 %v1147, %v1155
    %v1157 = vadd.f32 %v1156, 1.1283791
    %v1158 = vmul.f32 %v497, %v1157
    %v1159 = vmul.f32 %v1147, 3.8918573e-05
    %v1160 = vadd.f32 %v1159, 0.001143296
    %v1161 = vmul.f32 %v1147, %v1160
    %v1162 = vadd.f32 %v1161, 0.014752088
    %v1163 = vmul.f32 %v1147, %v1162
    %v1164 = vadd.f32 %v1163, 0.112945676
    %v1165 = vmul.f32 %v1147, %v1164
    %v1166 = vadd.f32 %v1165, 0.4994258
    %v1167 = vmul.f32 %v1147, %v1166
    %v1168 = vadd.f32 %v1167, 1.0
    %v1169 = vrcp.pop %v1168
    %v1170 = vmul.f32 %v1168, %v1169
    %v1171 = vsub.f32 1.0, %v1170
    %v1172 = vmul.f32 %v1169, %v1171
    %v1173 = vadd.f32 %v1169, %v1172
    %vm1174 = vweird.f32 %v1168
    %vm1175 = vweird.f32 %v1169
    %vm1176 = vmor %vm1174, %vm1175
    %v1177 = vsel %vm1176, %v1169, %v1173
    %v1178 = vand.u32 2147483647, %v1168
    %vm1179 = vcmp.eq.f32.partialorder %v1178, 8.507059e+37
    %v1180 = vand.u32 %v1168, 2147483648
    %v1181 = vor.u32 1.1754944e-38, %v1180
    %v1182 = vsel %vm1179, %v1181, %v1177
    %v1183 = vmul.f32 %v1158, %v1182
    %v1184 = vmin.f32 %v1183, 1.0
    %v1185 = vmax.f32 %v1184, -1.0
    %v1186 = vmul.f32 %v498, %v498
    %v1187 = vmin.f32 16.0, %v1186
    %v1188 = vmul.f32 %v1187, 2.1237322e-06
    %v1189 = vadd.f32 %v1188, 0.00028619796
    %v1190 = vmul.f32 %v1187, %v1189
    %v1191 = vadd.f32 %v1190, 0.0036580483
    %v1192 = vmul.f32 %v1187, %v1191
    %v1193 = vadd.f32 %v1192, 0.05243302
    %v1194 = vmul.f32 %v1187, %v1193
    %v1195 = vadd.f32 %v1194, 0.18741608
    %v1196 = vmul.f32 %v1187, %v1195
    %v1197 = vadd.f32 %v1196, 1.1283791
    %v1198 = vmul.f32 %v498, %v1197
    %v1199 = vmul.f32 %v1187, 3.8918573e-05
    %v1200 = vadd.f32 %v1199, 0.001143296
    %v1201 = vmul.f32 %v1187, %v1200
    %v1202 = vadd.f32 %v1201, 0.014752088
    %v1203 = vmul.f32 %v1187, %v1202
    %v1204 = vadd.f32 %v1203, 0.112945676
    %v1205 = vmul.f32 %v1187, %v1204
    %v1206 = vadd.f32 %v1205, 0.4994258
    %v1207 = vmul.f32 %v1187, %v1206
    %v1208 = vadd.f32 %v1207, 1.0
    %v1209 = vrcp.pop %v1208
    %v1210 = vmul.f32 %v1208, %v1209
    %v1211 = vsub.f32 1.0, %v1210
    %v1212 = vmul.f32 %v1209, %v1211
    %v1213 = vadd.f32 %v1209, %v1212
    %vm1214 = vweird.f32 %v1208
    %vm1215 = vweird.f32 %v1209
    %vm1216 = vmor %vm1214, %vm1215
    %v1217 = vsel %vm1216, %v1209, %v1213
    %v1218 = vand.u32 2147483647, %v1208
    %vm1219 = vcmp.eq.f32.partialorder %v1218, 8.507059e+37
    %v1220 = vand.u32 %v1208, 2147483648
    %v1221 = vor.u32 1.1754944e-38, %v1220
    %v1222 = vsel %vm1219, %v1221, %v1217
    %v1223 = vmul.f32 %v1198, %v1222
    %v1224 = vmin.f32 %v1223, 1.0
    %v1225 = vmax.f32 %v1224, -1.0
    %v1226 = vmul.f32 %v499, %v499
    %v1227 = vmin.f32 16.0, %v1226
    %v1228 = vmul.f32 %v1227, 2.1237322e-06
    %v1229 = vadd.f32 %v1228, 0.00028619796
    %v1230 = vmul.f32 %v1227, %v1229
    %v1231 = vadd.f32 %v1230, 0.0036580483
    %v1232 = vmul.f32 %v1227, %v1231
    %v1233 = vadd.f32 %v1232, 0.05243302
    %v1234 = vmul.f32 %v1227, %v1233
    %v1235 = vadd.f32 %v1234, 0.18741608
    %v1236 = vmul.f32 %v1227, %v1235
    %v1237 = vadd.f32 %v1236, 1.1283791
    %v1238 = vmul.f32 %v499, %v1237
    %v1239 = vmul.f32 %v1227, 3.8918573e-05
    %v1240 = vadd.f32 %v1239, 0.001143296
    %v1241 = vmul.f32 %v1227, %v1240
    %v1242 = vadd.f32 %v1241, 0.014752088
    %v1243 = vmul.f32 %v1227, %v1242
    %v1244 = vadd.f32 %v1243, 0.112945676
    %v1245 = vmul.f32 %v1227, %v1244
    %v1246 = vadd.f32 %v1245, 0.4994258
    %v1247 = vmul.f32 %v1227, %v1246
    %v1248 = vadd.f32 %v1247, 1.0
    %v1249 = vrcp.pop %v1248
    %v1250 = vmul.f32 %v1248, %v1249
    %v1251 = vsub.f32 1.0, %v1250
    %v1252 = vmul.f32 %v1249, %v1251
    %v1253 = vadd.f32 %v1249, %v1252
    %vm1254 = vweird.f32 %v1248
    %vm1255 = vweird.f32 %v1249
    %vm1256 = vmor %vm1254, %vm1255
    %v1257 = vsel %vm1256, %v1249, %v1253
    %v1258 = vand.u32 2147483647, %v1248
    %vm1259 = vcmp.eq.f32.partialorder %v1258, 8.507059e+37
    %v1260 = vand.u32 %v1248, 2147483648
    %v1261 = vor.u32 1.1754944e-38, %v1260
    %v1262 = vsel %vm1259, %v1261, %v1257
    %v1263 = vmul.f32 %v1238, %v1262
    %v1264 = vmin.f32 %v1263, 1.0
    %v1265 = vmax.f32 %v1264, -1.0
    %v1266 = vmul.f32 %v500, %v500
    %v1267 = vmin.f32 16.0, %v1266
    %v1268 = vmul.f32 %v1267, 2.1237322e-06
    %v1269 = vadd.f32 %v1268, 0.00028619796
    %v1270 = vmul.f32 %v1267, %v1269
    %v1271 = vadd.f32 %v1270, 0.0036580483
    %v1272 = vmul.f32 %v1267, %v1271
    %v1273 = vadd.f32 %v1272, 0.05243302
    %v1274 = vmul.f32 %v1267, %v1273
    %v1275 = vadd.f32 %v1274, 0.18741608
    %v1276 = vmul.f32 %v1267, %v1275
    %v1277 = vadd.f32 %v1276, 1.1283791
    %v1278 = vmul.f32 %v500, %v1277
    %v1279 = vmul.f32 %v1267, 3.8918573e-05
    %v1280 = vadd.f32 %v1279, 0.001143296
    %v1281 = vmul.f32 %v1267, %v1280
    %v1282 = vadd.f32 %v1281, 0.014752088
    %v1283 = vmul.f32 %v1267, %v1282
    %v1284 = vadd.f32 %v1283, 0.112945676
    %v1285 = vmul.f32 %v1267, %v1284
    %v1286 = vadd.f32 %v1285, 0.4994258
    %v1287 = vmul.f32 %v1267, %v1286
    %v1288 = vadd.f32 %v1287, 1.0
    %v1289 = vrcp.pop %v1288
    %v1290 = vmul.f32 %v1288, %v1289
    %v1291 = vsub.f32 1.0, %v1290
    %v1292 = vmul.f32 %v1289, %v1291
    %v1293 = vadd.f32 %v1289, %v1292
    %vm1294 = vweird.f32 %v1288
    %vm1295 = vweird.f32 %v1289
    %vm1296 = vmor %vm1294, %vm1295
    %v1297 = vsel %vm1296, %v1289, %v1293
    %v1298 = vand.u32 2147483647, %v1288
    %vm1299 = vcmp.eq.f32.partialorder %v1298, 8.507059e+37
    %v1300 = vand.u32 %v1288, 2147483648
    %v1301 = vor.u32 1.1754944e-38, %v1300
    %v1302 = vsel %vm1299, %v1301, %v1297
    %v1303 = vmul.f32 %v1278, %v1302
    %v1304 = vmin.f32 %v1303, 1.0
    %v1305 = vmax.f32 %v1304, -1.0
    %v1306 = vmul.f32 %v501, %v501
    %v1307 = vmin.f32 16.0, %v1306
    %v1308 = vmul.f32 %v1307, 2.1237322e-06
    %v1309 = vadd.f32 %v1308, 0.00028619796
    %v1310 = vmul.f32 %v1307, %v1309
    %v1311 = vadd.f32 %v1310, 0.0036580483
    %v1312 = vmul.f32 %v1307, %v1311
    %v1313 = vadd.f32 %v1312, 0.05243302
    %v1314 = vmul.f32 %v1307, %v1313
    %v1315 = vadd.f32 %v1314, 0.18741608
    %v1316 = vmul.f32 %v1307, %v1315
    %v1317 = vadd.f32 %v1316, 1.1283791
    %v1318 = vmul.f32 %v501, %v1317
    %v1319 = vmul.f32 %v1307, 3.8918573e-05
    %v1320 = vadd.f32 %v1319, 0.001143296
    %v1321 = vmul.f32 %v1307, %v1320
    %v1322 = vadd.f32 %v1321, 0.014752088
    %v1323 = vmul.f32 %v1307, %v1322
    %v1324 = vadd.f32 %v1323, 0.112945676
    %v1325 = vmul.f32 %v1307, %v1324
    %v1326 = vadd.f32 %v1325, 0.4994258
    %v1327 = vmul.f32 %v1307, %v1326
    %v1328 = vadd.f32 %v1327, 1.0
    %v1329 = vrcp.pop %v1328
    %v1330 = vmul.f32 %v1328, %v1329
    %v1331 = vsub.f32 1.0, %v1330
    %v1332 = vmul.f32 %v1329, %v1331
    %v1333 = vadd.f32 %v1329, %v1332
    %vm1334 = vweird.f32 %v1328
    %vm1335 = vweird.f32 %v1329
    %vm1336 = vmor %vm1334, %vm1335
    %v1337 = vsel %vm1336, %v1329, %v1333
    %v1338 = vand.u32 2147483647, %v1328
    %vm1339 = vcmp.eq.f32.partialorder %v1338, 8.507059e+37
    %v1340 = vand.u32 %v1328, 2147483648
    %v1341 = vor.u32 1.1754944e-38, %v1340
    %v1342 = vsel %vm1339, %v1341, %v1337
    %v1343 = vmul.f32 %v1318, %v1342
    %v1344 = vmin.f32 %v1343, 1.0
    %v1345 = vmax.f32 %v1344, -1.0
    %v1346 = vmul.f32 %v502, %v502
    %v1347 = vmin.f32 16.0, %v1346
    %v1348 = vmul.f32 %v1347, 2.1237322e-06
    %v1349 = vadd.f32 %v1348, 0.00028619796
    %v1350 = vmul.f32 %v1347, %v1349
    %v1351 = vadd.f32 %v1350, 0.0036580483
    %v1352 = vmul.f32 %v1347, %v1351
    %v1353 = vadd.f32 %v1352, 0.05243302
    %v1354 = vmul.f32 %v1347, %v1353
    %v1355 = vadd.f32 %v1354, 0.18741608
    %v1356 = vmul.f32 %v1347, %v1355
    %v1357 = vadd.f32 %v1356, 1.1283791
    %v1358 = vmul.f32 %v502, %v1357
    %v1359 = vmul.f32 %v1347, 3.8918573e-05
    %v1360 = vadd.f32 %v1359, 0.001143296
    %v1361 = vmul.f32 %v1347, %v1360
    %v1362 = vadd.f32 %v1361, 0.014752088
    %v1363 = vmul.f32 %v1347, %v1362
    %v1364 = vadd.f32 %v1363, 0.112945676
    %v1365 = vmul.f32 %v1347, %v1364
    %v1366 = vadd.f32 %v1365, 0.4994258
    %v1367 = vmul.f32 %v1347, %v1366
    %v1368 = vadd.f32 %v1367, 1.0
    %v1369 = vrcp.pop %v1368
    %v1370 = vmul.f32 %v1368, %v1369
    %v1371 = vsub.f32 1.0, %v1370
    %v1372 = vmul.f32 %v1369, %v1371
    %v1373 = vadd.f32 %v1369, %v1372
    %vm1374 = vweird.f32 %v1368
    %vm1375 = vweird.f32 %v1369
    %vm1376 = vmor %vm1374, %vm1375
    %v1377 = vsel %vm1376, %v1369, %v1373
    %v1378 = vand.u32 2147483647, %v1368
    %vm1379 = vcmp.eq.f32.partialorder %v1378, 8.507059e+37
    %v1380 = vand.u32 %v1368, 2147483648
    %v1381 = vor.u32 1.1754944e-38, %v1380
    %v1382 = vsel %vm1379, %v1381, %v1377
    %v1383 = vmul.f32 %v1358, %v1382
    %v1384 = vmin.f32 %v1383, 1.0
    %v1385 = vmax.f32 %v1384, -1.0
    %v1386 = vmul.f32 %v503, %v503
    %v1387 = vmin.f32 16.0, %v1386
    %v1388 = vmul.f32 %v1387, 2.1237322e-06
    %v1389 = vadd.f32 %v1388, 0.00028619796
    %v1390 = vmul.f32 %v1387, %v1389
    %v1391 = vadd.f32 %v1390, 0.0036580483
    %v1392 = vmul.f32 %v1387, %v1391
    %v1393 = vadd.f32 %v1392, 0.05243302
    %v1394 = vmul.f32 %v1387, %v1393
    %v1395 = vadd.f32 %v1394, 0.18741608
    %v1396 = vmul.f32 %v1387, %v1395
    %v1397 = vadd.f32 %v1396, 1.1283791
    %v1398 = vmul.f32 %v503, %v1397
    %v1399 = vmul.f32 %v1387, 3.8918573e-05
    %v1400 = vadd.f32 %v1399, 0.001143296
    %v1401 = vmul.f32 %v1387, %v1400
    %v1402 = vadd.f32 %v1401, 0.014752088
    %v1403 = vmul.f32 %v1387, %v1402
    %v1404 = vadd.f32 %v1403, 0.112945676
    %v1405 = vmul.f32 %v1387, %v1404
    %v1406 = vadd.f32 %v1405, 0.4994258
    %v1407 = vmul.f32 %v1387, %v1406
    %v1408 = vadd.f32 %v1407, 1.0
    %v1409 = vrcp.pop %v1408
    %v1410 = vmul.f32 %v1408, %v1409
    %v1411 = vsub.f32 1.0, %v1410
    %v1412 = vmul.f32 %v1409, %v1411
    %v1413 = vadd.f32 %v1409, %v1412
    %vm1414 = vweird.f32 %v1408
    %vm1415 = vweird.f32 %v1409
    %vm1416 = vmor %vm1414, %vm1415
    %v1417 = vsel %vm1416, %v1409, %v1413
    %v1418 = vand.u32 2147483647, %v1408
    %vm1419 = vcmp.eq.f32.partialorder %v1418, 8.507059e+37
    %v1420 = vand.u32 %v1408, 2147483648
    %v1421 = vor.u32 1.1754944e-38, %v1420
    %v1422 = vsel %vm1419, %v1421, %v1417
    %v1423 = vmul.f32 %v1398, %v1422
    %v1424 = vmin.f32 %v1423, 1.0
    %v1425 = vmax.f32 %v1424, -1.0
    %v1426 = vmul.f32 %v504, %v504
    %v1427 = vmin.f32 16.0, %v1426
    %v1428 = vmul.f32 %v1427, 2.1237322e-06
    %v1429 = vadd.f32 %v1428, 0.00028619796
    %v1430 = vmul.f32 %v1427, %v1429
    %v1431 = vadd.f32 %v1430, 0.0036580483
    %v1432 = vmul.f32 %v1427, %v1431
    %v1433 = vadd.f32 %v1432, 0.05243302
    %v1434 = vmul.f32 %v1427, %v1433
    %v1435 = vadd.f32 %v1434, 0.18741608
    %v1436 = vmul.f32 %v1427, %v1435
    %v1437 = vadd.f32 %v1436, 1.1283791
    %v1438 = vmul.f32 %v504, %v1437
    %v1439 = vmul.f32 %v1427, 3.8918573e-05
    %v1440 = vadd.f32 %v1439, 0.001143296
    %v1441 = vmul.f32 %v1427, %v1440
    %v1442 = vadd.f32 %v1441, 0.014752088
    %v1443 = vmul.f32 %v1427, %v1442
    %v1444 = vadd.f32 %v1443, 0.112945676
    %v1445 = vmul.f32 %v1427, %v1444
    %v1446 = vadd.f32 %v1445, 0.4994258
    %v1447 = vmul.f32 %v1427, %v1446
    %v1448 = vadd.f32 %v1447, 1.0
    %v1449 = vrcp.pop %v1448
    %v1450 = vmul.f32 %v1448, %v1449
    %v1451 = vsub.f32 1.0, %v1450
    %v1452 = vmul.f32 %v1449, %v1451
    %v1453 = vadd.f32 %v1449, %v1452
    %vm1454 = vweird.f32 %v1448
    %vm1455 = vweird.f32 %v1449
    %vm1456 = vmor %vm1454, %vm1455
    %v1457 = vsel %vm1456, %v1449, %v1453
    %v1458 = vand.u32 2147483647, %v1448
    %vm1459 = vcmp.eq.f32.partialorder %v1458, 8.507059e+37
    %v1460 = vand.u32 %v1448, 2147483648
    %v1461 = vor.u32 1.1754944e-38, %v1460
    %v1462 = vsel %vm1459, %v1461, %v1457
    %v1463 = vmul.f32 %v1438, %v1462
    %v1464 = vmin.f32 %v1463, 1.0
    %v1465 = vmax.f32 %v1464, -1.0
    %v1466 = vmul.f32 %v505, %v505
    %v1467 = vmin.f32 16.0, %v1466
    %v1468 = vmul.f32 %v1467, 2.1237322e-06
    %v1469 = vadd.f32 %v1468, 0.00028619796
    %v1470 = vmul.f32 %v1467, %v1469
    %v1471 = vadd.f32 %v1470, 0.0036580483
    %v1472 = vmul.f32 %v1467, %v1471
    %v1473 = vadd.f32 %v1472, 0.05243302
    %v1474 = vmul.f32 %v1467, %v1473
    %v1475 = vadd.f32 %v1474, 0.18741608
    %v1476 = vmul.f32 %v1467, %v1475
    %v1477 = vadd.f32 %v1476, 1.1283791
    %v1478 = vmul.f32 %v505, %v1477
    %v1479 = vmul.f32 %v1467, 3.8918573e-05
    %v1480 = vadd.f32 %v1479, 0.001143296
    %v1481 = vmul.f32 %v1467, %v1480
    %v1482 = vadd.f32 %v1481, 0.014752088
    %v1483 = vmul.f32 %v1467, %v1482
    %v1484 = vadd.f32 %v1483, 0.112945676
    %v1485 = vmul.f32 %v1467, %v1484
    %v1486 = vadd.f32 %v1485, 0.4994258
    %v1487 = vmul.f32 %v1467, %v1486
    %v1488 = vadd.f32 %v1487, 1.0
    %v1489 = vrcp.pop %v1488
    %v1490 = vmul.f32 %v1488, %v1489
    %v1491 = vsub.f32 1.0, %v1490
    %v1492 = vmul.f32 %v1489, %v1491
    %v1493 = vadd.f32 %v1489, %v1492
    %vm1494 = vweird.f32 %v1488
    %vm1495 = vweird.f32 %v1489
    %vm1496 = vmor %vm1494, %vm1495
    %v1497 = vsel %vm1496, %v1489, %v1493
    %v1498 = vand.u32 2147483647, %v1488
    %vm1499 = vcmp.eq.f32.partialorder %v1498, 8.507059e+37
    %v1500 = vand.u32 %v1488, 2147483648
    %v1501 = vor.u32 1.1754944e-38, %v1500
    %v1502 = vsel %vm1499, %v1501, %v1497
    %v1503 = vmul.f32 %v1478, %v1502
    %v1504 = vmin.f32 %v1503, 1.0
    %v1505 = vmax.f32 %v1504, -1.0
    %v1506 = vmul.f32 %v506, %v506
    %v1507 = vmin.f32 16.0, %v1506
    %v1508 = vmul.f32 %v1507, 2.1237322e-06
    %v1509 = vadd.f32 %v1508, 0.00028619796
    %v1510 = vmul.f32 %v1507, %v1509
    %v1511 = vadd.f32 %v1510, 0.0036580483
    %v1512 = vmul.f32 %v1507, %v1511
    %v1513 = vadd.f32 %v1512, 0.05243302
    %v1514 = vmul.f32 %v1507, %v1513
    %v1515 = vadd.f32 %v1514, 0.18741608
    %v1516 = vmul.f32 %v1507, %v1515
    %v1517 = vadd.f32 %v1516, 1.1283791
    %v1518 = vmul.f32 %v506, %v1517
    %v1519 = vmul.f32 %v1507, 3.8918573e-05
    %v1520 = vadd.f32 %v1519, 0.001143296
    %v1521 = vmul.f32 %v1507, %v1520
    %v1522 = vadd.f32 %v1521, 0.014752088
    %v1523 = vmul.f32 %v1507, %v1522
    %v1524 = vadd.f32 %v1523, 0.112945676
    %v1525 = vmul.f32 %v1507, %v1524
    %v1526 = vadd.f32 %v1525, 0.4994258
    %v1527 = vmul.f32 %v1507, %v1526
    %v1528 = vadd.f32 %v1527, 1.0
    %v1529 = vrcp.pop %v1528
    %v1530 = vmul.f32 %v1528, %v1529
    %v1531 = vsub.f32 1.0, %v1530
    %v1532 = vmul.f32 %v1529, %v1531
    %v1533 = vadd.f32 %v1529, %v1532
    %vm1534 = vweird.f32 %v1528
    %vm1535 = vweird.f32 %v1529
    %vm1536 = vmor %vm1534, %vm1535
    %v1537 = vsel %vm1536, %v1529, %v1533
    %v1538 = vand.u32 2147483647, %v1528
    %vm1539 = vcmp.eq.f32.partialorder %v1538, 8.507059e+37
    %v1540 = vand.u32 %v1528, 2147483648
    %v1541 = vor.u32 1.1754944e-38, %v1540
    %v1542 = vsel %vm1539, %v1541, %v1537
    %v1543 = vmul.f32 %v1518, %v1542
    %v1544 = vmin.f32 %v1543, 1.0
    %v1545 = vmax.f32 %v1544, -1.0
    %v1546 = vmul.f32 %v507, %v507
    %v1547 = vmin.f32 16.0, %v1546
    %v1548 = vmul.f32 %v1547, 2.1237322e-06
    %v1549 = vadd.f32 %v1548, 0.00028619796
    %v1550 = vmul.f32 %v1547, %v1549
    %v1551 = vadd.f32 %v1550, 0.0036580483
    %v1552 = vmul.f32 %v1547, %v1551
    %v1553 = vadd.f32 %v1552, 0.05243302
    %v1554 = vmul.f32 %v1547, %v1553
    %v1555 = vadd.f32 %v1554, 0.18741608
    %v1556 = vmul.f32 %v1547, %v1555
    %v1557 = vadd.f32 %v1556, 1.1283791
    %v1558 = vmul.f32 %v507, %v1557
    %v1559 = vmul.f32 %v1547, 3.8918573e-05
    %v1560 = vadd.f32 %v1559, 0.001143296
    %v1561 = vmul.f32 %v1547, %v1560
    %v1562 = vadd.f32 %v1561, 0.014752088
    %v1563 = vmul.f32 %v1547, %v1562
    %v1564 = vadd.f32 %v1563, 0.112945676
    %v1565 = vmul.f32 %v1547, %v1564
    %v1566 = vadd.f32 %v1565, 0.4994258
    %v1567 = vmul.f32 %v1547, %v1566
    %v1568 = vadd.f32 %v1567, 1.0
    %v1569 = vrcp.pop %v1568
    %v1570 = vmul.f32 %v1568, %v1569
    %v1571 = vsub.f32 1.0, %v1570
    %v1572 = vmul.f32 %v1569, %v1571
    %v1573 = vadd.f32 %v1569, %v1572
    %vm1574 = vweird.f32 %v1568
    %vm1575 = vweird.f32 %v1569
    %vm1576 = vmor %vm1574, %vm1575
    %v1577 = vsel %vm1576, %v1569, %v1573
    %v1578 = vand.u32 2147483647, %v1568
    %vm1579 = vcmp.eq.f32.partialorder %v1578, 8.507059e+37
    %v1580 = vand.u32 %v1568, 2147483648
    %v1581 = vor.u32 1.1754944e-38, %v1580
    %v1582 = vsel %vm1579, %v1581, %v1577
    %v1583 = vmul.f32 %v1558, %v1582
    %v1584 = vmin.f32 %v1583, 1.0
    %v1585 = vmax.f32 %v1584, -1.0
    %v1586 = vmul.f32 %v508, %v508
    %v1587 = vmin.f32 16.0, %v1586
    %v1588 = vmul.f32 %v1587, 2.1237322e-06
    %v1589 = vadd.f32 %v1588, 0.00028619796
    %v1590 = vmul.f32 %v1587, %v1589
    %v1591 = vadd.f32 %v1590, 0.0036580483
    %v1592 = vmul.f32 %v1587, %v1591
    %v1593 = vadd.f32 %v1592, 0.05243302
    %v1594 = vmul.f32 %v1587, %v1593
    %v1595 = vadd.f32 %v1594, 0.18741608
    %v1596 = vmul.f32 %v1587, %v1595
    %v1597 = vadd.f32 %v1596, 1.1283791
    %v1598 = vmul.f32 %v508, %v1597
    %v1599 = vmul.f32 %v1587, 3.8918573e-05
    %v1600 = vadd.f32 %v1599, 0.001143296
    %v1601 = vmul.f32 %v1587, %v1600
    %v1602 = vadd.f32 %v1601, 0.014752088
    %v1603 = vmul.f32 %v1587, %v1602
    %v1604 = vadd.f32 %v1603, 0.112945676
    %v1605 = vmul.f32 %v1587, %v1604
    %v1606 = vadd.f32 %v1605, 0.4994258
    %v1607 = vmul.f32 %v1587, %v1606
    %v1608 = vadd.f32 %v1607, 1.0
    %v1609 = vrcp.pop %v1608
    %v1610 = vmul.f32 %v1608, %v1609
    %v1611 = vsub.f32 1.0, %v1610
    %v1612 = vmul.f32 %v1609, %v1611
    %v1613 = vadd.f32 %v1609, %v1612
    %vm1614 = vweird.f32 %v1608
    %vm1615 = vweird.f32 %v1609
    %vm1616 = vmor %vm1614, %vm1615
    %v1617 = vsel %vm1616, %v1609, %v1613
    %v1618 = vand.u32 2147483647, %v1608
    %vm1619 = vcmp.eq.f32.partialorder %v1618, 8.507059e+37
    %v1620 = vand.u32 %v1608, 2147483648
    %v1621 = vor.u32 1.1754944e-38, %v1620
    %v1622 = vsel %vm1619, %v1621, %v1617
    %v1623 = vmul.f32 %v1598, %v1622
    %v1624 = vmin.f32 %v1623, 1.0
    %v1625 = vmax.f32 %v1624, -1.0
    %v1626 = vmul.f32 %v509, %v509
    %v1627 = vmin.f32 16.0, %v1626
    %v1628 = vmul.f32 %v1627, 2.1237322e-06
    %v1629 = vadd.f32 %v1628, 0.00028619796
    %v1630 = vmul.f32 %v1627, %v1629
    %v1631 = vadd.f32 %v1630, 0.0036580483
    %v1632 = vmul.f32 %v1627, %v1631
    %v1633 = vadd.f32 %v1632, 0.05243302
    %v1634 = vmul.f32 %v1627, %v1633
    %v1635 = vadd.f32 %v1634, 0.18741608
    %v1636 = vmul.f32 %v1627, %v1635
    %v1637 = vadd.f32 %v1636, 1.1283791
    %v1638 = vmul.f32 %v509, %v1637
    %v1639 = vmul.f32 %v1627, 3.8918573e-05
    %v1640 = vadd.f32 %v1639, 0.001143296
    %v1641 = vmul.f32 %v1627, %v1640
    %v1642 = vadd.f32 %v1641, 0.014752088
    %v1643 = vmul.f32 %v1627, %v1642
    %v1644 = vadd.f32 %v1643, 0.112945676
    %v1645 = vmul.f32 %v1627, %v1644
    %v1646 = vadd.f32 %v1645, 0.4994258
    %v1647 = vmul.f32 %v1627, %v1646
    %v1648 = vadd.f32 %v1647, 1.0
    %v1649 = vrcp.pop %v1648
    %v1650 = vmul.f32 %v1648, %v1649
    %v1651 = vsub.f32 1.0, %v1650
    %v1652 = vmul.f32 %v1649, %v1651
    %v1653 = vadd.f32 %v1649, %v1652
    %vm1654 = vweird.f32 %v1648
    %vm1655 = vweird.f32 %v1649
    %vm1656 = vmor %vm1654, %vm1655
    %v1657 = vsel %vm1656, %v1649, %v1653
    %v1658 = vand.u32 2147483647, %v1648
    %vm1659 = vcmp.eq.f32.partialorder %v1658, 8.507059e+37
    %v1660 = vand.u32 %v1648, 2147483648
    %v1661 = vor.u32 1.1754944e-38, %v1660
    %v1662 = vsel %vm1659, %v1661, %v1657
    %v1663 = vmul.f32 %v1638, %v1662
    %v1664 = vmin.f32 %v1663, 1.0
    %v1665 = vmax.f32 %v1664, -1.0
    %v1666 = vmul.f32 %v510, %v510
    %v1667 = vmin.f32 16.0, %v1666
    %v1668 = vmul.f32 %v1667, 2.1237322e-06
    %v1669 = vadd.f32 %v1668, 0.00028619796
    %v1670 = vmul.f32 %v1667, %v1669
    %v1671 = vadd.f32 %v1670, 0.0036580483
    %v1672 = vmul.f32 %v1667, %v1671
    %v1673 = vadd.f32 %v1672, 0.05243302
    %v1674 = vmul.f32 %v1667, %v1673
    %v1675 = vadd.f32 %v1674, 0.18741608
    %v1676 = vmul.f32 %v1667, %v1675
    %v1677 = vadd.f32 %v1676, 1.1283791
    %v1678 = vmul.f32 %v510, %v1677
    %v1679 = vmul.f32 %v1667, 3.8918573e-05
    %v1680 = vadd.f32 %v1679, 0.001143296
    %v1681 = vmul.f32 %v1667, %v1680
    %v1682 = vadd.f32 %v1681, 0.014752088
    %v1683 = vmul.f32 %v1667, %v1682
    %v1684 = vadd.f32 %v1683, 0.112945676
    %v1685 = vmul.f32 %v1667, %v1684
    %v1686 = vadd.f32 %v1685, 0.4994258
    %v1687 = vmul.f32 %v1667, %v1686
    %v1688 = vadd.f32 %v1687, 1.0
    %v1689 = vrcp.pop %v1688
    %v1690 = vmul.f32 %v1688, %v1689
    %v1691 = vsub.f32 1.0, %v1690
    %v1692 = vmul.f32 %v1689, %v1691
    %v1693 = vadd.f32 %v1689, %v1692
    %vm1694 = vweird.f32 %v1688
    %vm1695 = vweird.f32 %v1689
    %vm1696 = vmor %vm1694, %vm1695
    %v1697 = vsel %vm1696, %v1689, %v1693
    %v1698 = vand.u32 2147483647, %v1688
    %vm1699 = vcmp.eq.f32.partialorder %v1698, 8.507059e+37
    %v1700 = vand.u32 %v1688, 2147483648
    %v1701 = vor.u32 1.1754944e-38, %v1700
    %v1702 = vsel %vm1699, %v1701, %v1697
    %v1703 = vmul.f32 %v1678, %v1702
    %v1704 = vmin.f32 %v1703, 1.0
    %v1705 = vmax.f32 %v1704, -1.0
    %v1706 = vmul.f32 %v511, %v511
    %v1707 = vmin.f32 16.0, %v1706
    %v1708 = vmul.f32 %v1707, 2.1237322e-06
    %v1709 = vadd.f32 %v1708, 0.00028619796
    %v1710 = vmul.f32 %v1707, %v1709
    %v1711 = vadd.f32 %v1710, 0.0036580483
    %v1712 = vmul.f32 %v1707, %v1711
    %v1713 = vadd.f32 %v1712, 0.05243302
    %v1714 = vmul.f32 %v1707, %v1713
    %v1715 = vadd.f32 %v1714, 0.18741608
    %v1716 = vmul.f32 %v1707, %v1715
    %v1717 = vadd.f32 %v1716, 1.1283791
    %v1718 = vmul.f32 %v511, %v1717
    %v1719 = vmul.f32 %v1707, 3.8918573e-05
    %v1720 = vadd.f32 %v1719, 0.001143296
    %v1721 = vmul.f32 %v1707, %v1720
    %v1722 = vadd.f32 %v1721, 0.014752088
    %v1723 = vmul.f32 %v1707, %v1722
    %v1724 = vadd.f32 %v1723, 0.112945676
    %v1725 = vmul.f32 %v1707, %v1724
    %v1726 = vadd.f32 %v1725, 0.4994258
    %v1727 = vmul.f32 %v1707, %v1726
    %v1728 = vadd.f32 %v1727, 1.0
    %v1729 = vrcp.pop %v1728
    %v1730 = vmul.f32 %v1728, %v1729
    %v1731 = vsub.f32 1.0, %v1730
    %v1732 = vmul.f32 %v1729, %v1731
    %v1733 = vadd.f32 %v1729, %v1732
    %vm1734 = vweird.f32 %v1728
    %vm1735 = vweird.f32 %v1729
    %vm1736 = vmor %vm1734, %vm1735
    %v1737 = vsel %vm1736, %v1729, %v1733
    %v1738 = vand.u32 2147483647, %v1728
    %vm1739 = vcmp.eq.f32.partialorder %v1738, 8.507059e+37
    %v1740 = vand.u32 %v1728, 2147483648
    %v1741 = vor.u32 1.1754944e-38, %v1740
    %v1742 = vsel %vm1739, %v1741, %v1737
    %v1743 = vmul.f32 %v1718, %v1742
    %v1744 = vmin.f32 %v1743, 1.0
    %v1745 = vmax.f32 %v1744, -1.0
    %v1746 = vmul.f32 %v512, %v512
    %v1747 = vmin.f32 16.0, %v1746
    %v1748 = vmul.f32 %v1747, 2.1237322e-06
    %v1749 = vadd.f32 %v1748, 0.00028619796
    %v1750 = vmul.f32 %v1747, %v1749
    %v1751 = vadd.f32 %v1750, 0.0036580483
    %v1752 = vmul.f32 %v1747, %v1751
    %v1753 = vadd.f32 %v1752, 0.05243302
    %v1754 = vmul.f32 %v1747, %v1753
    %v1755 = vadd.f32 %v1754, 0.18741608
    %v1756 = vmul.f32 %v1747, %v1755
    %v1757 = vadd.f32 %v1756, 1.1283791
    %v1758 = vmul.f32 %v512, %v1757
    %v1759 = vmul.f32 %v1747, 3.8918573e-05
    %v1760 = vadd.f32 %v1759, 0.001143296
    %v1761 = vmul.f32 %v1747, %v1760
    %v1762 = vadd.f32 %v1761, 0.014752088
    %v1763 = vmul.f32 %v1747, %v1762
    %v1764 = vadd.f32 %v1763, 0.112945676
    %v1765 = vmul.f32 %v1747, %v1764
    %v1766 = vadd.f32 %v1765, 0.4994258
    %v1767 = vmul.f32 %v1747, %v1766
    %v1768 = vadd.f32 %v1767, 1.0
    %v1769 = vrcp.pop %v1768
    %v1770 = vmul.f32 %v1768, %v1769
    %v1771 = vsub.f32 1.0, %v1770
    %v1772 = vmul.f32 %v1769, %v1771
    %v1773 = vadd.f32 %v1769, %v1772
    %vm1774 = vweird.f32 %v1768
    %vm1775 = vweird.f32 %v1769
    %vm1776 = vmor %vm1774, %vm1775
    %v1777 = vsel %vm1776, %v1769, %v1773
    %v1778 = vand.u32 2147483647, %v1768
    %vm1779 = vcmp.eq.f32.partialorder %v1778, 8.507059e+37
    %v1780 = vand.u32 %v1768, 2147483648
    %v1781 = vor.u32 1.1754944e-38, %v1780
    %v1782 = vsel %vm1779, %v1781, %v1777
    %v1783 = vmul.f32 %v1758, %v1782
    %v1784 = vmin.f32 %v1783, 1.0
    %v1785 = vmax.f32 %v1784, -1.0
    %v1786 = vmul.f32 %v513, %v513
    %v1787 = vmin.f32 16.0, %v1786
    %v1788 = vmul.f32 %v1787, 2.1237322e-06
    %v1789 = vadd.f32 %v1788, 0.00028619796
    %v1790 = vmul.f32 %v1787, %v1789
    %v1791 = vadd.f32 %v1790, 0.0036580483
    %v1792 = vmul.f32 %v1787, %v1791
    %v1793 = vadd.f32 %v1792, 0.05243302
    %v1794 = vmul.f32 %v1787, %v1793
    %v1795 = vadd.f32 %v1794, 0.18741608
    %v1796 = vmul.f32 %v1787, %v1795
    %v1797 = vadd.f32 %v1796, 1.1283791
    %v1798 = vmul.f32 %v513, %v1797
    %v1799 = vmul.f32 %v1787, 3.8918573e-05
    %v1800 = vadd.f32 %v1799, 0.001143296
    %v1801 = vmul.f32 %v1787, %v1800
    %v1802 = vadd.f32 %v1801, 0.014752088
    %v1803 = vmul.f32 %v1787, %v1802
    %v1804 = vadd.f32 %v1803, 0.112945676
    %v1805 = vmul.f32 %v1787, %v1804
    %v1806 = vadd.f32 %v1805, 0.4994258
    %v1807 = vmul.f32 %v1787, %v1806
    %v1808 = vadd.f32 %v1807, 1.0
    %v1809 = vrcp.pop %v1808
    %v1810 = vmul.f32 %v1808, %v1809
    %v1811 = vsub.f32 1.0, %v1810
    %v1812 = vmul.f32 %v1809, %v1811
    %v1813 = vadd.f32 %v1809, %v1812
    %vm1814 = vweird.f32 %v1808
    %vm1815 = vweird.f32 %v1809
    %vm1816 = vmor %vm1814, %vm1815
    %v1817 = vsel %vm1816, %v1809, %v1813
    %v1818 = vand.u32 2147483647, %v1808
    %vm1819 = vcmp.eq.f32.partialorder %v1818, 8.507059e+37
    %v1820 = vand.u32 %v1808, 2147483648
    %v1821 = vor.u32 1.1754944e-38, %v1820
    %v1822 = vsel %vm1819, %v1821, %v1817
    %v1823 = vmul.f32 %v1798, %v1822
    %v1824 = vmin.f32 %v1823, 1.0
    %v1825 = vmax.f32 %v1824, -1.0
    %v1826 = vmul.f32 %v514, %v514
    %v1827 = vmin.f32 16.0, %v1826
    %v1828 = vmul.f32 %v1827, 2.1237322e-06
    %v1829 = vadd.f32 %v1828, 0.00028619796
    %v1830 = vmul.f32 %v1827, %v1829
    %v1831 = vadd.f32 %v1830, 0.0036580483
    %v1832 = vmul.f32 %v1827, %v1831
    %v1833 = vadd.f32 %v1832, 0.05243302
    %v1834 = vmul.f32 %v1827, %v1833
    %v1835 = vadd.f32 %v1834, 0.18741608
    %v1836 = vmul.f32 %v1827, %v1835
    %v1837 = vadd.f32 %v1836, 1.1283791
    %v1838 = vmul.f32 %v514, %v1837
    %v1839 = vmul.f32 %v1827, 3.8918573e-05
    %v1840 = vadd.f32 %v1839, 0.001143296
    %v1841 = vmul.f32 %v1827, %v1840
    %v1842 = vadd.f32 %v1841, 0.014752088
    %v1843 = vmul.f32 %v1827, %v1842
    %v1844 = vadd.f32 %v1843, 0.112945676
    %v1845 = vmul.f32 %v1827, %v1844
    %v1846 = vadd.f32 %v1845, 0.4994258
    %v1847 = vmul.f32 %v1827, %v1846
    %v1848 = vadd.f32 %v1847, 1.0
    %v1849 = vrcp.pop %v1848
    %v1850 = vmul.f32 %v1848, %v1849
    %v1851 = vsub.f32 1.0, %v1850
    %v1852 = vmul.f32 %v1849, %v1851
    %v1853 = vadd.f32 %v1849, %v1852
    %vm1854 = vweird.f32 %v1848
    %vm1855 = vweird.f32 %v1849
    %vm1856 = vmor %vm1854, %vm1855
    %v1857 = vsel %vm1856, %v1849, %v1853
    %v1858 = vand.u32 2147483647, %v1848
    %vm1859 = vcmp.eq.f32.partialorder %v1858, 8.507059e+37
    %v1860 = vand.u32 %v1848, 2147483648
    %v1861 = vor.u32 1.1754944e-38, %v1860
    %v1862 = vsel %vm1859, %v1861, %v1857
    %v1863 = vmul.f32 %v1838, %v1862
    %v1864 = vmin.f32 %v1863, 1.0
    %v1865 = vmax.f32 %v1864, -1.0
    %v1866 = vmul.f32 %v515, %v515
    %v1867 = vmin.f32 16.0, %v1866
    %v1868 = vmul.f32 %v1867, 2.1237322e-06
    %v1869 = vadd.f32 %v1868, 0.00028619796
    %v1870 = vmul.f32 %v1867, %v1869
    %v1871 = vadd.f32 %v1870, 0.0036580483
    %v1872 = vmul.f32 %v1867, %v1871
    %v1873 = vadd.f32 %v1872, 0.05243302
    %v1874 = vmul.f32 %v1867, %v1873
    %v1875 = vadd.f32 %v1874, 0.18741608
    %v1876 = vmul.f32 %v1867, %v1875
    %v1877 = vadd.f32 %v1876, 1.1283791
    %v1878 = vmul.f32 %v515, %v1877
    %v1879 = vmul.f32 %v1867, 3.8918573e-05
    %v1880 = vadd.f32 %v1879, 0.001143296
    %v1881 = vmul.f32 %v1867, %v1880
    %v1882 = vadd.f32 %v1881, 0.014752088
    %v1883 = vmul.f32 %v1867, %v1882
    %v1884 = vadd.f32 %v1883, 0.112945676
    %v1885 = vmul.f32 %v1867, %v1884
    %v1886 = vadd.f32 %v1885, 0.4994258
    %v1887 = vmul.f32 %v1867, %v1886
    %v1888 = vadd.f32 %v1887, 1.0
    %v1889 = vrcp.pop %v1888
    %v1890 = vmul.f32 %v1888, %v1889
    %v1891 = vsub.f32 1.0, %v1890
    %v1892 = vmul.f32 %v1889, %v1891
    %v1893 = vadd.f32 %v1889, %v1892
    %vm1894 = vweird.f32 %v1888
    %vm1895 = vweird.f32 %v1889
    %vm1896 = vmor %vm1894, %vm1895
    %v1897 = vsel %vm1896, %v1889, %v1893
    %v1898 = vand.u32 2147483647, %v1888
    %vm1899 = vcmp.eq.f32.partialorder %v1898, 8.507059e+37
    %v1900 = vand.u32 %v1888, 2147483648
    %v1901 = vor.u32 1.1754944e-38, %v1900
    %v1902 = vsel %vm1899, %v1901, %v1897
    %v1903 = vmul.f32 %v1878, %v1902
    %v1904 = vmin.f32 %v1903, 1.0
    %v1905 = vmax.f32 %v1904, -1.0
    %v1906 = vmul.f32 %v516, %v516
    %v1907 = vmin.f32 16.0, %v1906
    %v1908 = vmul.f32 %v1907, 2.1237322e-06
    %v1909 = vadd.f32 %v1908, 0.00028619796
    %v1910 = vmul.f32 %v1907, %v1909
    %v1911 = vadd.f32 %v1910, 0.0036580483
    %v1912 = vmul.f32 %v1907, %v1911
    %v1913 = vadd.f32 %v1912, 0.05243302
    %v1914 = vmul.f32 %v1907, %v1913
    %v1915 = vadd.f32 %v1914, 0.18741608
    %v1916 = vmul.f32 %v1907, %v1915
    %v1917 = vadd.f32 %v1916, 1.1283791
    %v1918 = vmul.f32 %v516, %v1917
    %v1919 = vmul.f32 %v1907, 3.8918573e-05
    %v1920 = vadd.f32 %v1919, 0.001143296
    %v1921 = vmul.f32 %v1907, %v1920
    %v1922 = vadd.f32 %v1921, 0.014752088
    %v1923 = vmul.f32 %v1907, %v1922
    %v1924 = vadd.f32 %v1923, 0.112945676
    %v1925 = vmul.f32 %v1907, %v1924
    %v1926 = vadd.f32 %v1925, 0.4994258
    %v1927 = vmul.f32 %v1907, %v1926
    %v1928 = vadd.f32 %v1927, 1.0
    %v1929 = vrcp.pop %v1928
    %v1930 = vmul.f32 %v1928, %v1929
    %v1931 = vsub.f32 1.0, %v1930
    %v1932 = vmul.f32 %v1929, %v1931
    %v1933 = vadd.f32 %v1929, %v1932
    %vm1934 = vweird.f32 %v1928
    %vm1935 = vweird.f32 %v1929
    %vm1936 = vmor %vm1934, %vm1935
    %v1937 = vsel %vm1936, %v1929, %v1933
    %v1938 = vand.u32 2147483647, %v1928
    %vm1939 = vcmp.eq.f32.partialorder %v1938, 8.507059e+37
    %v1940 = vand.u32 %v1928, 2147483648
    %v1941 = vor.u32 1.1754944e-38, %v1940
    %v1942 = vsel %vm1939, %v1941, %v1937
    %v1943 = vmul.f32 %v1918, %v1942
    %v1944 = vmin.f32 %v1943, 1.0
    %v1945 = vmax.f32 %v1944, -1.0
    %v1946 = vmul.f32 %v517, %v517
    %v1947 = vmin.f32 16.0, %v1946
    %v1948 = vmul.f32 %v1947, 2.1237322e-06
    %v1949 = vadd.f32 %v1948, 0.00028619796
    %v1950 = vmul.f32 %v1947, %v1949
    %v1951 = vadd.f32 %v1950, 0.0036580483
    %v1952 = vmul.f32 %v1947, %v1951
    %v1953 = vadd.f32 %v1952, 0.05243302
    %v1954 = vmul.f32 %v1947, %v1953
    %v1955 = vadd.f32 %v1954, 0.18741608
    %v1956 = vmul.f32 %v1947, %v1955
    %v1957 = vadd.f32 %v1956, 1.1283791
    %v1958 = vmul.f32 %v517, %v1957
    %v1959 = vmul.f32 %v1947, 3.8918573e-05
    %v1960 = vadd.f32 %v1959, 0.001143296
    %v1961 = vmul.f32 %v1947, %v1960
    %v1962 = vadd.f32 %v1961, 0.014752088
    %v1963 = vmul.f32 %v1947, %v1962
    %v1964 = vadd.f32 %v1963, 0.112945676
    %v1965 = vmul.f32 %v1947, %v1964
    %v1966 = vadd.f32 %v1965, 0.4994258
    %v1967 = vmul.f32 %v1947, %v1966
    %v1968 = vadd.f32 %v1967, 1.0
    %v1969 = vrcp.pop %v1968
    %v1970 = vmul.f32 %v1968, %v1969
    %v1971 = vsub.f32 1.0, %v1970
    %v1972 = vmul.f32 %v1969, %v1971
    %v1973 = vadd.f32 %v1969, %v1972
    %vm1974 = vweird.f32 %v1968
    %vm1975 = vweird.f32 %v1969
    %vm1976 = vmor %vm1974, %vm1975
    %v1977 = vsel %vm1976, %v1969, %v1973
    %v1978 = vand.u32 2147483647, %v1968
    %vm1979 = vcmp.eq.f32.partialorder %v1978, 8.507059e+37
    %v1980 = vand.u32 %v1968, 2147483648
    %v1981 = vor.u32 1.1754944e-38, %v1980
    %v1982 = vsel %vm1979, %v1981, %v1977
    %v1983 = vmul.f32 %v1958, %v1982
    %v1984 = vmin.f32 %v1983, 1.0
    %v1985 = vmax.f32 %v1984, -1.0
    %v1986 = vmul.f32 %v518, %v518
    %v1987 = vmin.f32 16.0, %v1986
    %v1988 = vmul.f32 %v1987, 2.1237322e-06
    %v1989 = vadd.f32 %v1988, 0.00028619796
    %v1990 = vmul.f32 %v1987, %v1989
    %v1991 = vadd.f32 %v1990, 0.0036580483
    %v1992 = vmul.f32 %v1987, %v1991
    %v1993 = vadd.f32 %v1992, 0.05243302
    %v1994 = vmul.f32 %v1987, %v1993
    %v1995 = vadd.f32 %v1994, 0.18741608
    %v1996 = vmul.f32 %v1987, %v1995
    %v1997 = vadd.f32 %v1996, 1.1283791
    %v1998 = vmul.f32 %v518, %v1997
    %v1999 = vmul.f32 %v1987, 3.8918573e-05
    %v2000 = vadd.f32 %v1999, 0.001143296
    %v2001 = vmul.f32 %v1987, %v2000
    %v2002 = vadd.f32 %v2001, 0.014752088
    %v2003 = vmul.f32 %v1987, %v2002
    %v2004 = vadd.f32 %v2003, 0.112945676
    %v2005 = vmul.f32 %v1987, %v2004
    %v2006 = vadd.f32 %v2005, 0.4994258
    %v2007 = vmul.f32 %v1987, %v2006
    %v2008 = vadd.f32 %v2007, 1.0
    %v2009 = vrcp.pop %v2008
    %v2010 = vmul.f32 %v2008, %v2009
    %v2011 = vsub.f32 1.0, %v2010
    %v2012 = vmul.f32 %v2009, %v2011
    %v2013 = vadd.f32 %v2009, %v2012
    %vm2014 = vweird.f32 %v2008
    %vm2015 = vweird.f32 %v2009
    %vm2016 = vmor %vm2014, %vm2015
    %v2017 = vsel %vm2016, %v2009, %v2013
    %v2018 = vand.u32 2147483647, %v2008
    %vm2019 = vcmp.eq.f32.partialorder %v2018, 8.507059e+37
    %v2020 = vand.u32 %v2008, 2147483648
    %v2021 = vor.u32 1.1754944e-38, %v2020
    %v2022 = vsel %vm2019, %v2021, %v2017
    %v2023 = vmul.f32 %v1998, %v2022
    %v2024 = vmin.f32 %v2023, 1.0
    %v2025 = vmax.f32 %v2024, -1.0
    %v2026 = vmul.f32 %v519, %v519
    %v2027 = vmin.f32 16.0, %v2026
    %v2028 = vmul.f32 %v2027, 2.1237322e-06
    %v2029 = vadd.f32 %v2028, 0.00028619796
    %v2030 = vmul.f32 %v2027, %v2029
    %v2031 = vadd.f32 %v2030, 0.0036580483
    %v2032 = vmul.f32 %v2027, %v2031
    %v2033 = vadd.f32 %v2032, 0.05243302
    %v2034 = vmul.f32 %v2027, %v2033
    %v2035 = vadd.f32 %v2034, 0.18741608
    %v2036 = vmul.f32 %v2027, %v2035
    %v2037 = vadd.f32 %v2036, 1.1283791
    %v2038 = vmul.f32 %v519, %v2037
    %v2039 = vmul.f32 %v2027, 3.8918573e-05
    %v2040 = vadd.f32 %v2039, 0.001143296
    %v2041 = vmul.f32 %v2027, %v2040
    %v2042 = vadd.f32 %v2041, 0.014752088
    %v2043 = vmul.f32 %v2027, %v2042
    %v2044 = vadd.f32 %v2043, 0.112945676
    %v2045 = vmul.f32 %v2027, %v2044
    %v2046 = vadd.f32 %v2045, 0.4994258
    %v2047 = vmul.f32 %v2027, %v2046
    %v2048 = vadd.f32 %v2047, 1.0
    %v2049 = vrcp.pop %v2048
    %v2050 = vmul.f32 %v2048, %v2049
    %v2051 = vsub.f32 1.0, %v2050
    %v2052 = vmul.f32 %v2049, %v2051
    %v2053 = vadd.f32 %v2049, %v2052
    %vm2054 = vweird.f32 %v2048
    %vm2055 = vweird.f32 %v2049
    %vm2056 = vmor %vm2054, %vm2055
    %v2057 = vsel %vm2056, %v2049, %v2053
    %v2058 = vand.u32 2147483647, %v2048
    %vm2059 = vcmp.eq.f32.partialorder %v2058, 8.507059e+37
    %v2060 = vand.u32 %v2048, 2147483648
    %v2061 = vor.u32 1.1754944e-38, %v2060
    %v2062 = vsel %vm2059, %v2061, %v2057
    %v2063 = vmul.f32 %v2038, %v2062
    %v2064 = vmin.f32 %v2063, 1.0
    %v2065 = vmax.f32 %v2064, -1.0
    %v2066 = vmul.f32 %v520, %v520
    %v2067 = vmin.f32 16.0, %v2066
    %v2068 = vmul.f32 %v2067, 2.1237322e-06
    %v2069 = vadd.f32 %v2068, 0.00028619796
    %v2070 = vmul.f32 %v2067, %v2069
    %v2071 = vadd.f32 %v2070, 0.0036580483
    %v2072 = vmul.f32 %v2067, %v2071
    %v2073 = vadd.f32 %v2072, 0.05243302
    %v2074 = vmul.f32 %v2067, %v2073
    %v2075 = vadd.f32 %v2074, 0.18741608
    %v2076 = vmul.f32 %v2067, %v2075
    %v2077 = vadd.f32 %v2076, 1.1283791
    %v2078 = vmul.f32 %v520, %v2077
    %v2079 = vmul.f32 %v2067, 3.8918573e-05
    %v2080 = vadd.f32 %v2079, 0.001143296
    %v2081 = vmul.f32 %v2067, %v2080
    %v2082 = vadd.f32 %v2081, 0.014752088
    %v2083 = vmul.f32 %v2067, %v2082
    %v2084 = vadd.f32 %v2083, 0.112945676
    %v2085 = vmul.f32 %v2067, %v2084
    %v2086 = vadd.f32 %v2085, 0.4994258
    %v2087 = vmul.f32 %v2067, %v2086
    %v2088 = vadd.f32 %v2087, 1.0
    %v2089 = vrcp.pop %v2088
    %v2090 = vmul.f32 %v2088, %v2089
    %v2091 = vsub.f32 1.0, %v2090
    %v2092 = vmul.f32 %v2089, %v2091
    %v2093 = vadd.f32 %v2089, %v2092
    %vm2094 = vweird.f32 %v2088
    %vm2095 = vweird.f32 %v2089
    %vm2096 = vmor %vm2094, %vm2095
    %v2097 = vsel %vm2096, %v2089, %v2093
    %v2098 = vand.u32 2147483647, %v2088
    %vm2099 = vcmp.eq.f32.partialorder %v2098, 8.507059e+37
    %v2100 = vand.u32 %v2088, 2147483648
    %v2101 = vor.u32 1.1754944e-38, %v2100
    %v2102 = vsel %vm2099, %v2101, %v2097
    %v2103 = vmul.f32 %v2078, %v2102
    %v2104 = vmin.f32 %v2103, 1.0
    %v2105 = vmax.f32 %v2104, -1.0
    %v2106 = vmul.f32 %v521, %v521
    %v2107 = vmin.f32 16.0, %v2106
    %v2108 = vmul.f32 %v2107, 2.1237322e-06
    %v2109 = vadd.f32 %v2108, 0.00028619796
    %v2110 = vmul.f32 %v2107, %v2109
    %v2111 = vadd.f32 %v2110, 0.0036580483
    %v2112 = vmul.f32 %v2107, %v2111
    %v2113 = vadd.f32 %v2112, 0.05243302
    %v2114 = vmul.f32 %v2107, %v2113
    %v2115 = vadd.f32 %v2114, 0.18741608
    %v2116 = vmul.f32 %v2107, %v2115
    %v2117 = vadd.f32 %v2116, 1.1283791
    %v2118 = vmul.f32 %v521, %v2117
    %v2119 = vmul.f32 %v2107, 3.8918573e-05
    %v2120 = vadd.f32 %v2119, 0.001143296
    %v2121 = vmul.f32 %v2107, %v2120
    %v2122 = vadd.f32 %v2121, 0.014752088
    %v2123 = vmul.f32 %v2107, %v2122
    %v2124 = vadd.f32 %v2123, 0.112945676
    %v2125 = vmul.f32 %v2107, %v2124
    %v2126 = vadd.f32 %v2125, 0.4994258
    %v2127 = vmul.f32 %v2107, %v2126
    %v2128 = vadd.f32 %v2127, 1.0
    %v2129 = vrcp.pop %v2128
    %v2130 = vmul.f32 %v2128, %v2129
    %v2131 = vsub.f32 1.0, %v2130
    %v2132 = vmul.f32 %v2129, %v2131
    %v2133 = vadd.f32 %v2129, %v2132
    %vm2134 = vweird.f32 %v2128
    %vm2135 = vweird.f32 %v2129
    %vm2136 = vmor %vm2134, %vm2135
    %v2137 = vsel %vm2136, %v2129, %v2133
    %v2138 = vand.u32 2147483647, %v2128
    %vm2139 = vcmp.eq.f32.partialorder %v2138, 8.507059e+37
    %v2140 = vand.u32 %v2128, 2147483648
    %v2141 = vor.u32 1.1754944e-38, %v2140
    %v2142 = vsel %vm2139, %v2141, %v2137
    %v2143 = vmul.f32 %v2118, %v2142
    %v2144 = vmin.f32 %v2143, 1.0
    %v2145 = vmax.f32 %v2144, -1.0
    %v2146 = vmul.f32 %v522, %v522
    %v2147 = vmin.f32 16.0, %v2146
    %v2148 = vmul.f32 %v2147, 2.1237322e-06
    %v2149 = vadd.f32 %v2148, 0.00028619796
    %v2150 = vmul.f32 %v2147, %v2149
    %v2151 = vadd.f32 %v2150, 0.0036580483
    %v2152 = vmul.f32 %v2147, %v2151
    %v2153 = vadd.f32 %v2152, 0.05243302
    %v2154 = vmul.f32 %v2147, %v2153
    %v2155 = vadd.f32 %v2154, 0.18741608
    %v2156 = vmul.f32 %v2147, %v2155
    %v2157 = vadd.f32 %v2156, 1.1283791
    %v2158 = vmul.f32 %v522, %v2157
    %v2159 = vmul.f32 %v2147, 3.8918573e-05
    %v2160 = vadd.f32 %v2159, 0.001143296
    %v2161 = vmul.f32 %v2147, %v2160
    %v2162 = vadd.f32 %v2161, 0.014752088
    %v2163 = vmul.f32 %v2147, %v2162
    %v2164 = vadd.f32 %v2163, 0.112945676
    %v2165 = vmul.f32 %v2147, %v2164
    %v2166 = vadd.f32 %v2165, 0.4994258
    %v2167 = vmul.f32 %v2147, %v2166
    %v2168 = vadd.f32 %v2167, 1.0
    %v2169 = vrcp.pop %v2168
    %v2170 = vmul.f32 %v2168, %v2169
    %v2171 = vsub.f32 1.0, %v2170
    %v2172 = vmul.f32 %v2169, %v2171
    %v2173 = vadd.f32 %v2169, %v2172
    %vm2174 = vweird.f32 %v2168
    %vm2175 = vweird.f32 %v2169
    %vm2176 = vmor %vm2174, %vm2175
    %v2177 = vsel %vm2176, %v2169, %v2173
    %v2178 = vand.u32 2147483647, %v2168
    %vm2179 = vcmp.eq.f32.partialorder %v2178, 8.507059e+37
    %v2180 = vand.u32 %v2168, 2147483648
    %v2181 = vor.u32 1.1754944e-38, %v2180
    %v2182 = vsel %vm2179, %v2181, %v2177
    %v2183 = vmul.f32 %v2158, %v2182
    %v2184 = vmin.f32 %v2183, 1.0
    %v2185 = vmax.f32 %v2184, -1.0
    %v2186 = vmul.f32 %v523, %v523
    %v2187 = vmin.f32 16.0, %v2186
    %v2188 = vmul.f32 %v2187, 2.1237322e-06
    %v2189 = vadd.f32 %v2188, 0.00028619796
    %v2190 = vmul.f32 %v2187, %v2189
    %v2191 = vadd.f32 %v2190, 0.0036580483
    %v2192 = vmul.f32 %v2187, %v2191
    %v2193 = vadd.f32 %v2192, 0.05243302
    %v2194 = vmul.f32 %v2187, %v2193
    %v2195 = vadd.f32 %v2194, 0.18741608
    %v2196 = vmul.f32 %v2187, %v2195
    %v2197 = vadd.f32 %v2196, 1.1283791
    %v2198 = vmul.f32 %v523, %v2197
    %v2199 = vmul.f32 %v2187, 3.8918573e-05
    %v2200 = vadd.f32 %v2199, 0.001143296
    %v2201 = vmul.f32 %v2187, %v2200
    %v2202 = vadd.f32 %v2201, 0.014752088
    %v2203 = vmul.f32 %v2187, %v2202
    %v2204 = vadd.f32 %v2203, 0.112945676
    %v2205 = vmul.f32 %v2187, %v2204
    %v2206 = vadd.f32 %v2205, 0.4994258
    %v2207 = vmul.f32 %v2187, %v2206
    %v2208 = vadd.f32 %v2207, 1.0
    %v2209 = vrcp.pop %v2208
    %v2210 = vmul.f32 %v2208, %v2209
    %v2211 = vsub.f32 1.0, %v2210
    %v2212 = vmul.f32 %v2209, %v2211
    %v2213 = vadd.f32 %v2209, %v2212
    %vm2214 = vweird.f32 %v2208
    %vm2215 = vweird.f32 %v2209
    %vm2216 = vmor %vm2214, %vm2215
    %v2217 = vsel %vm2216, %v2209, %v2213
    %v2218 = vand.u32 2147483647, %v2208
    %vm2219 = vcmp.eq.f32.partialorder %v2218, 8.507059e+37
    %v2220 = vand.u32 %v2208, 2147483648
    %v2221 = vor.u32 1.1754944e-38, %v2220
    %v2222 = vsel %vm2219, %v2221, %v2217
    %v2223 = vmul.f32 %v2198, %v2222
    %v2224 = vmin.f32 %v2223, 1.0
    %v2225 = vmax.f32 %v2224, -1.0
    %v2226 = vmul.f32 %v524, %v524
    %v2227 = vmin.f32 16.0, %v2226
    %v2228 = vmul.f32 %v2227, 2.1237322e-06
    %v2229 = vadd.f32 %v2228, 0.00028619796
    %v2230 = vmul.f32 %v2227, %v2229
    %v2231 = vadd.f32 %v2230, 0.0036580483
    %v2232 = vmul.f32 %v2227, %v2231
    %v2233 = vadd.f32 %v2232, 0.05243302
    %v2234 = vmul.f32 %v2227, %v2233
    %v2235 = vadd.f32 %v2234, 0.18741608
    %v2236 = vmul.f32 %v2227, %v2235
    %v2237 = vadd.f32 %v2236, 1.1283791
    %v2238 = vmul.f32 %v524, %v2237
    %v2239 = vmul.f32 %v2227, 3.8918573e-05
    %v2240 = vadd.f32 %v2239, 0.001143296
    %v2241 = vmul.f32 %v2227, %v2240
    %v2242 = vadd.f32 %v2241, 0.014752088
    %v2243 = vmul.f32 %v2227, %v2242
    %v2244 = vadd.f32 %v2243, 0.112945676
    %v2245 = vmul.f32 %v2227, %v2244
    %v2246 = vadd.f32 %v2245, 0.4994258
    %v2247 = vmul.f32 %v2227, %v2246
    %v2248 = vadd.f32 %v2247, 1.0
    %v2249 = vrcp.pop %v2248
    %v2250 = vmul.f32 %v2248, %v2249
    %v2251 = vsub.f32 1.0, %v2250
    %v2252 = vmul.f32 %v2249, %v2251
    %v2253 = vadd.f32 %v2249, %v2252
    %vm2254 = vweird.f32 %v2248
    %vm2255 = vweird.f32 %v2249
    %vm2256 = vmor %vm2254, %vm2255
    %v2257 = vsel %vm2256, %v2249, %v2253
    %v2258 = vand.u32 2147483647, %v2248
    %vm2259 = vcmp.eq.f32.partialorder %v2258, 8.507059e+37
    %v2260 = vand.u32 %v2248, 2147483648
    %v2261 = vor.u32 1.1754944e-38, %v2260
    %v2262 = vsel %vm2259, %v2261, %v2257
    %v2263 = vmul.f32 %v2238, %v2262
    %v2264 = vmin.f32 %v2263, 1.0
    %v2265 = vmax.f32 %v2264, -1.0
    %v2266 = vmul.f32 %v525, %v525
    %v2267 = vmin.f32 16.0, %v2266
    %v2268 = vmul.f32 %v2267, 2.1237322e-06
    %v2269 = vadd.f32 %v2268, 0.00028619796
    %v2270 = vmul.f32 %v2267, %v2269
    %v2271 = vadd.f32 %v2270, 0.0036580483
    %v2272 = vmul.f32 %v2267, %v2271
    %v2273 = vadd.f32 %v2272, 0.05243302
    %v2274 = vmul.f32 %v2267, %v2273
    %v2275 = vadd.f32 %v2274, 0.18741608
    %v2276 = vmul.f32 %v2267, %v2275
    %v2277 = vadd.f32 %v2276, 1.1283791
    %v2278 = vmul.f32 %v525, %v2277
    %v2279 = vmul.f32 %v2267, 3.8918573e-05
    %v2280 = vadd.f32 %v2279, 0.001143296
    %v2281 = vmul.f32 %v2267, %v2280
    %v2282 = vadd.f32 %v2281, 0.014752088
    %v2283 = vmul.f32 %v2267, %v2282
    %v2284 = vadd.f32 %v2283, 0.112945676
    %v2285 = vmul.f32 %v2267, %v2284
    %v2286 = vadd.f32 %v2285, 0.4994258
    %v2287 = vmul.f32 %v2267, %v2286
    %v2288 = vadd.f32 %v2287, 1.0
    %v2289 = vrcp.pop %v2288
    %v2290 = vmul.f32 %v2288, %v2289
    %v2291 = vsub.f32 1.0, %v2290
    %v2292 = vmul.f32 %v2289, %v2291
    %v2293 = vadd.f32 %v2289, %v2292
    %vm2294 = vweird.f32 %v2288
    %vm2295 = vweird.f32 %v2289
    %vm2296 = vmor %vm2294, %vm2295
    %v2297 = vsel %vm2296, %v2289, %v2293
    %v2298 = vand.u32 2147483647, %v2288
    %vm2299 = vcmp.eq.f32.partialorder %v2298, 8.507059e+37
    %v2300 = vand.u32 %v2288, 2147483648
    %v2301 = vor.u32 1.1754944e-38, %v2300
    %v2302 = vsel %vm2299, %v2301, %v2297
    %v2303 = vmul.f32 %v2278, %v2302
    %v2304 = vmin.f32 %v2303, 1.0
    %v2305 = vmax.f32 %v2304, -1.0
    %v2306 = vmul.f32 %v526, %v526
    %v2307 = vmin.f32 16.0, %v2306
    %v2308 = vmul.f32 %v2307, 2.1237322e-06
    %v2309 = vadd.f32 %v2308, 0.00028619796
    %v2310 = vmul.f32 %v2307, %v2309
    %v2311 = vadd.f32 %v2310, 0.0036580483
    %v2312 = vmul.f32 %v2307, %v2311
    %v2313 = vadd.f32 %v2312, 0.05243302
    %v2314 = vmul.f32 %v2307, %v2313
    %v2315 = vadd.f32 %v2314, 0.18741608
    %v2316 = vmul.f32 %v2307, %v2315
    %v2317 = vadd.f32 %v2316, 1.1283791
    %v2318 = vmul.f32 %v526, %v2317
    %v2319 = vmul.f32 %v2307, 3.8918573e-05
    %v2320 = vadd.f32 %v2319, 0.001143296
    %v2321 = vmul.f32 %v2307, %v2320
    %v2322 = vadd.f32 %v2321, 0.014752088
    %v2323 = vmul.f32 %v2307, %v2322
    %v2324 = vadd.f32 %v2323, 0.112945676
    %v2325 = vmul.f32 %v2307, %v2324
    %v2326 = vadd.f32 %v2325, 0.4994258
    %v2327 = vmul.f32 %v2307, %v2326
    %v2328 = vadd.f32 %v2327, 1.0
    %v2329 = vrcp.pop %v2328
    %v2330 = vmul.f32 %v2328, %v2329
    %v2331 = vsub.f32 1.0, %v2330
    %v2332 = vmul.f32 %v2329, %v2331
    %v2333 = vadd.f32 %v2329, %v2332
    %vm2334 = vweird.f32 %v2328
    %vm2335 = vweird.f32 %v2329
    %vm2336 = vmor %vm2334, %vm2335
    %v2337 = vsel %vm2336, %v2329, %v2333
    %v2338 = vand.u32 2147483647, %v2328
    %vm2339 = vcmp.eq.f32.partialorder %v2338, 8.507059e+37
    %v2340 = vand.u32 %v2328, 2147483648
    %v2341 = vor.u32 1.1754944e-38, %v2340
    %v2342 = vsel %vm2339, %v2341, %v2337
    %v2343 = vmul.f32 %v2318, %v2342
    %v2344 = vmin.f32 %v2343, 1.0
    %v2345 = vmax.f32 %v2344, -1.0
    %v2346 = vmul.f32 %v527, %v527
    %v2347 = vmin.f32 16.0, %v2346
    %v2348 = vmul.f32 %v2347, 2.1237322e-06
    %v2349 = vadd.f32 %v2348, 0.00028619796
    %v2350 = vmul.f32 %v2347, %v2349
    %v2351 = vadd.f32 %v2350, 0.0036580483
    %v2352 = vmul.f32 %v2347, %v2351
    %v2353 = vadd.f32 %v2352, 0.05243302
    %v2354 = vmul.f32 %v2347, %v2353
    %v2355 = vadd.f32 %v2354, 0.18741608
    %v2356 = vmul.f32 %v2347, %v2355
    %v2357 = vadd.f32 %v2356, 1.1283791
    %v2358 = vmul.f32 %v527, %v2357
    %v2359 = vmul.f32 %v2347, 3.8918573e-05
    %v2360 = vadd.f32 %v2359, 0.001143296
    %v2361 = vmul.f32 %v2347, %v2360
    %v2362 = vadd.f32 %v2361, 0.014752088
    %v2363 = vmul.f32 %v2347, %v2362
    %v2364 = vadd.f32 %v2363, 0.112945676
    %v2365 = vmul.f32 %v2347, %v2364
    %v2366 = vadd.f32 %v2365, 0.4994258
    %v2367 = vmul.f32 %v2347, %v2366
    %v2368 = vadd.f32 %v2367, 1.0
    %v2369 = vrcp.pop %v2368
    %v2370 = vmul.f32 %v2368, %v2369
    %v2371 = vsub.f32 1.0, %v2370
    %v2372 = vmul.f32 %v2369, %v2371
    %v2373 = vadd.f32 %v2369, %v2372
    %vm2374 = vweird.f32 %v2368
    %vm2375 = vweird.f32 %v2369
    %vm2376 = vmor %vm2374, %vm2375
    %v2377 = vsel %vm2376, %v2369, %v2373
    %v2378 = vand.u32 2147483647, %v2368
    %vm2379 = vcmp.eq.f32.partialorder %v2378, 8.507059e+37
    %v2380 = vand.u32 %v2368, 2147483648
    %v2381 = vor.u32 1.1754944e-38, %v2380
    %v2382 = vsel %vm2379, %v2381, %v2377
    %v2383 = vmul.f32 %v2358, %v2382
    %v2384 = vmin.f32 %v2383, 1.0
    %v2385 = vmax.f32 %v2384, -1.0
    %v2386 = vmul.f32 %v528, %v528
    %v2387 = vmin.f32 16.0, %v2386
    %v2388 = vmul.f32 %v2387, 2.1237322e-06
    %v2389 = vadd.f32 %v2388, 0.00028619796
    %v2390 = vmul.f32 %v2387, %v2389
    %v2391 = vadd.f32 %v2390, 0.0036580483
    %v2392 = vmul.f32 %v2387, %v2391
    %v2393 = vadd.f32 %v2392, 0.05243302
    %v2394 = vmul.f32 %v2387, %v2393
    %v2395 = vadd.f32 %v2394, 0.18741608
    %v2396 = vmul.f32 %v2387, %v2395
    %v2397 = vadd.f32 %v2396, 1.1283791
    %v2398 = vmul.f32 %v528, %v2397
    %v2399 = vmul.f32 %v2387, 3.8918573e-05
    %v2400 = vadd.f32 %v2399, 0.001143296
    %v2401 = vmul.f32 %v2387, %v2400
    %v2402 = vadd.f32 %v2401, 0.014752088
    %v2403 = vmul.f32 %v2387, %v2402
    %v2404 = vadd.f32 %v2403, 0.112945676
    %v2405 = vmul.f32 %v2387, %v2404
    %v2406 = vadd.f32 %v2405, 0.4994258
    %v2407 = vmul.f32 %v2387, %v2406
    %v2408 = vadd.f32 %v2407, 1.0
    %v2409 = vrcp.pop %v2408
    %v2410 = vmul.f32 %v2408, %v2409
    %v2411 = vsub.f32 1.0, %v2410
    %v2412 = vmul.f32 %v2409, %v2411
    %v2413 = vadd.f32 %v2409, %v2412
    %vm2414 = vweird.f32 %v2408
    %vm2415 = vweird.f32 %v2409
    %vm2416 = vmor %vm2414, %vm2415
    %v2417 = vsel %vm2416, %v2409, %v2413
    %v2418 = vand.u32 2147483647, %v2408
    %vm2419 = vcmp.eq.f32.partialorder %v2418, 8.507059e+37
    %v2420 = vand.u32 %v2408, 2147483648
    %v2421 = vor.u32 1.1754944e-38, %v2420
    %v2422 = vsel %vm2419, %v2421, %v2417
    %v2423 = vmul.f32 %v2398, %v2422
    %v2424 = vmin.f32 %v2423, 1.0
    %v2425 = vmax.f32 %v2424, -1.0
    %v2426 = vmul.f32 %v529, %v529
    %v2427 = vmin.f32 16.0, %v2426
    %v2428 = vmul.f32 %v2427, 2.1237322e-06
    %v2429 = vadd.f32 %v2428, 0.00028619796
    %v2430 = vmul.f32 %v2427, %v2429
    %v2431 = vadd.f32 %v2430, 0.0036580483
    %v2432 = vmul.f32 %v2427, %v2431
    %v2433 = vadd.f32 %v2432, 0.05243302
    %v2434 = vmul.f32 %v2427, %v2433
    %v2435 = vadd.f32 %v2434, 0.18741608
    %v2436 = vmul.f32 %v2427, %v2435
    %v2437 = vadd.f32 %v2436, 1.1283791
    %v2438 = vmul.f32 %v529, %v2437
    %v2439 = vmul.f32 %v2427, 3.8918573e-05
    %v2440 = vadd.f32 %v2439, 0.001143296
    %v2441 = vmul.f32 %v2427, %v2440
    %v2442 = vadd.f32 %v2441, 0.014752088
    %v2443 = vmul.f32 %v2427, %v2442
    %v2444 = vadd.f32 %v2443, 0.112945676
    %v2445 = vmul.f32 %v2427, %v2444
    %v2446 = vadd.f32 %v2445, 0.4994258
    %v2447 = vmul.f32 %v2427, %v2446
    %v2448 = vadd.f32 %v2447, 1.0
    %v2449 = vrcp.pop %v2448
    %v2450 = vmul.f32 %v2448, %v2449
    %v2451 = vsub.f32 1.0, %v2450
    %v2452 = vmul.f32 %v2449, %v2451
    %v2453 = vadd.f32 %v2449, %v2452
    %vm2454 = vweird.f32 %v2448
    %vm2455 = vweird.f32 %v2449
    %vm2456 = vmor %vm2454, %vm2455
    %v2457 = vsel %vm2456, %v2449, %v2453
    %v2458 = vand.u32 2147483647, %v2448
    %vm2459 = vcmp.eq.f32.partialorder %v2458, 8.507059e+37
    %v2460 = vand.u32 %v2448, 2147483648
    %v2461 = vor.u32 1.1754944e-38, %v2460
    %v2462 = vsel %vm2459, %v2461, %v2457
    %v2463 = vmul.f32 %v2438, %v2462
    %v2464 = vmin.f32 %v2463, 1.0
    %v2465 = vmax.f32 %v2464, -1.0
    %v2466 = vmul.f32 %v530, %v530
    %v2467 = vmin.f32 16.0, %v2466
    %v2468 = vmul.f32 %v2467, 2.1237322e-06
    %v2469 = vadd.f32 %v2468, 0.00028619796
    %v2470 = vmul.f32 %v2467, %v2469
    %v2471 = vadd.f32 %v2470, 0.0036580483
    %v2472 = vmul.f32 %v2467, %v2471
    %v2473 = vadd.f32 %v2472, 0.05243302
    %v2474 = vmul.f32 %v2467, %v2473
    %v2475 = vadd.f32 %v2474, 0.18741608
    %v2476 = vmul.f32 %v2467, %v2475
    %v2477 = vadd.f32 %v2476, 1.1283791
    %v2478 = vmul.f32 %v530, %v2477
    %v2479 = vmul.f32 %v2467, 3.8918573e-05
    %v2480 = vadd.f32 %v2479, 0.001143296
    %v2481 = vmul.f32 %v2467, %v2480
    %v2482 = vadd.f32 %v2481, 0.014752088
    %v2483 = vmul.f32 %v2467, %v2482
    %v2484 = vadd.f32 %v2483, 0.112945676
    %v2485 = vmul.f32 %v2467, %v2484
    %v2486 = vadd.f32 %v2485, 0.4994258
    %v2487 = vmul.f32 %v2467, %v2486
    %v2488 = vadd.f32 %v2487, 1.0
    %v2489 = vrcp.pop %v2488
    %v2490 = vmul.f32 %v2488, %v2489
    %v2491 = vsub.f32 1.0, %v2490
    %v2492 = vmul.f32 %v2489, %v2491
    %v2493 = vadd.f32 %v2489, %v2492
    %vm2494 = vweird.f32 %v2488
    %vm2495 = vweird.f32 %v2489
    %vm2496 = vmor %vm2494, %vm2495
    %v2497 = vsel %vm2496, %v2489, %v2493
    %v2498 = vand.u32 2147483647, %v2488
    %vm2499 = vcmp.eq.f32.partialorder %v2498, 8.507059e+37
    %v2500 = vand.u32 %v2488, 2147483648
    %v2501 = vor.u32 1.1754944e-38, %v2500
    %v2502 = vsel %vm2499, %v2501, %v2497
    %v2503 = vmul.f32 %v2478, %v2502
    %v2504 = vmin.f32 %v2503, 1.0
    %v2505 = vmax.f32 %v2504, -1.0
    %v2506 = vmul.f32 %v531, %v531
    %v2507 = vmin.f32 16.0, %v2506
    %v2508 = vmul.f32 %v2507, 2.1237322e-06
    %v2509 = vadd.f32 %v2508, 0.00028619796
    %v2510 = vmul.f32 %v2507, %v2509
    %v2511 = vadd.f32 %v2510, 0.0036580483
    %v2512 = vmul.f32 %v2507, %v2511
    %v2513 = vadd.f32 %v2512, 0.05243302
    %v2514 = vmul.f32 %v2507, %v2513
    %v2515 = vadd.f32 %v2514, 0.18741608
    %v2516 = vmul.f32 %v2507, %v2515
    %v2517 = vadd.f32 %v2516, 1.1283791
    %v2518 = vmul.f32 %v531, %v2517
    %v2519 = vmul.f32 %v2507, 3.8918573e-05
    %v2520 = vadd.f32 %v2519, 0.001143296
    %v2521 = vmul.f32 %v2507, %v2520
    %v2522 = vadd.f32 %v2521, 0.014752088
    %v2523 = vmul.f32 %v2507, %v2522
    %v2524 = vadd.f32 %v2523, 0.112945676
    %v2525 = vmul.f32 %v2507, %v2524
    %v2526 = vadd.f32 %v2525, 0.4994258
    %v2527 = vmul.f32 %v2507, %v2526
    %v2528 = vadd.f32 %v2527, 1.0
    %v2529 = vrcp.pop %v2528
    %v2530 = vmul.f32 %v2528, %v2529
    %v2531 = vsub.f32 1.0, %v2530
    %v2532 = vmul.f32 %v2529, %v2531
    %v2533 = vadd.f32 %v2529, %v2532
    %vm2534 = vweird.f32 %v2528
    %vm2535 = vweird.f32 %v2529
    %vm2536 = vmor %vm2534, %vm2535
    %v2537 = vsel %vm2536, %v2529, %v2533
    %v2538 = vand.u32 2147483647, %v2528
    %vm2539 = vcmp.eq.f32.partialorder %v2538, 8.507059e+37
    %v2540 = vand.u32 %v2528, 2147483648
    %v2541 = vor.u32 1.1754944e-38, %v2540
    %v2542 = vsel %vm2539, %v2541, %v2537
    %v2543 = vmul.f32 %v2518, %v2542
    %v2544 = vmin.f32 %v2543, 1.0
    %v2545 = vmax.f32 %v2544, -1.0
    %v2546 = vmul.f32 %v532, %v532
    %v2547 = vmin.f32 16.0, %v2546
    %v2548 = vmul.f32 %v2547, 2.1237322e-06
    %v2549 = vadd.f32 %v2548, 0.00028619796
    %v2550 = vmul.f32 %v2547, %v2549
    %v2551 = vadd.f32 %v2550, 0.0036580483
    %v2552 = vmul.f32 %v2547, %v2551
    %v2553 = vadd.f32 %v2552, 0.05243302
    %v2554 = vmul.f32 %v2547, %v2553
    %v2555 = vadd.f32 %v2554, 0.18741608
    %v2556 = vmul.f32 %v2547, %v2555
    %v2557 = vadd.f32 %v2556, 1.1283791
    %v2558 = vmul.f32 %v532, %v2557
    %v2559 = vmul.f32 %v2547, 3.8918573e-05
    %v2560 = vadd.f32 %v2559, 0.001143296
    %v2561 = vmul.f32 %v2547, %v2560
    %v2562 = vadd.f32 %v2561, 0.014752088
    %v2563 = vmul.f32 %v2547, %v2562
    %v2564 = vadd.f32 %v2563, 0.112945676
    %v2565 = vmul.f32 %v2547, %v2564
    %v2566 = vadd.f32 %v2565, 0.4994258
    %v2567 = vmul.f32 %v2547, %v2566
    %v2568 = vadd.f32 %v2567, 1.0
    %v2569 = vrcp.pop %v2568
    %v2570 = vmul.f32 %v2568, %v2569
    %v2571 = vsub.f32 1.0, %v2570
    %v2572 = vmul.f32 %v2569, %v2571
    %v2573 = vadd.f32 %v2569, %v2572
    %vm2574 = vweird.f32 %v2568
    %vm2575 = vweird.f32 %v2569
    %vm2576 = vmor %vm2574, %vm2575
    %v2577 = vsel %vm2576, %v2569, %v2573
    %v2578 = vand.u32 2147483647, %v2568
    %vm2579 = vcmp.eq.f32.partialorder %v2578, 8.507059e+37
    %v2580 = vand.u32 %v2568, 2147483648
    %v2581 = vor.u32 1.1754944e-38, %v2580
    %v2582 = vsel %vm2579, %v2581, %v2577
    %v2583 = vmul.f32 %v2558, %v2582
    %v2584 = vmin.f32 %v2583, 1.0
    %v2585 = vmax.f32 %v2584, -1.0
    %v2586 = vmul.f32 %v533, %v533
    %v2587 = vmin.f32 16.0, %v2586
    %v2588 = vmul.f32 %v2587, 2.1237322e-06
    %v2589 = vadd.f32 %v2588, 0.00028619796
    %v2590 = vmul.f32 %v2587, %v2589
    %v2591 = vadd.f32 %v2590, 0.0036580483
    %v2592 = vmul.f32 %v2587, %v2591
    %v2593 = vadd.f32 %v2592, 0.05243302
    %v2594 = vmul.f32 %v2587, %v2593
    %v2595 = vadd.f32 %v2594, 0.18741608
    %v2596 = vmul.f32 %v2587, %v2595
    %v2597 = vadd.f32 %v2596, 1.1283791
    %v2598 = vmul.f32 %v533, %v2597
    %v2599 = vmul.f32 %v2587, 3.8918573e-05
    %v2600 = vadd.f32 %v2599, 0.001143296
    %v2601 = vmul.f32 %v2587, %v2600
    %v2602 = vadd.f32 %v2601, 0.014752088
    %v2603 = vmul.f32 %v2587, %v2602
    %v2604 = vadd.f32 %v2603, 0.112945676
    %v2605 = vmul.f32 %v2587, %v2604
    %v2606 = vadd.f32 %v2605, 0.4994258
    %v2607 = vmul.f32 %v2587, %v2606
    %v2608 = vadd.f32 %v2607, 1.0
    %v2609 = vrcp.pop %v2608
    %v2610 = vmul.f32 %v2608, %v2609
    %v2611 = vsub.f32 1.0, %v2610
    %v2612 = vmul.f32 %v2609, %v2611
    %v2613 = vadd.f32 %v2609, %v2612
    %vm2614 = vweird.f32 %v2608
    %vm2615 = vweird.f32 %v2609
    %vm2616 = vmor %vm2614, %vm2615
    %v2617 = vsel %vm2616, %v2609, %v2613
    %v2618 = vand.u32 2147483647, %v2608
    %vm2619 = vcmp.eq.f32.partialorder %v2618, 8.507059e+37
    %v2620 = vand.u32 %v2608, 2147483648
    %v2621 = vor.u32 1.1754944e-38, %v2620
    %v2622 = vsel %vm2619, %v2621, %v2617
    %v2623 = vmul.f32 %v2598, %v2622
    %v2624 = vmin.f32 %v2623, 1.0
    %v2625 = vmax.f32 %v2624, -1.0
    %v2626 = vmul.f32 %v534, %v534
    %v2627 = vmin.f32 16.0, %v2626
    %v2628 = vmul.f32 %v2627, 2.1237322e-06
    %v2629 = vadd.f32 %v2628, 0.00028619796
    %v2630 = vmul.f32 %v2627, %v2629
    %v2631 = vadd.f32 %v2630, 0.0036580483
    %v2632 = vmul.f32 %v2627, %v2631
    %v2633 = vadd.f32 %v2632, 0.05243302
    %v2634 = vmul.f32 %v2627, %v2633
    %v2635 = vadd.f32 %v2634, 0.18741608
    %v2636 = vmul.f32 %v2627, %v2635
    %v2637 = vadd.f32 %v2636, 1.1283791
    %v2638 = vmul.f32 %v534, %v2637
    %v2639 = vmul.f32 %v2627, 3.8918573e-05
    %v2640 = vadd.f32 %v2639, 0.001143296
    %v2641 = vmul.f32 %v2627, %v2640
    %v2642 = vadd.f32 %v2641, 0.014752088
    %v2643 = vmul.f32 %v2627, %v2642
    %v2644 = vadd.f32 %v2643, 0.112945676
    %v2645 = vmul.f32 %v2627, %v2644
    %v2646 = vadd.f32 %v2645, 0.4994258
    %v2647 = vmul.f32 %v2627, %v2646
    %v2648 = vadd.f32 %v2647, 1.0
    %v2649 = vrcp.pop %v2648
    %v2650 = vmul.f32 %v2648, %v2649
    %v2651 = vsub.f32 1.0, %v2650
    %v2652 = vmul.f32 %v2649, %v2651
    %v2653 = vadd.f32 %v2649, %v2652
    %vm2654 = vweird.f32 %v2648
    %vm2655 = vweird.f32 %v2649
    %vm2656 = vmor %vm2654, %vm2655
    %v2657 = vsel %vm2656, %v2649, %v2653
    %v2658 = vand.u32 2147483647, %v2648
    %vm2659 = vcmp.eq.f32.partialorder %v2658, 8.507059e+37
    %v2660 = vand.u32 %v2648, 2147483648
    %v2661 = vor.u32 1.1754944e-38, %v2660
    %v2662 = vsel %vm2659, %v2661, %v2657
    %v2663 = vmul.f32 %v2638, %v2662
    %v2664 = vmin.f32 %v2663, 1.0
    %v2665 = vmax.f32 %v2664, -1.0
    %v2666 = vmul.f32 %v535, %v535
    %v2667 = vmin.f32 16.0, %v2666
    %v2668 = vmul.f32 %v2667, 2.1237322e-06
    %v2669 = vadd.f32 %v2668, 0.00028619796
    %v2670 = vmul.f32 %v2667, %v2669
    %v2671 = vadd.f32 %v2670, 0.0036580483
    %v2672 = vmul.f32 %v2667, %v2671
    %v2673 = vadd.f32 %v2672, 0.05243302
    %v2674 = vmul.f32 %v2667, %v2673
    %v2675 = vadd.f32 %v2674, 0.18741608
    %v2676 = vmul.f32 %v2667, %v2675
    %v2677 = vadd.f32 %v2676, 1.1283791
    %v2678 = vmul.f32 %v535, %v2677
    %v2679 = vmul.f32 %v2667, 3.8918573e-05
    %v2680 = vadd.f32 %v2679, 0.001143296
    %v2681 = vmul.f32 %v2667, %v2680
    %v2682 = vadd.f32 %v2681, 0.014752088
    %v2683 = vmul.f32 %v2667, %v2682
    %v2684 = vadd.f32 %v2683, 0.112945676
    %v2685 = vmul.f32 %v2667, %v2684
    %v2686 = vadd.f32 %v2685, 0.4994258
    %v2687 = vmul.f32 %v2667, %v2686
    %v2688 = vadd.f32 %v2687, 1.0
    %v2689 = vrcp.pop %v2688
    %v2690 = vmul.f32 %v2688, %v2689
    %v2691 = vsub.f32 1.0, %v2690
    %v2692 = vmul.f32 %v2689, %v2691
    %v2693 = vadd.f32 %v2689, %v2692
    %vm2694 = vweird.f32 %v2688
    %vm2695 = vweird.f32 %v2689
    %vm2696 = vmor %vm2694, %vm2695
    %v2697 = vsel %vm2696, %v2689, %v2693
    %v2698 = vand.u32 2147483647, %v2688
    %vm2699 = vcmp.eq.f32.partialorder %v2698, 8.507059e+37
    %v2700 = vand.u32 %v2688, 2147483648
    %v2701 = vor.u32 1.1754944e-38, %v2700
    %v2702 = vsel %vm2699, %v2701, %v2697
    %v2703 = vmul.f32 %v2678, %v2702
    %v2704 = vmin.f32 %v2703, 1.0
    %v2705 = vmax.f32 %v2704, -1.0
    %v2706 = vmul.f32 %v536, %v536
    %v2707 = vmin.f32 16.0, %v2706
    %v2708 = vmul.f32 %v2707, 2.1237322e-06
    %v2709 = vadd.f32 %v2708, 0.00028619796
    %v2710 = vmul.f32 %v2707, %v2709
    %v2711 = vadd.f32 %v2710, 0.0036580483
    %v2712 = vmul.f32 %v2707, %v2711
    %v2713 = vadd.f32 %v2712, 0.05243302
    %v2714 = vmul.f32 %v2707, %v2713
    %v2715 = vadd.f32 %v2714, 0.18741608
    %v2716 = vmul.f32 %v2707, %v2715
    %v2717 = vadd.f32 %v2716, 1.1283791
    %v2718 = vmul.f32 %v536, %v2717
    %v2719 = vmul.f32 %v2707, 3.8918573e-05
    %v2720 = vadd.f32 %v2719, 0.001143296
    %v2721 = vmul.f32 %v2707, %v2720
    %v2722 = vadd.f32 %v2721, 0.014752088
    %v2723 = vmul.f32 %v2707, %v2722
    %v2724 = vadd.f32 %v2723, 0.112945676
    %v2725 = vmul.f32 %v2707, %v2724
    %v2726 = vadd.f32 %v2725, 0.4994258
    %v2727 = vmul.f32 %v2707, %v2726
    %v2728 = vadd.f32 %v2727, 1.0
    %v2729 = vrcp.pop %v2728
    %v2730 = vmul.f32 %v2728, %v2729
    %v2731 = vsub.f32 1.0, %v2730
    %v2732 = vmul.f32 %v2729, %v2731
    %v2733 = vadd.f32 %v2729, %v2732
    %vm2734 = vweird.f32 %v2728
    %vm2735 = vweird.f32 %v2729
    %vm2736 = vmor %vm2734, %vm2735
    %v2737 = vsel %vm2736, %v2729, %v2733
    %v2738 = vand.u32 2147483647, %v2728
    %vm2739 = vcmp.eq.f32.partialorder %v2738, 8.507059e+37
    %v2740 = vand.u32 %v2728, 2147483648
    %v2741 = vor.u32 1.1754944e-38, %v2740
    %v2742 = vsel %vm2739, %v2741, %v2737
    %v2743 = vmul.f32 %v2718, %v2742
    %v2744 = vmin.f32 %v2743, 1.0
    %v2745 = vmax.f32 %v2744, -1.0
    %v2746 = vmul.f32 %v537, %v537
    %v2747 = vmin.f32 16.0, %v2746
    %v2748 = vmul.f32 %v2747, 2.1237322e-06
    %v2749 = vadd.f32 %v2748, 0.00028619796
    %v2750 = vmul.f32 %v2747, %v2749
    %v2751 = vadd.f32 %v2750, 0.0036580483
    %v2752 = vmul.f32 %v2747, %v2751
    %v2753 = vadd.f32 %v2752, 0.05243302
    %v2754 = vmul.f32 %v2747, %v2753
    %v2755 = vadd.f32 %v2754, 0.18741608
    %v2756 = vmul.f32 %v2747, %v2755
    %v2757 = vadd.f32 %v2756, 1.1283791
    %v2758 = vmul.f32 %v537, %v2757
    %v2759 = vmul.f32 %v2747, 3.8918573e-05
    %v2760 = vadd.f32 %v2759, 0.001143296
    %v2761 = vmul.f32 %v2747, %v2760
    %v2762 = vadd.f32 %v2761, 0.014752088
    %v2763 = vmul.f32 %v2747, %v2762
    %v2764 = vadd.f32 %v2763, 0.112945676
    %v2765 = vmul.f32 %v2747, %v2764
    %v2766 = vadd.f32 %v2765, 0.4994258
    %v2767 = vmul.f32 %v2747, %v2766
    %v2768 = vadd.f32 %v2767, 1.0
    %v2769 = vrcp.pop %v2768
    %v2770 = vmul.f32 %v2768, %v2769
    %v2771 = vsub.f32 1.0, %v2770
    %v2772 = vmul.f32 %v2769, %v2771
    %v2773 = vadd.f32 %v2769, %v2772
    %vm2774 = vweird.f32 %v2768
    %vm2775 = vweird.f32 %v2769
    %vm2776 = vmor %vm2774, %vm2775
    %v2777 = vsel %vm2776, %v2769, %v2773
    %v2778 = vand.u32 2147483647, %v2768
    %vm2779 = vcmp.eq.f32.partialorder %v2778, 8.507059e+37
    %v2780 = vand.u32 %v2768, 2147483648
    %v2781 = vor.u32 1.1754944e-38, %v2780
    %v2782 = vsel %vm2779, %v2781, %v2777
    %v2783 = vmul.f32 %v2758, %v2782
    %v2784 = vmin.f32 %v2783, 1.0
    %v2785 = vmax.f32 %v2784, -1.0
    %v2786 = vmul.f32 %v538, %v538
    %v2787 = vmin.f32 16.0, %v2786
    %v2788 = vmul.f32 %v2787, 2.1237322e-06
    %v2789 = vadd.f32 %v2788, 0.00028619796
    %v2790 = vmul.f32 %v2787, %v2789
    %v2791 = vadd.f32 %v2790, 0.0036580483
    %v2792 = vmul.f32 %v2787, %v2791
    %v2793 = vadd.f32 %v2792, 0.05243302
    %v2794 = vmul.f32 %v2787, %v2793
    %v2795 = vadd.f32 %v2794, 0.18741608
    %v2796 = vmul.f32 %v2787, %v2795
    %v2797 = vadd.f32 %v2796, 1.1283791
    %v2798 = vmul.f32 %v538, %v2797
    %v2799 = vmul.f32 %v2787, 3.8918573e-05
    %v2800 = vadd.f32 %v2799, 0.001143296
    %v2801 = vmul.f32 %v2787, %v2800
    %v2802 = vadd.f32 %v2801, 0.014752088
    %v2803 = vmul.f32 %v2787, %v2802
    %v2804 = vadd.f32 %v2803, 0.112945676
    %v2805 = vmul.f32 %v2787, %v2804
    %v2806 = vadd.f32 %v2805, 0.4994258
    %v2807 = vmul.f32 %v2787, %v2806
    %v2808 = vadd.f32 %v2807, 1.0
    %v2809 = vrcp.pop %v2808
    %v2810 = vmul.f32 %v2808, %v2809
    %v2811 = vsub.f32 1.0, %v2810
    %v2812 = vmul.f32 %v2809, %v2811
    %v2813 = vadd.f32 %v2809, %v2812
    %vm2814 = vweird.f32 %v2808
    %vm2815 = vweird.f32 %v2809
    %vm2816 = vmor %vm2814, %vm2815
    %v2817 = vsel %vm2816, %v2809, %v2813
    %v2818 = vand.u32 2147483647, %v2808
    %vm2819 = vcmp.eq.f32.partialorder %v2818, 8.507059e+37
    %v2820 = vand.u32 %v2808, 2147483648
    %v2821 = vor.u32 1.1754944e-38, %v2820
    %v2822 = vsel %vm2819, %v2821, %v2817
    %v2823 = vmul.f32 %v2798, %v2822
    %v2824 = vmin.f32 %v2823, 1.0
    %v2825 = vmax.f32 %v2824, -1.0
    %v2826 = vmul.f32 %v539, %v539
    %v2827 = vmin.f32 16.0, %v2826
    %v2828 = vmul.f32 %v2827, 2.1237322e-06
    %v2829 = vadd.f32 %v2828, 0.00028619796
    %v2830 = vmul.f32 %v2827, %v2829
    %v2831 = vadd.f32 %v2830, 0.0036580483
    %v2832 = vmul.f32 %v2827, %v2831
    %v2833 = vadd.f32 %v2832, 0.05243302
    %v2834 = vmul.f32 %v2827, %v2833
    %v2835 = vadd.f32 %v2834, 0.18741608
    %v2836 = vmul.f32 %v2827, %v2835
    %v2837 = vadd.f32 %v2836, 1.1283791
    %v2838 = vmul.f32 %v539, %v2837
    %v2839 = vmul.f32 %v2827, 3.8918573e-05
    %v2840 = vadd.f32 %v2839, 0.001143296
    %v2841 = vmul.f32 %v2827, %v2840
    %v2842 = vadd.f32 %v2841, 0.014752088
    %v2843 = vmul.f32 %v2827, %v2842
    %v2844 = vadd.f32 %v2843, 0.112945676
    %v2845 = vmul.f32 %v2827, %v2844
    %v2846 = vadd.f32 %v2845, 0.4994258
    %v2847 = vmul.f32 %v2827, %v2846
    %v2848 = vadd.f32 %v2847, 1.0
    %v2849 = vrcp.pop %v2848
    %v2850 = vmul.f32 %v2848, %v2849
    %v2851 = vsub.f32 1.0, %v2850
    %v2852 = vmul.f32 %v2849, %v2851
    %v2853 = vadd.f32 %v2849, %v2852
    %vm2854 = vweird.f32 %v2848
    %vm2855 = vweird.f32 %v2849
    %vm2856 = vmor %vm2854, %vm2855
    %v2857 = vsel %vm2856, %v2849, %v2853
    %v2858 = vand.u32 2147483647, %v2848
    %vm2859 = vcmp.eq.f32.partialorder %v2858, 8.507059e+37
    %v2860 = vand.u32 %v2848, 2147483648
    %v2861 = vor.u32 1.1754944e-38, %v2860
    %v2862 = vsel %vm2859, %v2861, %v2857
    %v2863 = vmul.f32 %v2838, %v2862
    %v2864 = vmin.f32 %v2863, 1.0
    %v2865 = vmax.f32 %v2864, -1.0
    %v2866 = vmul.f32 %v540, %v540
    %v2867 = vmin.f32 16.0, %v2866
    %v2868 = vmul.f32 %v2867, 2.1237322e-06
    %v2869 = vadd.f32 %v2868, 0.00028619796
    %v2870 = vmul.f32 %v2867, %v2869
    %v2871 = vadd.f32 %v2870, 0.0036580483
    %v2872 = vmul.f32 %v2867, %v2871
    %v2873 = vadd.f32 %v2872, 0.05243302
    %v2874 = vmul.f32 %v2867, %v2873
    %v2875 = vadd.f32 %v2874, 0.18741608
    %v2876 = vmul.f32 %v2867, %v2875
    %v2877 = vadd.f32 %v2876, 1.1283791
    %v2878 = vmul.f32 %v540, %v2877
    %v2879 = vmul.f32 %v2867, 3.8918573e-05
    %v2880 = vadd.f32 %v2879, 0.001143296
    %v2881 = vmul.f32 %v2867, %v2880
    %v2882 = vadd.f32 %v2881, 0.014752088
    %v2883 = vmul.f32 %v2867, %v2882
    %v2884 = vadd.f32 %v2883, 0.112945676
    %v2885 = vmul.f32 %v2867, %v2884
    %v2886 = vadd.f32 %v2885, 0.4994258
    %v2887 = vmul.f32 %v2867, %v2886
    %v2888 = vadd.f32 %v2887, 1.0
    %v2889 = vrcp.pop %v2888
    %v2890 = vmul.f32 %v2888, %v2889
    %v2891 = vsub.f32 1.0, %v2890
    %v2892 = vmul.f32 %v2889, %v2891
    %v2893 = vadd.f32 %v2889, %v2892
    %vm2894 = vweird.f32 %v2888
    %vm2895 = vweird.f32 %v2889
    %vm2896 = vmor %vm2894, %vm2895
    %v2897 = vsel %vm2896, %v2889, %v2893
    %v2898 = vand.u32 2147483647, %v2888
    %vm2899 = vcmp.eq.f32.partialorder %v2898, 8.507059e+37
    %v2900 = vand.u32 %v2888, 2147483648
    %v2901 = vor.u32 1.1754944e-38, %v2900
    %v2902 = vsel %vm2899, %v2901, %v2897
    %v2903 = vmul.f32 %v2878, %v2902
    %v2904 = vmin.f32 %v2903, 1.0
    %v2905 = vmax.f32 %v2904, -1.0
    %v2906 = vmul.f32 %v541, %v541
    %v2907 = vmin.f32 16.0, %v2906
    %v2908 = vmul.f32 %v2907, 2.1237322e-06
    %v2909 = vadd.f32 %v2908, 0.00028619796
    %v2910 = vmul.f32 %v2907, %v2909
    %v2911 = vadd.f32 %v2910, 0.0036580483
    %v2912 = vmul.f32 %v2907, %v2911
    %v2913 = vadd.f32 %v2912, 0.05243302
    %v2914 = vmul.f32 %v2907, %v2913
    %v2915 = vadd.f32 %v2914, 0.18741608
    %v2916 = vmul.f32 %v2907, %v2915
    %v2917 = vadd.f32 %v2916, 1.1283791
    %v2918 = vmul.f32 %v541, %v2917
    %v2919 = vmul.f32 %v2907, 3.8918573e-05
    %v2920 = vadd.f32 %v2919, 0.001143296
    %v2921 = vmul.f32 %v2907, %v2920
    %v2922 = vadd.f32 %v2921, 0.014752088
    %v2923 = vmul.f32 %v2907, %v2922
    %v2924 = vadd.f32 %v2923, 0.112945676
    %v2925 = vmul.f32 %v2907, %v2924
    %v2926 = vadd.f32 %v2925, 0.4994258
    %v2927 = vmul.f32 %v2907, %v2926
    %v2928 = vadd.f32 %v2927, 1.0
    %v2929 = vrcp.pop %v2928
    %v2930 = vmul.f32 %v2928, %v2929
    %v2931 = vsub.f32 1.0, %v2930
    %v2932 = vmul.f32 %v2929, %v2931
    %v2933 = vadd.f32 %v2929, %v2932
    %vm2934 = vweird.f32 %v2928
    %vm2935 = vweird.f32 %v2929
    %vm2936 = vmor %vm2934, %vm2935
    %v2937 = vsel %vm2936, %v2929, %v2933
    %v2938 = vand.u32 2147483647, %v2928
    %vm2939 = vcmp.eq.f32.partialorder %v2938, 8.507059e+37
    %v2940 = vand.u32 %v2928, 2147483648
    %v2941 = vor.u32 1.1754944e-38, %v2940
    %v2942 = vsel %vm2939, %v2941, %v2937
    %v2943 = vmul.f32 %v2918, %v2942
    %v2944 = vmin.f32 %v2943, 1.0
    %v2945 = vmax.f32 %v2944, -1.0
    %v2946 = vmul.f32 %v542, %v542
    %v2947 = vmin.f32 16.0, %v2946
    %v2948 = vmul.f32 %v2947, 2.1237322e-06
    %v2949 = vadd.f32 %v2948, 0.00028619796
    %v2950 = vmul.f32 %v2947, %v2949
    %v2951 = vadd.f32 %v2950, 0.0036580483
    %v2952 = vmul.f32 %v2947, %v2951
    %v2953 = vadd.f32 %v2952, 0.05243302
    %v2954 = vmul.f32 %v2947, %v2953
    %v2955 = vadd.f32 %v2954, 0.18741608
    %v2956 = vmul.f32 %v2947, %v2955
    %v2957 = vadd.f32 %v2956, 1.1283791
    %v2958 = vmul.f32 %v542, %v2957
    %v2959 = vmul.f32 %v2947, 3.8918573e-05
    %v2960 = vadd.f32 %v2959, 0.001143296
    %v2961 = vmul.f32 %v2947, %v2960
    %v2962 = vadd.f32 %v2961, 0.014752088
    %v2963 = vmul.f32 %v2947, %v2962
    %v2964 = vadd.f32 %v2963, 0.112945676
    %v2965 = vmul.f32 %v2947, %v2964
    %v2966 = vadd.f32 %v2965, 0.4994258
    %v2967 = vmul.f32 %v2947, %v2966
    %v2968 = vadd.f32 %v2967, 1.0
    %v2969 = vrcp.pop %v2968
    %v2970 = vmul.f32 %v2968, %v2969
    %v2971 = vsub.f32 1.0, %v2970
    %v2972 = vmul.f32 %v2969, %v2971
    %v2973 = vadd.f32 %v2969, %v2972
    %vm2974 = vweird.f32 %v2968
    %vm2975 = vweird.f32 %v2969
    %vm2976 = vmor %vm2974, %vm2975
    %v2977 = vsel %vm2976, %v2969, %v2973
    %v2978 = vand.u32 2147483647, %v2968
    %vm2979 = vcmp.eq.f32.partialorder %v2978, 8.507059e+37
    %v2980 = vand.u32 %v2968, 2147483648
    %v2981 = vor.u32 1.1754944e-38, %v2980
    %v2982 = vsel %vm2979, %v2981, %v2977
    %v2983 = vmul.f32 %v2958, %v2982
    %v2984 = vmin.f32 %v2983, 1.0
    %v2985 = vmax.f32 %v2984, -1.0
    %v2986 = vmul.f32 %v543, %v543
    %v2987 = vmin.f32 16.0, %v2986
    %v2988 = vmul.f32 %v2987, 2.1237322e-06
    %v2989 = vadd.f32 %v2988, 0.00028619796
    %v2990 = vmul.f32 %v2987, %v2989
    %v2991 = vadd.f32 %v2990, 0.0036580483
    %v2992 = vmul.f32 %v2987, %v2991
    %v2993 = vadd.f32 %v2992, 0.05243302
    %v2994 = vmul.f32 %v2987, %v2993
    %v2995 = vadd.f32 %v2994, 0.18741608
    %v2996 = vmul.f32 %v2987, %v2995
    %v2997 = vadd.f32 %v2996, 1.1283791
    %v2998 = vmul.f32 %v543, %v2997
    %v2999 = vmul.f32 %v2987, 3.8918573e-05
    %v3000 = vadd.f32 %v2999, 0.001143296
    %v3001 = vmul.f32 %v2987, %v3000
    %v3002 = vadd.f32 %v3001, 0.014752088
    %v3003 = vmul.f32 %v2987, %v3002
    %v3004 = vadd.f32 %v3003, 0.112945676
    %v3005 = vmul.f32 %v2987, %v3004
    %v3006 = vadd.f32 %v3005, 0.4994258
    %v3007 = vmul.f32 %v2987, %v3006
    %v3008 = vadd.f32 %v3007, 1.0
    %v3009 = vrcp.pop %v3008
    %v3010 = vmul.f32 %v3008, %v3009
    %v3011 = vsub.f32 1.0, %v3010
    %v3012 = vmul.f32 %v3009, %v3011
    %v3013 = vadd.f32 %v3009, %v3012
    %vm3014 = vweird.f32 %v3008
    %vm3015 = vweird.f32 %v3009
    %vm3016 = vmor %vm3014, %vm3015
    %v3017 = vsel %vm3016, %v3009, %v3013
    %v3018 = vand.u32 2147483647, %v3008
    %vm3019 = vcmp.eq.f32.partialorder %v3018, 8.507059e+37
    %v3020 = vand.u32 %v3008, 2147483648
    %v3021 = vor.u32 1.1754944e-38, %v3020
    %v3022 = vsel %vm3019, %v3021, %v3017
    %v3023 = vmul.f32 %v2998, %v3022
    %v3024 = vmin.f32 %v3023, 1.0
    %v3025 = vmax.f32 %v3024, -1.0
    %v3026 = vmul.f32 %v544, %v544
    %v3027 = vmin.f32 16.0, %v3026
    %v3028 = vmul.f32 %v3027, 2.1237322e-06
    %v3029 = vadd.f32 %v3028, 0.00028619796
    %v3030 = vmul.f32 %v3027, %v3029
    %v3031 = vadd.f32 %v3030, 0.0036580483
    %v3032 = vmul.f32 %v3027, %v3031
    %v3033 = vadd.f32 %v3032, 0.05243302
    %v3034 = vmul.f32 %v3027, %v3033
    %v3035 = vadd.f32 %v3034, 0.18741608
    %v3036 = vmul.f32 %v3027, %v3035
    %v3037 = vadd.f32 %v3036, 1.1283791
    %v3038 = vmul.f32 %v544, %v3037
    %v3039 = vmul.f32 %v3027, 3.8918573e-05
    %v3040 = vadd.f32 %v3039, 0.001143296
    %v3041 = vmul.f32 %v3027, %v3040
    %v3042 = vadd.f32 %v3041, 0.014752088
    %v3043 = vmul.f32 %v3027, %v3042
    %v3044 = vadd.f32 %v3043, 0.112945676
    %v3045 = vmul.f32 %v3027, %v3044
    %v3046 = vadd.f32 %v3045, 0.4994258
    %v3047 = vmul.f32 %v3027, %v3046
    %v3048 = vadd.f32 %v3047, 1.0
    %v3049 = vrcp.pop %v3048
    %v3050 = vmul.f32 %v3048, %v3049
    %v3051 = vsub.f32 1.0, %v3050
    %v3052 = vmul.f32 %v3049, %v3051
    %v3053 = vadd.f32 %v3049, %v3052
    %vm3054 = vweird.f32 %v3048
    %vm3055 = vweird.f32 %v3049
    %vm3056 = vmor %vm3054, %vm3055
    %v3057 = vsel %vm3056, %v3049, %v3053
    %v3058 = vand.u32 2147483647, %v3048
    %vm3059 = vcmp.eq.f32.partialorder %v3058, 8.507059e+37
    %v3060 = vand.u32 %v3048, 2147483648
    %v3061 = vor.u32 1.1754944e-38, %v3060
    %v3062 = vsel %vm3059, %v3061, %v3057
    %v3063 = vmul.f32 %v3038, %v3062
    %v3064 = vmin.f32 %v3063, 1.0
    %v3065 = vmax.f32 %v3064, -1.0
    %v3066 = vmul.f32 %v545, %v545
    %v3067 = vmin.f32 16.0, %v3066
    %v3068 = vmul.f32 %v3067, 2.1237322e-06
    %v3069 = vadd.f32 %v3068, 0.00028619796
    %v3070 = vmul.f32 %v3067, %v3069
    %v3071 = vadd.f32 %v3070, 0.0036580483
    %v3072 = vmul.f32 %v3067, %v3071
    %v3073 = vadd.f32 %v3072, 0.05243302
    %v3074 = vmul.f32 %v3067, %v3073
    %v3075 = vadd.f32 %v3074, 0.18741608
    %v3076 = vmul.f32 %v3067, %v3075
    %v3077 = vadd.f32 %v3076, 1.1283791
    %v3078 = vmul.f32 %v545, %v3077
    %v3079 = vmul.f32 %v3067, 3.8918573e-05
    %v3080 = vadd.f32 %v3079, 0.001143296
    %v3081 = vmul.f32 %v3067, %v3080
    %v3082 = vadd.f32 %v3081, 0.014752088
    %v3083 = vmul.f32 %v3067, %v3082
    %v3084 = vadd.f32 %v3083, 0.112945676
    %v3085 = vmul.f32 %v3067, %v3084
    %v3086 = vadd.f32 %v3085, 0.4994258
    %v3087 = vmul.f32 %v3067, %v3086
    %v3088 = vadd.f32 %v3087, 1.0
    %v3089 = vrcp.pop %v3088
    %v3090 = vmul.f32 %v3088, %v3089
    %v3091 = vsub.f32 1.0, %v3090
    %v3092 = vmul.f32 %v3089, %v3091
    %v3093 = vadd.f32 %v3089, %v3092
    %vm3094 = vweird.f32 %v3088
    %vm3095 = vweird.f32 %v3089
    %vm3096 = vmor %vm3094, %vm3095
    %v3097 = vsel %vm3096, %v3089, %v3093
    %v3098 = vand.u32 2147483647, %v3088
    %vm3099 = vcmp.eq.f32.partialorder %v3098, 8.507059e+37
    %v3100 = vand.u32 %v3088, 2147483648
    %v3101 = vor.u32 1.1754944e-38, %v3100
    %v3102 = vsel %vm3099, %v3101, %v3097
    %v3103 = vmul.f32 %v3078, %v3102
    %v3104 = vmin.f32 %v3103, 1.0
    %v3105 = vmax.f32 %v3104, -1.0
    %v3106 = vadd.f32 %v585, 1.0
    %v3107 = vadd.f32 %v625, 1.0
    %v3108 = vadd.f32 %v665, 1.0
    %v3109 = vadd.f32 %v705, 1.0
    %v3110 = vadd.f32 %v745, 1.0
    %v3111 = vadd.f32 %v785, 1.0
    %v3112 = vadd.f32 %v825, 1.0
    %v3113 = vadd.f32 %v865, 1.0
    %v3114 = vadd.f32 %v905, 1.0
    %v3115 = vadd.f32 %v945, 1.0
    %v3116 = vadd.f32 %v985, 1.0
    %v3117 = vadd.f32 %v1025, 1.0
    %v3118 = vadd.f32 %v1065, 1.0
    %v3119 = vadd.f32 %v1105, 1.0
    %v3120 = vadd.f32 %v1145, 1.0
    %v3121 = vadd.f32 %v1185, 1.0
    %v3122 = vadd.f32 %v1225, 1.0
    %v3123 = vadd.f32 %v1265, 1.0
    %v3124 = vadd.f32 %v1305, 1.0
    %v3125 = vadd.f32 %v1345, 1.0
    %v3126 = vadd.f32 %v1385, 1.0
    %v3127 = vadd.f32 %v1425, 1.0
    %v3128 = vadd.f32 %v1465, 1.0
    %v3129 = vadd.f32 %v1505, 1.0
    %v3130 = vadd.f32 %v1545, 1.0
    %v3131 = vadd.f32 %v1585, 1.0
    %v3132 = vadd.f32 %v1625, 1.0
    %v3133 = vadd.f32 %v1665, 1.0
    %v3134 = vadd.f32 %v1705, 1.0
    %v3135 = vadd.f32 %v1745, 1.0
    %v3136 = vadd.f32 %v1785, 1.0
    %v3137 = vadd.f32 %v1825, 1.0
    %v3138 = vadd.f32 %v1865, 1.0
    %v3139 = vadd.f32 %v1905, 1.0
    %v3140 = vadd.f32 %v1945, 1.0
    %v3141 = vadd.f32 %v1985, 1.0
    %v3142 = vadd.f32 %v2025, 1.0
    %v3143 = vadd.f32 %v2065, 1.0
    %v3144 = vadd.f32 %v2105, 1.0
    %v3145 = vadd.f32 %v2145, 1.0
    %v3146 = vadd.f32 %v2185, 1.0
    %v3147 = vadd.f32 %v2225, 1.0
    %v3148 = vadd.f32 %v2265, 1.0
    %v3149 = vadd.f32 %v2305, 1.0
    %v3150 = vadd.f32 %v2345, 1.0
    %v3151 = vadd.f32 %v2385, 1.0
    %v3152 = vadd.f32 %v2425, 1.0
    %v3153 = vadd.f32 %v2465, 1.0
    %v3154 = vadd.f32 %v2505, 1.0
    %v3155 = vadd.f32 %v2545, 1.0
    %v3156 = vadd.f32 %v2585, 1.0
    %v3157 = vadd.f32 %v2625, 1.0
    %v3158 = vadd.f32 %v2665, 1.0
    %v3159 = vadd.f32 %v2705, 1.0
    %v3160 = vadd.f32 %v2745, 1.0
    %v3161 = vadd.f32 %v2785, 1.0
    %v3162 = vadd.f32 %v2825, 1.0
    %v3163 = vadd.f32 %v2865, 1.0
    %v3164 = vadd.f32 %v2905, 1.0
    %v3165 = vadd.f32 %v2945, 1.0
    %v3166 = vadd.f32 %v2985, 1.0
    %v3167 = vadd.f32 %v3025, 1.0
    %v3168 = vadd.f32 %v3065, 1.0
    %v3169 = vadd.f32 %v3105, 1.0
    %v3170 = vmul.f32 %v418, %v3106
    %v3171 = vmul.f32 %v419, %v3107
    %v3172 = vmul.f32 %v420, %v3108
    %v3173 = vmul.f32 %v421, %v3109
    %v3174 = vmul.f32 %v422, %v3110
    %v3175 = vmul.f32 %v423, %v3111
    %v3176 = vmul.f32 %v424, %v3112
    %v3177 = vmul.f32 %v425, %v3113
    %v3178 = vmul.f32 %v426, %v3114
    %v3179 = vmul.f32 %v427, %v3115
    %v3180 = vmul.f32 %v428, %v3116
    %v3181 = vmul.f32 %v429, %v3117
    %v3182 = vmul.f32 %v430, %v3118
    %v3183 = vmul.f32 %v431, %v3119
    %v3184 = vmul.f32 %v432, %v3120
    %v3185 = vmul.f32 %v433, %v3121
    %v3186 = vmul.f32 %v434, %v3122
    %v3187 = vmul.f32 %v435, %v3123
    %v3188 = vmul.f32 %v436, %v3124
    %v3189 = vmul.f32 %v437, %v3125
    %v3190 = vmul.f32 %v438, %v3126
    %v3191 = vmul.f32 %v439, %v3127
    %v3192 = vmul.f32 %v440, %v3128
    %v3193 = vmul.f32 %v441, %v3129
    %v3194 = vmul.f32 %v442, %v3130
    %v3195 = vmul.f32 %v443, %v3131
    %v3196 = vmul.f32 %v444, %v3132
    %v3197 = vmul.f32 %v445, %v3133
    %v3198 = vmul.f32 %v446, %v3134
    %v3199 = vmul.f32 %v447, %v3135
    %v3200 = vmul.f32 %v448, %v3136
    %v3201 = vmul.f32 %v449, %v3137
    %v3202 = vmul.f32 %v450, %v3138
    %v3203 = vmul.f32 %v451, %v3139
    %v3204 = vmul.f32 %v452, %v3140
    %v3205 = vmul.f32 %v453, %v3141
    %v3206 = vmul.f32 %v454, %v3142
    %v3207 = vmul.f32 %v455, %v3143
    %v3208 = vmul.f32 %v456, %v3144
    %v3209 = vmul.f32 %v457, %v3145
    %v3210 = vmul.f32 %v458, %v3146
    %v3211 = vmul.f32 %v459, %v3147
    %v3212 = vmul.f32 %v460, %v3148
    %v3213 = vmul.f32 %v461, %v3149
    %v3214 = vmul.f32 %v462, %v3150
    %v3215 = vmul.f32 %v463, %v3151
    %v3216 = vmul.f32 %v464, %v3152
    %v3217 = vmul.f32 %v465, %v3153
    %v3218 = vmul.f32 %v466, %v3154
    %v3219 = vmul.f32 %v467, %v3155
    %v3220 = vmul.f32 %v468, %v3156
    %v3221 = vmul.f32 %v469, %v3157
    %v3222 = vmul.f32 %v470, %v3158
    %v3223 = vmul.f32 %v471, %v3159
    %v3224 = vmul.f32 %v472, %v3160
    %v3225 = vmul.f32 %v473, %v3161
    %v3226 = vmul.f32 %v474, %v3162
    %v3227 = vmul.f32 %v475, %v3163
    %v3228 = vmul.f32 %v476, %v3164
    %v3229 = vmul.f32 %v477, %v3165
    %v3230 = vmul.f32 %v478, %v3166
    %v3231 = vmul.f32 %v479, %v3167
    %v3232 = vmul.f32 %v480, %v3168
    %v3233 = vmul.f32 %v481, %v3169
    %v3234 = vld [vmem:[#allocation7] sm:$0xff]
    %v3235 = vld [vmem:[#allocation7 + $0x8] sm:$0xff]
    %v3236 = vld [vmem:[#allocation7 + $0x10] sm:$0xff]
    %v3237 = vld [vmem:[#allocation7 + $0x18] sm:$0xff]
    %v3238 = vld [vmem:[#allocation7 + $0x20] sm:$0xff]
    %v3239 = vld [vmem:[#allocation7 + $0x28] sm:$0xff]
    %v3240 = vld [vmem:[#allocation7 + $0x30] sm:$0xff]
    %v3241 = vld [vmem:[#allocation7 + $0x38] sm:$0xff]
    %v3242 = vld [vmem:[#allocation7 + $0x40] sm:$0xff]
    %v3243 = vld [vmem:[#allocation7 + $0x48] sm:$0xff]
    %v3244 = vld [vmem:[#allocation7 + $0x50] sm:$0xff]
    %v3245 = vld [vmem:[#allocation7 + $0x58] sm:$0xff]
    %v3246 = vld [vmem:[#allocation7 + $0x60] sm:$0xff]
    %v3247 = vld [vmem:[#allocation7 + $0x68] sm:$0xff]
    %v3248 = vld [vmem:[#allocation7 + $0x70] sm:$0xff]
    %v3249 = vld [vmem:[#allocation7 + $0x78] sm:$0xff]
    %v3250 = vld [vmem:[#allocation7 + $0x80] sm:$0xff]
    %v3251 = vld [vmem:[#allocation7 + $0x88] sm:$0xff]
    %v3252 = vld [vmem:[#allocation7 + $0x90] sm:$0xff]
    %v3253 = vld [vmem:[#allocation7 + $0x98] sm:$0xff]
    %v3254 = vld [vmem:[#allocation7 + $0xa0] sm:$0xff]
    %v3255 = vld [vmem:[#allocation7 + $0xa8] sm:$0xff]
    %v3256 = vld [vmem:[#allocation7 + $0xb0] sm:$0xff]
    %v3257 = vld [vmem:[#allocation7 + $0xb8] sm:$0xff]
    %v3258 = vld [vmem:[#allocation7 + $0xc0] sm:$0xff]
    %v3259 = vld [vmem:[#allocation7 + $0xc8] sm:$0xff]
    %v3260 = vld [vmem:[#allocation7 + $0xd0] sm:$0xff]
    %v3261 = vld [vmem:[#allocation7 + $0xd8] sm:$0xff]
    %v3262 = vld [vmem:[#allocation7 + $0xe0] sm:$0xff]
    %v3263 = vld [vmem:[#allocation7 + $0xe8] sm:$0xff]
    %v3264 = vld [vmem:[#allocation7 + $0xf0] sm:$0xff]
    %v3265 = vld [vmem:[#allocation7 + $0xf8] sm:$0xff]
    %v3266 = vld [vmem:[#allocation7 + $0x100] sm:$0xff]
    %v3267 = vld [vmem:[#allocation7 + $0x108] sm:$0xff]
    %v3268 = vld [vmem:[#allocation7 + $0x110] sm:$0xff]
    %v3269 = vld [vmem:[#allocation7 + $0x118] sm:$0xff]
    %v3270 = vld [vmem:[#allocation7 + $0x120] sm:$0xff]
    %v3271 = vld [vmem:[#allocation7 + $0x128] sm:$0xff]
    %v3272 = vld [vmem:[#allocation7 + $0x130] sm:$0xff]
    %v3273 = vld [vmem:[#allocation7 + $0x138] sm:$0xff]
    %v3274 = vld [vmem:[#allocation7 + $0x140] sm:$0xff]
    %v3275 = vld [vmem:[#allocation7 + $0x148] sm:$0xff]
    %v3276 = vld [vmem:[#allocation7 + $0x150] sm:$0xff]
    %v3277 = vld [vmem:[#allocation7 + $0x158] sm:$0xff]
    %v3278 = vld [vmem:[#allocation7 + $0x160] sm:$0xff]
    %v3279 = vld [vmem:[#allocation7 + $0x168] sm:$0xff]
    %v3280 = vld [vmem:[#allocation7 + $0x170] sm:$0xff]
    %v3281 = vld [vmem:[#allocation7 + $0x178] sm:$0xff]
    %v3282 = vld [vmem:[#allocation7 + $0x180] sm:$0xff]
    %v3283 = vld [vmem:[#allocation7 + $0x188] sm:$0xff]
    %v3284 = vld [vmem:[#allocation7 + $0x190] sm:$0xff]
    %v3285 = vld [vmem:[#allocation7 + $0x198] sm:$0xff]
    %v3286 = vld [vmem:[#allocation7 + $0x1a0] sm:$0xff]
    %v3287 = vld [vmem:[#allocation7 + $0x1a8] sm:$0xff]
    %v3288 = vld [vmem:[#allocation7 + $0x1b0] sm:$0xff]
    %v3289 = vld [vmem:[#allocation7 + $0x1b8] sm:$0xff]
    %v3290 = vld [vmem:[#allocation7 + $0x1c0] sm:$0xff]
    %v3291 = vld [vmem:[#allocation7 + $0x1c8] sm:$0xff]
    %v3292 = vld [vmem:[#allocation7 + $0x1d0] sm:$0xff]
    %v3293 = vld [vmem:[#allocation7 + $0x1d8] sm:$0xff]
    %v3294 = vld [vmem:[#allocation7 + $0x1e0] sm:$0xff]
    %v3295 = vld [vmem:[#allocation7 + $0x1e8] sm:$0xff]
    %v3296 = vld [vmem:[#allocation7 + $0x1f0] sm:$0xff]
    %v3297 = vld [vmem:[#allocation7 + $0x1f8] sm:$0xff]
    %v3298 = vld [vmem:[%s4] sm:$0x1]
    %v3300 = vperm.slane %v3298, 0
    %3302 = vmatpush.msra.mxu0 %v3249
    %3303 = vmatpush.msra.mxu0 %v3248
    %3304 = vmatpush.msra.mxu0 %v3247
    %3305 = vmatpush.msra.mxu0 %v3246
    %3306 = vmatpush.msra.mxu0 %v3245
    %3307 = vmatpush.msra.mxu0 %v3244
    %3308 = vmatpush.msra.mxu0 %v3243
    %3309 = vmatpush.msra.mxu0 %v3242
    %3310 = vmatpush.msra.mxu0 %v3241
    %3311 = vmatpush.msra.mxu0 %v3240
    %3312 = vmatpush.msra.mxu0 %v3239
    %3313 = vmatpush.msra.mxu0 %v3238
    %3314 = vmatpush.msra.mxu0 %v3237
    %3315 = vmatpush.msra.mxu0 %v3236
    %3316 = vmatpush.msra.mxu0 %v3235
    %3317 = vmatpush.msra.mxu0 %v3234
    %3318 = vmatmul.f32.gmra.mxu0 %v3170
    %v3319 = vpop.f32.mrf.mxu0
    %v3320 = vadd.f32 %v3300, %v3319
    %3321 = vmatmul.f32.gmra.mxu0 %v3174
    %v3322 = vpop.f32.mrf.mxu0
    %v3323 = vadd.f32 %v3300, %v3322
    %3324 = vmatmul.f32.gmra.mxu0 %v3178
    %v3325 = vpop.f32.mrf.mxu0
    %v3326 = vadd.f32 %v3300, %v3325
    %3327 = vmatmul.f32.gmra.mxu0 %v3182
    %v3328 = vpop.f32.mrf.mxu0
    %v3329 = vadd.f32 %v3300, %v3328
    %3330 = vmatmul.f32.gmra.mxu0 %v3186
    %v3331 = vpop.f32.mrf.mxu0
    %v3332 = vadd.f32 %v3300, %v3331
    %3333 = vmatmul.f32.gmra.mxu0 %v3190
    %v3334 = vpop.f32.mrf.mxu0
    %v3335 = vadd.f32 %v3300, %v3334
    %3336 = vmatmul.f32.gmra.mxu0 %v3194
    %v3337 = vpop.f32.mrf.mxu0
    %v3338 = vadd.f32 %v3300, %v3337
    %3339 = vmatmul.f32.gmra.mxu0 %v3198
    %v3340 = vpop.f32.mrf.mxu0
    %v3341 = vadd.f32 %v3300, %v3340
    %3342 = vmatmul.f32.gmra.mxu0 %v3202
    %v3343 = vpop.f32.mrf.mxu0
    %v3344 = vadd.f32 %v3300, %v3343
    %3345 = vmatmul.f32.gmra.mxu0 %v3206
    %v3346 = vpop.f32.mrf.mxu0
    %v3347 = vadd.f32 %v3300, %v3346
    %3348 = vmatmul.f32.gmra.mxu0 %v3210
    %v3349 = vpop.f32.mrf.mxu0
    %v3350 = vadd.f32 %v3300, %v3349
    %3351 = vmatmul.f32.gmra.mxu0 %v3214
    %v3352 = vpop.f32.mrf.mxu0
    %v3353 = vadd.f32 %v3300, %v3352
    %3354 = vmatmul.f32.gmra.mxu0 %v3218
    %v3355 = vpop.f32.mrf.mxu0
    %v3356 = vadd.f32 %v3300, %v3355
    %3357 = vmatmul.f32.gmra.mxu0 %v3222
    %v3358 = vpop.f32.mrf.mxu0
    %v3359 = vadd.f32 %v3300, %v3358
    %3360 = vmatmul.f32.gmra.mxu0 %v3226
    %v3361 = vpop.f32.mrf.mxu0
    %v3362 = vadd.f32 %v3300, %v3361
    %3363 = vmatmul.f32.gmra.mxu0 %v3230
    %v3364 = vpop.f32.mrf.mxu0
    %v3365 = vadd.f32 %v3300, %v3364
    %3366 = vdwg.mxu0
    %3367 = vmatpush.msra.mxu0 %v3265
    %3368 = vmatpush.msra.mxu0 %v3264
    %3369 = vmatpush.msra.mxu0 %v3263
    %3370 = vmatpush.msra.mxu0 %v3262
    %3371 = vmatpush.msra.mxu0 %v3261
    %3372 = vmatpush.msra.mxu0 %v3260
    %3373 = vmatpush.msra.mxu0 %v3259
    %3374 = vmatpush.msra.mxu0 %v3258
    %3375 = vmatpush.msra.mxu0 %v3257
    %3376 = vmatpush.msra.mxu0 %v3256
    %3377 = vmatpush.msra.mxu0 %v3255
    %3378 = vmatpush.msra.mxu0 %v3254
    %3379 = vmatpush.msra.mxu0 %v3253
    %3380 = vmatpush.msra.mxu0 %v3252
    %3381 = vmatpush.msra.mxu0 %v3251
    %3382 = vmatpush.msra.mxu0 %v3250
    %3383 = vmatmul.f32.gmra.mxu0 %v3171
    %v3384 = vpop.f32.mrf.mxu0
    %v3385 = vadd.f32 %v3320, %v3384
    %3386 = vmatmul.f32.gmra.mxu0 %v3175
    %v3387 = vpop.f32.mrf.mxu0
    %v3388 = vadd.f32 %v3323, %v3387
    %3389 = vmatmul.f32.gmra.mxu0 %v3179
    %v3390 = vpop.f32.mrf.mxu0
    %v3391 = vadd.f32 %v3326, %v3390
    %3392 = vmatmul.f32.gmra.mxu0 %v3183
    %v3393 = vpop.f32.mrf.mxu0
    %v3394 = vadd.f32 %v3329, %v3393
    %3395 = vmatmul.f32.gmra.mxu0 %v3187
    %v3396 = vpop.f32.mrf.mxu0
    %v3397 = vadd.f32 %v3332, %v3396
    %3398 = vmatmul.f32.gmra.mxu0 %v3191
    %v3399 = vpop.f32.mrf.mxu0
    %v3400 = vadd.f32 %v3335, %v3399
    %3401 = vmatmul.f32.gmra.mxu0 %v3195
    %v3402 = vpop.f32.mrf.mxu0
    %v3403 = vadd.f32 %v3338, %v3402
    %3404 = vmatmul.f32.gmra.mxu0 %v3199
    %v3405 = vpop.f32.mrf.mxu0
    %v3406 = vadd.f32 %v3341, %v3405
    %3407 = vmatmul.f32.gmra.mxu0 %v3203
    %v3408 = vpop.f32.mrf.mxu0
    %v3409 = vadd.f32 %v3344, %v3408
    %3410 = vmatmul.f32.gmra.mxu0 %v3207
    %v3411 = vpop.f32.mrf.mxu0
    %v3412 = vadd.f32 %v3347, %v3411
    %3413 = vmatmul.f32.gmra.mxu0 %v3211
    %v3414 = vpop.f32.mrf.mxu0
    %v3415 = vadd.f32 %v3350, %v3414
    %3416 = vmatmul.f32.gmra.mxu0 %v3215
    %v3417 = vpop.f32.mrf.mxu0
    %v3418 = vadd.f32 %v3353, %v3417
    %3419 = vmatmul.f32.gmra.mxu0 %v3219
    %v3420 = vpop.f32.mrf.mxu0
    %v3421 = vadd.f32 %v3356, %v3420
    %3422 = vmatmul.f32.gmra.mxu0 %v3223
    %v3423 = vpop.f32.mrf.mxu0
    %v3424 = vadd.f32 %v3359, %v3423
    %3425 = vmatmul.f32.gmra.mxu0 %v3227
    %v3426 = vpop.f32.mrf.mxu0
    %v3427 = vadd.f32 %v3362, %v3426
    %3428 = vmatmul.f32.gmra.mxu0 %v3231
    %v3429 = vpop.f32.mrf.mxu0
    %v3430 = vadd.f32 %v3365, %v3429
    %3431 = vdwg.mxu0
    %3432 = vmatpush.msra.mxu0 %v3281
    %3433 = vmatpush.msra.mxu0 %v3280
    %3434 = vmatpush.msra.mxu0 %v3279
    %3435 = vmatpush.msra.mxu0 %v3278
    %3436 = vmatpush.msra.mxu0 %v3277
    %3437 = vmatpush.msra.mxu0 %v3276
    %3438 = vmatpush.msra.mxu0 %v3275
    %3439 = vmatpush.msra.mxu0 %v3274
    %3440 = vmatpush.msra.mxu0 %v3273
    %3441 = vmatpush.msra.mxu0 %v3272
    %3442 = vmatpush.msra.mxu0 %v3271
    %3443 = vmatpush.msra.mxu0 %v3270
    %3444 = vmatpush.msra.mxu0 %v3269
    %3445 = vmatpush.msra.mxu0 %v3268
    %3446 = vmatpush.msra.mxu0 %v3267
    %3447 = vmatpush.msra.mxu0 %v3266
    %3448 = vmatmul.f32.gmra.mxu0 %v3172
    %v3449 = vpop.f32.mrf.mxu0
    %v3450 = vadd.f32 %v3385, %v3449
    %3451 = vmatmul.f32.gmra.mxu0 %v3176
    %v3452 = vpop.f32.mrf.mxu0
    %v3453 = vadd.f32 %v3388, %v3452
    %3454 = vmatmul.f32.gmra.mxu0 %v3180
    %v3455 = vpop.f32.mrf.mxu0
    %v3456 = vadd.f32 %v3391, %v3455
    %3457 = vmatmul.f32.gmra.mxu0 %v3184
    %v3458 = vpop.f32.mrf.mxu0
    %v3459 = vadd.f32 %v3394, %v3458
    %3460 = vmatmul.f32.gmra.mxu0 %v3188
    %v3461 = vpop.f32.mrf.mxu0
    %v3462 = vadd.f32 %v3397, %v3461
    %3463 = vmatmul.f32.gmra.mxu0 %v3192
    %v3464 = vpop.f32.mrf.mxu0
    %v3465 = vadd.f32 %v3400, %v3464
    %3466 = vmatmul.f32.gmra.mxu0 %v3196
    %v3467 = vpop.f32.mrf.mxu0
    %v3468 = vadd.f32 %v3403, %v3467
    %3469 = vmatmul.f32.gmra.mxu0 %v3200
    %v3470 = vpop.f32.mrf.mxu0
    %v3471 = vadd.f32 %v3406, %v3470
    %3472 = vmatmul.f32.gmra.mxu0 %v3204
    %v3473 = vpop.f32.mrf.mxu0
    %v3474 = vadd.f32 %v3409, %v3473
    %3475 = vmatmul.f32.gmra.mxu0 %v3208
    %v3476 = vpop.f32.mrf.mxu0
    %v3477 = vadd.f32 %v3412, %v3476
    %3478 = vmatmul.f32.gmra.mxu0 %v3212
    %v3479 = vpop.f32.mrf.mxu0
    %v3480 = vadd.f32 %v3415, %v3479
    %3481 = vmatmul.f32.gmra.mxu0 %v3216
    %v3482 = vpop.f32.mrf.mxu0
    %v3483 = vadd.f32 %v3418, %v3482
    %3484 = vmatmul.f32.gmra.mxu0 %v3220
    %v3485 = vpop.f32.mrf.mxu0
    %v3486 = vadd.f32 %v3421, %v3485
    %3487 = vmatmul.f32.gmra.mxu0 %v3224
    %v3488 = vpop.f32.mrf.mxu0
    %v3489 = vadd.f32 %v3424, %v3488
    %3490 = vmatmul.f32.gmra.mxu0 %v3228
    %v3491 = vpop.f32.mrf.mxu0
    %v3492 = vadd.f32 %v3427, %v3491
    %3493 = vmatmul.f32.gmra.mxu0 %v3232
    %v3494 = vpop.f32.mrf.mxu0
    %v3495 = vadd.f32 %v3430, %v3494
    %3496 = vdwg.mxu0
    %3497 = vmatpush.msra.mxu0 %v3297
    %3498 = vmatpush.msra.mxu0 %v3296
    %3499 = vmatpush.msra.mxu0 %v3295
    %3500 = vmatpush.msra.mxu0 %v3294
    %3501 = vmatpush.msra.mxu0 %v3293
    %3502 = vmatpush.msra.mxu0 %v3292
    %3503 = vmatpush.msra.mxu0 %v3291
    %3504 = vmatpush.msra.mxu0 %v3290
    %3505 = vmatpush.msra.mxu0 %v3289
    %3506 = vmatpush.msra.mxu0 %v3288
    %3507 = vmatpush.msra.mxu0 %v3287
    %3508 = vmatpush.msra.mxu0 %v3286
    %3509 = vmatpush.msra.mxu0 %v3285
    %3510 = vmatpush.msra.mxu0 %v3284
    %3511 = vmatpush.msra.mxu0 %v3283
    %3512 = vmatpush.msra.mxu0 %v3282
    %3513 = vmatmul.f32.gmra.mxu0 %v3173
    %v3514 = vpop.f32.mrf.mxu0
    %v3515 = vadd.f32 %v3450, %v3514
    %3516 = vmatmul.f32.gmra.mxu0 %v3177
    %v3517 = vpop.f32.mrf.mxu0
    %v3518 = vadd.f32 %v3453, %v3517
    %3519 = vmatmul.f32.gmra.mxu0 %v3181
    %v3520 = vpop.f32.mrf.mxu0
    %v3521 = vadd.f32 %v3456, %v3520
    %3522 = vmatmul.f32.gmra.mxu0 %v3185
    %v3523 = vpop.f32.mrf.mxu0
    %v3524 = vadd.f32 %v3459, %v3523
    %3525 = vmatmul.f32.gmra.mxu0 %v3189
    %v3526 = vpop.f32.mrf.mxu0
    %v3527 = vadd.f32 %v3462, %v3526
    %3528 = vmatmul.f32.gmra.mxu0 %v3193
    %v3529 = vpop.f32.mrf.mxu0
    %v3530 = vadd.f32 %v3465, %v3529
    %3531 = vmatmul.f32.gmra.mxu0 %v3197
    %v3532 = vpop.f32.mrf.mxu0
    %v3533 = vadd.f32 %v3468, %v3532
    %3534 = vmatmul.f32.gmra.mxu0 %v3201
    %v3535 = vpop.f32.mrf.mxu0
    %v3536 = vadd.f32 %v3471, %v3535
    %3537 = vmatmul.f32.gmra.mxu0 %v3205
    %v3538 = vpop.f32.mrf.mxu0
    %v3539 = vadd.f32 %v3474, %v3538
    %3540 = vmatmul.f32.gmra.mxu0 %v3209
    %v3541 = vpop.f32.mrf.mxu0
    %v3542 = vadd.f32 %v3477, %v3541
    %3543 = vmatmul.f32.gmra.mxu0 %v3213
    %v3544 = vpop.f32.mrf.mxu0
    %v3545 = vadd.f32 %v3480, %v3544
    %3546 = vmatmul.f32.gmra.mxu0 %v3217
    %v3547 = vpop.f32.mrf.mxu0
    %v3548 = vadd.f32 %v3483, %v3547
    %3549 = vmatmul.f32.gmra.mxu0 %v3221
    %v3550 = vpop.f32.mrf.mxu0
    %v3551 = vadd.f32 %v3486, %v3550
    %3552 = vmatmul.f32.gmra.mxu0 %v3225
    %v3553 = vpop.f32.mrf.mxu0
    %v3554 = vadd.f32 %v3489, %v3553
    %3555 = vmatmul.f32.gmra.mxu0 %v3229
    %v3556 = vpop.f32.mrf.mxu0
    %v3557 = vadd.f32 %v3492, %v3556
    %3558 = vmatmul.f32.gmra.mxu0 %v3233
    %v3559 = vpop.f32.mrf.mxu0
    %v3560 = vadd.f32 %v3495, %v3559
    %3561 = vdwg.mxu0
    %3562 = vst [vmem:[#allocation8] sm:$0xff] %v3515
    %3563 = vst [vmem:[#allocation8 + $0x8] sm:$0xff] %v3518
    %3564 = vst [vmem:[#allocation8 + $0x10] sm:$0xff] %v3521
    %3565 = vst [vmem:[#allocation8 + $0x18] sm:$0xff] %v3524
    %3566 = vst [vmem:[#allocation8 + $0x20] sm:$0xff] %v3527
    %3567 = vst [vmem:[#allocation8 + $0x28] sm:$0xff] %v3530
    %3568 = vst [vmem:[#allocation8 + $0x30] sm:$0xff] %v3533
    %3569 = vst [vmem:[#allocation8 + $0x38] sm:$0xff] %v3536
    %3570 = vst [vmem:[#allocation8 + $0x40] sm:$0xff] %v3539
    %3571 = vst [vmem:[#allocation8 + $0x48] sm:$0xff] %v3542
    %3572 = vst [vmem:[#allocation8 + $0x50] sm:$0xff] %v3545
    %3573 = vst [vmem:[#allocation8 + $0x58] sm:$0xff] %v3548
    %3574 = vst [vmem:[#allocation8 + $0x60] sm:$0xff] %v3551
    %3575 = vst [vmem:[#allocation8 + $0x68] sm:$0xff] %v3554
    %3576 = vst [vmem:[#allocation8 + $0x70] sm:$0xff] %v3557
    %3577 = vst [vmem:[#allocation8 + $0x78] sm:$0xff] %v3560
    // Predicated region
    $region34: #{mlp_forward.1} parent=1 // pred_check
      _
    $region35: #{mlp_forward.1} parent=1 // pred_check_branch
      %3579 = sbr.rel (0) target = $region37
    $region36: #{mlp_forward.1} parent=1 // pred_region
      %3581 = vsyncadd [#allocation4], 0
      %s3582 = sshll.u32 [#allocation8], 4
      %s3583 = int_to_ptr.vmem [resolvable:$true] %s3582
      %s3584 = sshll.u32 %s5, 4
      %s3585 = int_to_ptr.hbm [resolvable:$true] %s3584
      %3590 = dma.vmem_to_hbm [thread:$0]  %s3583, 2048, %s3585, [#allocation4], 128, 128, 8
    $region37: #{mlp_forward.1} parent=1 // pred_fallthru
      _
    // Predicated region
    $region38: #{mlp_forward.1} parent=1 // pred_check
      _
    $region39: #{mlp_forward.1} parent=1 // pred_check_branch
      %3592 = sbr.rel (0) target = $region41
    $region40: #{mlp_forward.1} parent=1 // pred_region
      %3594 = dma.done [#allocation4], 2048
    $region41: #{mlp_forward.1} parent=1 // pred_fallthru
      _
    %3595 = vsyncpa [#allocation3], 1
    %3596 = vsyncpa [#allocation6], 1
    %3597 = vsyncpa [#allocation4], 1

</llo_original>
